<compile_context>
chip_gen: v5e
topology: v5e:2x2
jax: 0.10.0
libtpu: 0.0.40
codegen_flags: <defaults>
</compile_context>

<pallas_src>
import functools
import math

import jax
import jax.numpy as jnp
from jax import lax
from jax.experimental import pallas as pl
from jax.experimental.pallas import tpu as pltpu

# ---- synthetic "RuBERT" config (small, self-contained) ----------------------
VOCAB = 100
HIDDEN = 32            # bert.config.hidden_size
NUM_HEADS = 4
HEAD_DIM = HIDDEN // NUM_HEADS
INTERMEDIATE = 64
NUM_LAYERS = 2
MAX_POS = 32
MLP_HIDDEN = 128       # RuBERTMLPText(hidden_size=128) default
NUM_CLASSES = 5
LOGITS_PAD = 128       # lane-dense padded logits width (first 5 are real)
LN_EPS = 1e-12


# ---- small helpers (traced inside the kernel) --------------------------------
def _layer_norm(x, gamma, beta):
    # One-pass LN: two independent reduces (E[x], E[x^2]) instead of the
    # dependent mu -> (x - mu)^2 chain; gamma*rsqrt folded into one multiplier.
    mu = jnp.mean(x, axis=-1, keepdims=True)
    ex2 = jnp.mean(x * x, axis=-1, keepdims=True)
    a = gamma * lax.rsqrt((ex2 - mu * mu) + LN_EPS)
    return x * a + (beta - mu * a)


def _gelu(x):
    # TODO(synk): HF BERT uses the exact erf-GELU; tanh approximation used here.
    c = 0.7978845608028654  # sqrt(2/pi)
    return 0.5 * x * (1.0 + jnp.tanh(c * (x + 0.044715 * x * x * x)))


# ---- the single fused Pallas kernel ------------------------------------------
def fused_forward_kernel(ids_ref, mask_ref, wemb_ref, pos_ref, type_ref,
                         emb_g_ref, emb_b_ref,
                         wq_ref, bq_ref, wk_ref, bk_ref, wv_ref, bv_ref,
                         wo_ref, bo_ref, ln1g_ref, ln1b_ref,
                         wi_ref, bi_ref, wd_ref, bd_ref, ln2g_ref, ln2b_ref,
                         w1_ref, b1_ref, w2_ref, b2_ref,
                         o_ref, x_scr, *, num_heads):
    """Embedding gather+LN -> NUM_LAYERS post-LN BERT layers -> MLP head.

    ids_ref:  (B, S)      int32 token ids in SMEM
    mask_ref: (B, S)      int32 attention mask (1 = keep, 0 = pad), VMEM
    wemb_ref: (VOCAB, H)  word-embedding table, VMEM
    per-layer weights are stacked with a leading layer axis (static indexing)
    o_ref:    (B*S, LOGITS_PAD)  lane/sublane-dense padded logits (head applied
                                 to every row; CLS rows are picked in wrapper)
    x_scr:    (B*S, H)    VMEM scratch used for the embedding gather
    """
    batch, seq = mask_ref.shape
    bs, hidden = x_scr.shape
    num_layers = wq_ref.shape[0]
    dh = hidden // num_heads

    # ---- embeddings: word gather + position + token-type, all in-kernel ----
    for b in range(batch):                                  # static unroll
        for s in range(seq):
            tok = ids_ref[b, s]                             # SMEM scalar read
            x_scr[pl.ds(b * seq + s, 1), :] = wemb_ref[pl.ds(tok, 1), :]
    pos_type = pos_ref[:seq, :] + type_ref[0:1, :]          # (S, H), type 0
    x = x_scr[...].reshape(batch, seq, hidden) + pos_type   # broadcast over B
    x = _layer_norm(x.reshape(bs, hidden), emb_g_ref[...], emb_b_ref[...])

    # HF-style additive key mask, computed ONCE for all layers/heads: (B, 1, S)
    neg = ((1.0 - mask_ref[...].astype(jnp.float32))
           * -10000.0).reshape(batch, 1, seq)

    for l in range(num_layers):                             # static unroll (2)
        # Three lane-aligned projections (1/sqrt(dh) pre-folded into Wq/bq).
        q = jnp.dot(x, wq_ref[l], preferred_element_type=jnp.float32) + bq_ref[l]
        k = jnp.dot(x, wk_ref[l], preferred_element_type=jnp.float32) + bk_ref[l]
        v = jnp.dot(x, wv_ref[l], preferred_element_type=jnp.float32) + bv_ref[l]
        q3 = q.reshape(batch, seq, hidden)
        k3 = k.reshape(batch, seq, hidden)
        v3 = v.reshape(batch, seq, hidden)

        heads = []
        for h in range(num_heads):                          # static unroll (4)
            sl = slice(h * dh, (h + 1) * dh)
            scores = jnp.einsum('bqd,bkd->bqk', q3[..., sl], k3[..., sl],
                                preferred_element_type=jnp.float32) + neg
            # No max-subtraction: scores are bounded at these magnitudes and
            # exp(-1e4) underflows cleanly to 0 in f32.
            p = jnp.exp(scores)
            p = p * pl.reciprocal(jnp.sum(p, axis=-1, keepdims=True),
                                  approx=True)
            heads.append(jnp.einsum('bqk,bkd->bqd', p, v3[..., sl],
                                    preferred_element_type=jnp.float32))
        ctx = jnp.concatenate(heads, axis=-1).reshape(bs, hidden)

        attn = (jnp.dot(ctx, wo_ref[l], preferred_element_type=jnp.float32)
                + bo_ref[l])
        h1 = _layer_norm(x + attn, ln1g_ref[l], ln1b_ref[l])

        ffn = _gelu(jnp.dot(h1, wi_ref[l], preferred_element_type=jnp.float32)
                    + bi_ref[l])
        ffn = (jnp.dot(ffn, wd_ref[l], preferred_element_type=jnp.float32)
               + bd_ref[l])
        x = _layer_norm(h1 + ffn, ln2g_ref[l], ln2b_ref[l])

    # nn.Sequential(Linear(H, 128), ReLU(), Linear(128, num_classes_padded)),
    # applied to ALL rows so the store is a full unmasked (B*S, 128) slab
    # (same number of MXU pushes as B rows since B*S < 128).
    hid = jnp.maximum(
        jnp.dot(x, w1_ref[...], preferred_element_type=jnp.float32)
        + b1_ref[...], 0.0)
    o_ref[...] = (jnp.dot(hid, w2_ref[...], preferred_element_type=jnp.float32)
                  + b2_ref[...])


# ---- parameter construction (deterministic, synthetic) -----------------------
def init_params(key):
    ks = iter(jax.random.split(key, 64))
    scale = 1.0 / math.sqrt(HEAD_DIM)

    def nrm(shape, std=0.02):
        return (std * jax.random.normal(next(ks), shape)).astype(jnp.float32)

    def stack(make):
        return jnp.stack([make() for _ in range(NUM_LAYERS)], axis=0)

    params = {
        "word_emb": nrm((VOCAB, HIDDEN)),
        "pos_emb": nrm((MAX_POS, HIDDEN)),
        "type_emb": nrm((2, HIDDEN)),
        "emb_ln_g": jnp.ones((1, HIDDEN), jnp.float32),
        "emb_ln_b": jnp.zeros((1, HIDDEN), jnp.float32),
        # attention scale 1/sqrt(dh) pre-folded into Wq/bq (parameter
        # preprocessing; the kernel does no per-call scaling).
        "wq": stack(lambda: nrm((HIDDEN, HIDDEN)) * scale),
        "bq": jnp.zeros((NUM_LAYERS, 1, HIDDEN), jnp.float32),
        "wk": stack(lambda: nrm((HIDDEN, HIDDEN))),
        "bk": jnp.zeros((NUM_LAYERS, 1, HIDDEN), jnp.float32),
        "wv": stack(lambda: nrm((HIDDEN, HIDDEN))),
        "bv": jnp.zeros((NUM_LAYERS, 1, HIDDEN), jnp.float32),
        "wo": stack(lambda: nrm((HIDDEN, HIDDEN))),
        "bo": jnp.zeros((NUM_LAYERS, 1, HIDDEN), jnp.float32),
        "ln1_g": jnp.ones((NUM_LAYERS, 1, HIDDEN), jnp.float32),
        "ln1_b": jnp.zeros((NUM_LAYERS, 1, HIDDEN), jnp.float32),
        "wi": stack(lambda: nrm((HIDDEN, INTERMEDIATE))),
        "bi": jnp.zeros((NUM_LAYERS, 1, INTERMEDIATE), jnp.float32),
        "wd": stack(lambda: nrm((INTERMEDIATE, HIDDEN))),
        "bd": jnp.zeros((NUM_LAYERS, 1, HIDDEN), jnp.float32),
        "ln2_g": jnp.ones((NUM_LAYERS, 1, HIDDEN), jnp.float32),
        "ln2_b": jnp.zeros((NUM_LAYERS, 1, HIDDEN), jnp.float32),
        "mlp_w1": nrm((HIDDEN, MLP_HIDDEN)),
        "mlp_b1": jnp.zeros((1, MLP_HIDDEN), jnp.float32),
        # Final projection padded to 128 output lanes (only first 5 are real)
        # so the kernel's logits store is an unmasked, lane-dense vst.
        "mlp_w2": jnp.pad(nrm((MLP_HIDDEN, NUM_CLASSES)),
                          ((0, 0), (0, LOGITS_PAD - NUM_CLASSES))),
        "mlp_b2": jnp.zeros((1, LOGITS_PAD), jnp.float32),
    }
    return params


# ---- full forward: a single fused pallas_call --------------------------------
@jax.jit
def rubert_mlp_text_forward(params, input_ids, attention_mask):
    B, S = input_ids.shape

    kernel = functools.partial(fused_forward_kernel, num_heads=NUM_HEADS)
    args = (input_ids.astype(jnp.int32), attention_mask.astype(jnp.int32),
            params["word_emb"], params["pos_emb"], params["type_emb"],
            params["emb_ln_g"], params["emb_ln_b"],
            params["wq"], params["bq"], params["wk"], params["bk"],
            params["wv"], params["bv"], params["wo"], params["bo"],
            params["ln1_g"], params["ln1_b"],
            params["wi"], params["bi"], params["wd"], params["bd"],
            params["ln2_g"], params["ln2_b"],
            params["mlp_w1"], params["mlp_b1"],
            params["mlp_w2"], params["mlp_b2"])

    smem_spec = pl.BlockSpec(memory_space=pltpu.MemorySpace.SMEM)   # token ids
    vmem_spec = pl.BlockSpec(memory_space=pltpu.MemorySpace.VMEM)

    padded = pl.pallas_call(
        kernel,
        out_shape=jax.ShapeDtypeStruct((B * S, LOGITS_PAD), jnp.float32),
        in_specs=[smem_spec] + [vmem_spec] * (len(args) - 1),
        out_specs=vmem_spec,
        scratch_shapes=[pltpu.VMEM((B * S, HIDDEN), jnp.float32)],
        cost_estimate=pl.CostEstimate(flops=1_250_000,
                                      transcendentals=3_200,
                                      bytes_accessed=180_000),
    )(*args)

    # CLS token per sequence, first NUM_CLASSES lanes of the padded logits.
    return padded.reshape(B, S, LOGITS_PAD)[:, 0, :NUM_CLASSES]


if __name__ == "__main__":
    B, S = 2, 8
    key = jax.random.PRNGKey(0)
    pkey, ikey = jax.random.split(key)

    params = init_params(pkey)
    input_ids = jax.random.randint(ikey, (B, S), 0, VOCAB, dtype=jnp.int32)
    # mask out the last two tokens of the second example to exercise masking
    attention_mask = jnp.ones((B, S), jnp.int32).at[1, 6:].set(0)

    logits = rubert_mlp_text_forward(params, input_ids, attention_mask)
    jax.block_until_ready(logits)
    assert logits.shape == (B, NUM_CLASSES)
    assert bool(jnp.all(jnp.isfinite(logits)))
    print("KERNEL_OK")
</pallas_src>

<mosaic_0001>
module attributes {stable_mosaic.version = 11 : i64} {
  func.func @fused_forward_kernel(%arg0: memref<2x8xi32, #tpu.memory_space<smem>>, %arg1: memref<2x8xi32, #tpu.memory_space<vmem>>, %arg2: memref<100x32xf32, #tpu.memory_space<vmem>>, %arg3: memref<32x32xf32, #tpu.memory_space<vmem>>, %arg4: memref<2x32xf32, #tpu.memory_space<vmem>>, %arg5: memref<1x32xf32, #tpu.memory_space<vmem>>, %arg6: memref<1x32xf32, #tpu.memory_space<vmem>>, %arg7: memref<2x32x32xf32, #tpu.memory_space<vmem>>, %arg8: memref<2x1x32xf32, #tpu.memory_space<vmem>>, %arg9: memref<2x32x32xf32, #tpu.memory_space<vmem>>, %arg10: memref<2x1x32xf32, #tpu.memory_space<vmem>>, %arg11: memref<2x32x32xf32, #tpu.memory_space<vmem>>, %arg12: memref<2x1x32xf32, #tpu.memory_space<vmem>>, %arg13: memref<2x32x32xf32, #tpu.memory_space<vmem>>, %arg14: memref<2x1x32xf32, #tpu.memory_space<vmem>>, %arg15: memref<2x1x32xf32, #tpu.memory_space<vmem>>, %arg16: memref<2x1x32xf32, #tpu.memory_space<vmem>>, %arg17: memref<2x32x64xf32, #tpu.memory_space<vmem>>, %arg18: memref<2x1x64xf32, #tpu.memory_space<vmem>>, %arg19: memref<2x64x32xf32, #tpu.memory_space<vmem>>, %arg20: memref<2x1x32xf32, #tpu.memory_space<vmem>>, %arg21: memref<2x1x32xf32, #tpu.memory_space<vmem>>, %arg22: memref<2x1x32xf32, #tpu.memory_space<vmem>>, %arg23: memref<32x128xf32, #tpu.memory_space<vmem>>, %arg24: memref<1x128xf32, #tpu.memory_space<vmem>>, %arg25: memref<128x128xf32, #tpu.memory_space<vmem>>, %arg26: memref<1x128xf32, #tpu.memory_space<vmem>>, %arg27: memref<16x128xf32, #tpu.memory_space<vmem>>, %arg28: memref<16x32xf32, #tpu.memory_space<vmem>>) attributes {dimension_semantics = [], scalar_prefetch = 0 : i64, scratch_operands = 1 : i64, tpu.core_type = #tpu.core_type<tc>} {
    %c0 = arith.constant 0 : index
    %c0_0 = arith.constant 0 : index
    %0 = memref.load %arg0[%c0, %c0_0] : memref<2x8xi32, #tpu.memory_space<smem>>
    %1 = arith.index_cast %0 : i32 to index
    %c0_1 = arith.constant 0 : index
    %2 = vector.load %arg2[%1, %c0_1] : memref<100x32xf32, #tpu.memory_space<vmem>>, vector<1x32xf32>
    %c0_2 = arith.constant 0 : index
    %c0_3 = arith.constant 0 : index
    %3 = vector.load %arg28[%c0_2, %c0_3] : memref<16x32xf32, #tpu.memory_space<vmem>>, vector<1x32xf32>
    tpu.vector_store %arg28[%c0_2, %c0_3], %2 {strides = array<i32>} : memref<16x32xf32, #tpu.memory_space<vmem>>, vector<1x32xf32>,
    %c0_4 = arith.constant 0 : index
    %c1 = arith.constant 1 : index
    %4 = memref.load %arg0[%c0_4, %c1] : memref<2x8xi32, #tpu.memory_space<smem>>
    %5 = arith.index_cast %4 : i32 to index
    %c0_5 = arith.constant 0 : index
    %6 = vector.load %arg2[%5, %c0_5] : memref<100x32xf32, #tpu.memory_space<vmem>>, vector<1x32xf32>
    %c1_6 = arith.constant 1 : index
    %c0_7 = arith.constant 0 : index
    %7 = vector.load %arg28[%c1_6, %c0_7] : memref<16x32xf32, #tpu.memory_space<vmem>>, vector<1x32xf32>
    tpu.vector_store %arg28[%c1_6, %c0_7], %6 {strides = array<i32>} : memref<16x32xf32, #tpu.memory_space<vmem>>, vector<1x32xf32>,
    %c0_8 = arith.constant 0 : index
    %c2 = arith.constant 2 : index
    %8 = memref.load %arg0[%c0_8, %c2] : memref<2x8xi32, #tpu.memory_space<smem>>
    %9 = arith.index_cast %8 : i32 to index
    %c0_9 = arith.constant 0 : index
    %10 = vector.load %arg2[%9, %c0_9] : memref<100x32xf32, #tpu.memory_space<vmem>>, vector<1x32xf32>
    %c2_10 = arith.constant 2 : index
    %c0_11 = arith.constant 0 : index
    %11 = vector.load %arg28[%c2_10, %c0_11] : memref<16x32xf32, #tpu.memory_space<vmem>>, vector<1x32xf32>
    tpu.vector_store %arg28[%c2_10, %c0_11], %10 {strides = array<i32>} : memref<16x32xf32, #tpu.memory_space<vmem>>, vector<1x32xf32>,
    %c0_12 = arith.constant 0 : index
    %c3 = arith.constant 3 : index
    %12 = memref.load %arg0[%c0_12, %c3] : memref<2x8xi32, #tpu.memory_space<smem>>
    %13 = arith.index_cast %12 : i32 to index
    %c0_13 = arith.constant 0 : index
    %14 = vector.load %arg2[%13, %c0_13] : memref<100x32xf32, #tpu.memory_space<vmem>>, vector<1x32xf32>
    %c3_14 = arith.constant 3 : index
    %c0_15 = arith.constant 0 : index
    %15 = vector.load %arg28[%c3_14, %c0_15] : memref<16x32xf32, #tpu.memory_space<vmem>>, vector<1x32xf32>
    tpu.vector_store %arg28[%c3_14, %c0_15], %14 {strides = array<i32>} : memref<16x32xf32, #tpu.memory_space<vmem>>, vector<1x32xf32>,
    %c0_16 = arith.constant 0 : index
    %c4 = arith.constant 4 : index
    %16 = memref.load %arg0[%c0_16, %c4] : memref<2x8xi32, #tpu.memory_space<smem>>
    %17 = arith.index_cast %16 : i32 to index
    %c0_17 = arith.constant 0 : index
    %18 = vector.load %arg2[%17, %c0_17] : memref<100x32xf32, #tpu.memory_space<vmem>>, vector<1x32xf32>
    %c4_18 = arith.constant 4 : index
    %c0_19 = arith.constant 0 : index
    %19 = vector.load %arg28[%c4_18, %c0_19] : memref<16x32xf32, #tpu.memory_space<vmem>>, vector<1x32xf32>
    tpu.vector_store %arg28[%c4_18, %c0_19], %18 {strides = array<i32>} : memref<16x32xf32, #tpu.memory_space<vmem>>, vector<1x32xf32>,
    %c0_20 = arith.constant 0 : index
    %c5 = arith.constant 5 : index
    %20 = memref.load %arg0[%c0_20, %c5] : memref<2x8xi32, #tpu.memory_space<smem>>
    %21 = arith.index_cast %20 : i32 to index
    %c0_21 = arith.constant 0 : index
    %22 = vector.load %arg2[%21, %c0_21] : memref<100x32xf32, #tpu.memory_space<vmem>>, vector<1x32xf32>
    %c5_22 = arith.constant 5 : index
    %c0_23 = arith.constant 0 : index
    %23 = vector.load %arg28[%c5_22, %c0_23] : memref<16x32xf32, #tpu.memory_space<vmem>>, vector<1x32xf32>
    tpu.vector_store %arg28[%c5_22, %c0_23], %22 {strides = array<i32>} : memref<16x32xf32, #tpu.memory_space<vmem>>, vector<1x32xf32>,
    %c0_24 = arith.constant 0 : index
    %c6 = arith.constant 6 : index
    %24 = memref.load %arg0[%c0_24, %c6] : memref<2x8xi32, #tpu.memory_space<smem>>
    %25 = arith.index_cast %24 : i32 to index
    %c0_25 = arith.constant 0 : index
    %26 = vector.load %arg2[%25, %c0_25] : memref<100x32xf32, #tpu.memory_space<vmem>>, vector<1x32xf32>
    %c6_26 = arith.constant 6 : index
    %c0_27 = arith.constant 0 : index
    %27 = vector.load %arg28[%c6_26, %c0_27] : memref<16x32xf32, #tpu.memory_space<vmem>>, vector<1x32xf32>
    tpu.vector_store %arg28[%c6_26, %c0_27], %26 {strides = array<i32>} : memref<16x32xf32, #tpu.memory_space<vmem>>, vector<1x32xf32>,
    %c0_28 = arith.constant 0 : index
    %c7 = arith.constant 7 : index
    %28 = memref.load %arg0[%c0_28, %c7] : memref<2x8xi32, #tpu.memory_space<smem>>
    %29 = arith.index_cast %28 : i32 to index
    %c0_29 = arith.constant 0 : index
    %30 = vector.load %arg2[%29, %c0_29] : memref<100x32xf32, #tpu.memory_space<vmem>>, vector<1x32xf32>
    %c7_30 = arith.constant 7 : index
    %c0_31 = arith.constant 0 : index
    %31 = vector.load %arg28[%c7_30, %c0_31] : memref<16x32xf32, #tpu.memory_space<vmem>>, vector<1x32xf32>
    tpu.vector_store %arg28[%c7_30, %c0_31], %30 {strides = array<i32>} : memref<16x32xf32, #tpu.memory_space<vmem>>, vector<1x32xf32>,
    %c1_32 = arith.constant 1 : index
    %c0_33 = arith.constant 0 : index
    %32 = memref.load %arg0[%c1_32, %c0_33] : memref<2x8xi32, #tpu.memory_space<smem>>
    %33 = arith.index_cast %32 : i32 to index
    %c0_34 = arith.constant 0 : index
    %34 = vector.load %arg2[%33, %c0_34] : memref<100x32xf32, #tpu.memory_space<vmem>>, vector<1x32xf32>
    %c8 = arith.constant 8 : index
    %c0_35 = arith.constant 0 : index
    %35 = vector.load %arg28[%c8, %c0_35] : memref<16x32xf32, #tpu.memory_space<vmem>>, vector<1x32xf32>
    tpu.vector_store %arg28[%c8, %c0_35], %34 {strides = array<i32>} : memref<16x32xf32, #tpu.memory_space<vmem>>, vector<1x32xf32>,
    %c1_36 = arith.constant 1 : index
    %c1_37 = arith.constant 1 : index
    %36 = memref.load %arg0[%c1_36, %c1_37] : memref<2x8xi32, #tpu.memory_space<smem>>
    %37 = arith.index_cast %36 : i32 to index
    %c0_38 = arith.constant 0 : index
    %38 = vector.load %arg2[%37, %c0_38] : memref<100x32xf32, #tpu.memory_space<vmem>>, vector<1x32xf32>
    %c9 = arith.constant 9 : index
    %c0_39 = arith.constant 0 : index
    %39 = vector.load %arg28[%c9, %c0_39] : memref<16x32xf32, #tpu.memory_space<vmem>>, vector<1x32xf32>
    tpu.vector_store %arg28[%c9, %c0_39], %38 {strides = array<i32>} : memref<16x32xf32, #tpu.memory_space<vmem>>, vector<1x32xf32>,
    %c1_40 = arith.constant 1 : index
    %c2_41 = arith.constant 2 : index
    %40 = memref.load %arg0[%c1_40, %c2_41] : memref<2x8xi32, #tpu.memory_space<smem>>
    %41 = arith.index_cast %40 : i32 to index
    %c0_42 = arith.constant 0 : index
    %42 = vector.load %arg2[%41, %c0_42] : memref<100x32xf32, #tpu.memory_space<vmem>>, vector<1x32xf32>
    %c10 = arith.constant 10 : index
    %c0_43 = arith.constant 0 : index
    %43 = vector.load %arg28[%c10, %c0_43] : memref<16x32xf32, #tpu.memory_space<vmem>>, vector<1x32xf32>
    tpu.vector_store %arg28[%c10, %c0_43], %42 {strides = array<i32>} : memref<16x32xf32, #tpu.memory_space<vmem>>, vector<1x32xf32>,
    %c1_44 = arith.constant 1 : index
    %c3_45 = arith.constant 3 : index
    %44 = memref.load %arg0[%c1_44, %c3_45] : memref<2x8xi32, #tpu.memory_space<smem>>
    %45 = arith.index_cast %44 : i32 to index
    %c0_46 = arith.constant 0 : index
    %46 = vector.load %arg2[%45, %c0_46] : memref<100x32xf32, #tpu.memory_space<vmem>>, vector<1x32xf32>
    %c11 = arith.constant 11 : index
    %c0_47 = arith.constant 0 : index
    %47 = vector.load %arg28[%c11, %c0_47] : memref<16x32xf32, #tpu.memory_space<vmem>>, vector<1x32xf32>
    tpu.vector_store %arg28[%c11, %c0_47], %46 {strides = array<i32>} : memref<16x32xf32, #tpu.memory_space<vmem>>, vector<1x32xf32>,
    %c1_48 = arith.constant 1 : index
    %c4_49 = arith.constant 4 : index
    %48 = memref.load %arg0[%c1_48, %c4_49] : memref<2x8xi32, #tpu.memory_space<smem>>
    %49 = arith.index_cast %48 : i32 to index
    %c0_50 = arith.constant 0 : index
    %50 = vector.load %arg2[%49, %c0_50] : memref<100x32xf32, #tpu.memory_space<vmem>>, vector<1x32xf32>
    %c12 = arith.constant 12 : index
    %c0_51 = arith.constant 0 : index
    %51 = vector.load %arg28[%c12, %c0_51] : memref<16x32xf32, #tpu.memory_space<vmem>>, vector<1x32xf32>
    tpu.vector_store %arg28[%c12, %c0_51], %50 {strides = array<i32>} : memref<16x32xf32, #tpu.memory_space<vmem>>, vector<1x32xf32>,
    %c1_52 = arith.constant 1 : index
    %c5_53 = arith.constant 5 : index
    %52 = memref.load %arg0[%c1_52, %c5_53] : memref<2x8xi32, #tpu.memory_space<smem>>
    %53 = arith.index_cast %52 : i32 to index
    %c0_54 = arith.constant 0 : index
    %54 = vector.load %arg2[%53, %c0_54] : memref<100x32xf32, #tpu.memory_space<vmem>>, vector<1x32xf32>
    %c13 = arith.constant 13 : index
    %c0_55 = arith.constant 0 : index
    %55 = vector.load %arg28[%c13, %c0_55] : memref<16x32xf32, #tpu.memory_space<vmem>>, vector<1x32xf32>
    tpu.vector_store %arg28[%c13, %c0_55], %54 {strides = array<i32>} : memref<16x32xf32, #tpu.memory_space<vmem>>, vector<1x32xf32>,
    %c1_56 = arith.constant 1 : index
    %c6_57 = arith.constant 6 : index
    %56 = memref.load %arg0[%c1_56, %c6_57] : memref<2x8xi32, #tpu.memory_space<smem>>
    %57 = arith.index_cast %56 : i32 to index
    %c0_58 = arith.constant 0 : index
    %58 = vector.load %arg2[%57, %c0_58] : memref<100x32xf32, #tpu.memory_space<vmem>>, vector<1x32xf32>
    %c14 = arith.constant 14 : index
    %c0_59 = arith.constant 0 : index
    %59 = vector.load %arg28[%c14, %c0_59] : memref<16x32xf32, #tpu.memory_space<vmem>>, vector<1x32xf32>
    tpu.vector_store %arg28[%c14, %c0_59], %58 {strides = array<i32>} : memref<16x32xf32, #tpu.memory_space<vmem>>, vector<1x32xf32>,
    %c1_60 = arith.constant 1 : index
    %c7_61 = arith.constant 7 : index
    %60 = memref.load %arg0[%c1_60, %c7_61] : memref<2x8xi32, #tpu.memory_space<smem>>
    %61 = arith.index_cast %60 : i32 to index
    %c0_62 = arith.constant 0 : index
    %62 = vector.load %arg2[%61, %c0_62] : memref<100x32xf32, #tpu.memory_space<vmem>>, vector<1x32xf32>
    %c15 = arith.constant 15 : index
    %c0_63 = arith.constant 0 : index
    %63 = vector.load %arg28[%c15, %c0_63] : memref<16x32xf32, #tpu.memory_space<vmem>>, vector<1x32xf32>
    tpu.vector_store %arg28[%c15, %c0_63], %62 {strides = array<i32>} : memref<16x32xf32, #tpu.memory_space<vmem>>, vector<1x32xf32>,
    %c0_64 = arith.constant 0 : index
    %c0_65 = arith.constant 0 : index
    %64 = vector.load %arg3[%c0_64, %c0_65] : memref<32x32xf32, #tpu.memory_space<vmem>>, vector<8x32xf32>
    %c0_66 = arith.constant 0 : index
    %c0_67 = arith.constant 0 : index
    %65 = vector.load %arg4[%c0_66, %c0_67] : memref<2x32xf32, #tpu.memory_space<vmem>>, vector<1x32xf32>
    %66 = vector.broadcast %65 : vector<1x32xf32> to vector<8x32xf32>
    %67 = arith.addf %64, %66 : vector<8x32xf32>
    %c0_68 = arith.constant 0 : index
    %c0_69 = arith.constant 0 : index
    %68 = vector.load %arg28[%c0_68, %c0_69] : memref<16x32xf32, #tpu.memory_space<vmem>>, vector<16x32xf32>
    %69 = vector.shape_cast %68 : vector<16x32xf32> to vector<2x8x32xf32>
    %70 = vector.shape_cast %67 : vector<8x32xf32> to vector<1x8x32xf32>
    %71 = vector.broadcast %70 : vector<1x8x32xf32> to vector<2x8x32xf32>
    %72 = arith.addf %69, %71 : vector<2x8x32xf32>
    %73 = vector.shape_cast %72 : vector<2x8x32xf32> to vector<16x32xf32>
    %c0_70 = arith.constant 0 : index
    %c0_71 = arith.constant 0 : index
    %74 = vector.load %arg5[%c0_70, %c0_71] : memref<1x32xf32, #tpu.memory_space<vmem>>, vector<1x32xf32>
    %c0_72 = arith.constant 0 : index
    %c0_73 = arith.constant 0 : index
    %75 = vector.load %arg6[%c0_72, %c0_73] : memref<1x32xf32, #tpu.memory_space<vmem>>, vector<1x32xf32>
    %cst = arith.constant dense<0.000000e+00> : vector<16xf32>
    %76 = vector.multi_reduction <add>, %73, %cst [1] : vector<16x32xf32> to vector<16xf32>
    %77 = vector.shape_cast %76 : vector<16xf32> to vector<16x1xf32>
    %cst_74 = arith.constant 3.200000e+01 : f32
    %78 = vector.broadcast %cst_74 : f32 to vector<16x1xf32>
    %79 = arith.divf %77, %78 : vector<16x1xf32>
    %80 = arith.mulf %73, %73 : vector<16x32xf32>
    %cst_75 = arith.constant dense<0.000000e+00> : vector<16xf32>
    %81 = vector.multi_reduction <add>, %80, %cst_75 [1] : vector<16x32xf32> to vector<16xf32>
    %82 = vector.shape_cast %81 : vector<16xf32> to vector<16x1xf32>
    %cst_76 = arith.constant 3.200000e+01 : f32
    %83 = vector.broadcast %cst_76 : f32 to vector<16x1xf32>
    %84 = arith.divf %82, %83 : vector<16x1xf32>
    %85 = arith.mulf %79, %79 : vector<16x1xf32>
    %86 = arith.subf %84, %85 : vector<16x1xf32>
    %cst_77 = arith.constant 9.99999996E-13 : f32
    %87 = vector.broadcast %cst_77 : f32 to vector<16x1xf32>
    %88 = arith.addf %86, %87 : vector<16x1xf32>
    %89 = math.rsqrt %88 : vector<16x1xf32>
    %90 = vector.broadcast %74 : vector<1x32xf32> to vector<16x32xf32>
    %91 = vector.broadcast %89 : vector<16x1xf32> to vector<16x32xf32>
    %92 = arith.mulf %90, %91 : vector<16x32xf32>
    %93 = arith.mulf %73, %92 : vector<16x32xf32>
    %94 = vector.broadcast %79 : vector<16x1xf32> to vector<16x32xf32>
    %95 = arith.mulf %94, %92 : vector<16x32xf32>
    %96 = vector.broadcast %75 : vector<1x32xf32> to vector<16x32xf32>
    %97 = arith.subf %96, %95 : vector<16x32xf32>
    %98 = arith.addf %93, %97 : vector<16x32xf32>
    %c0_78 = arith.constant 0 : index
    %c0_79 = arith.constant 0 : index
    %99 = vector.load %arg1[%c0_78, %c0_79] : memref<2x8xi32, #tpu.memory_space<vmem>>, vector<2x8xi32>
    %100 = arith.sitofp %99 : vector<2x8xi32> to vector<2x8xf32>
    %cst_80 = arith.constant 1.000000e+00 : f32
    %101 = vector.broadcast %cst_80 : f32 to vector<2x8xf32>
    %102 = arith.subf %101, %100 : vector<2x8xf32>
    %cst_81 = arith.constant -1.000000e+04 : f32
    %103 = vector.broadcast %cst_81 : f32 to vector<2x8xf32>
    %104 = arith.mulf %102, %103 : vector<2x8xf32>
    %105 = vector.shape_cast %104 : vector<2x8xf32> to vector<2x1x8xf32>
    %c0_82 = arith.constant 0 : index
    %c0_83 = arith.constant 0 : index
    %c0_84 = arith.constant 0 : index
    %106 = vector.load %arg7[%c0_82, %c0_83, %c0_84] : memref<2x32x32xf32, #tpu.memory_space<vmem>>, vector<1x32x32xf32>
    %107 = vector.shape_cast %106 : vector<1x32x32xf32> to vector<32x32xf32>
    %cst_85 = arith.constant dense<0.000000e+00> : vector<16x32xf32>
    %108 = tpu.matmul %98, %107, %cst_85 {dimension_numbers = #tpu.dot_dimension_numbers<[1], [0], [0], [1], [0, 0, 1, 1], [], []>} : vector<16x32xf32>, vector<32x32xf32>, vector<16x32xf32> -> vector<16x32xf32>
    %c0_86 = arith.constant 0 : index
    %c0_87 = arith.constant 0 : index
    %c0_88 = arith.constant 0 : index
    %109 = vector.load %arg8[%c0_86, %c0_87, %c0_88] : memref<2x1x32xf32, #tpu.memory_space<vmem>>, vector<1x1x32xf32>
    %110 = vector.shape_cast %109 : vector<1x1x32xf32> to vector<1x32xf32>
    %111 = vector.broadcast %110 : vector<1x32xf32> to vector<16x32xf32>
    %112 = arith.addf %108, %111 : vector<16x32xf32>
    %c0_89 = arith.constant 0 : index
    %c0_90 = arith.constant 0 : index
    %c0_91 = arith.constant 0 : index
    %113 = vector.load %arg9[%c0_89, %c0_90, %c0_91] : memref<2x32x32xf32, #tpu.memory_space<vmem>>, vector<1x32x32xf32>
    %114 = vector.shape_cast %113 : vector<1x32x32xf32> to vector<32x32xf32>
    %cst_92 = arith.constant dense<0.000000e+00> : vector<16x32xf32>
    %115 = tpu.matmul %98, %114, %cst_92 {dimension_numbers = #tpu.dot_dimension_numbers<[1], [0], [0], [1], [0, 0, 1, 1], [], []>} : vector<16x32xf32>, vector<32x32xf32>, vector<16x32xf32> -> vector<16x32xf32>
    %c0_93 = arith.constant 0 : index
    %c0_94 = arith.constant 0 : index
    %c0_95 = arith.constant 0 : index
    %116 = vector.load %arg10[%c0_93, %c0_94, %c0_95] : memref<2x1x32xf32, #tpu.memory_space<vmem>>, vector<1x1x32xf32>
    %117 = vector.shape_cast %116 : vector<1x1x32xf32> to vector<1x32xf32>
    %118 = vector.broadcast %117 : vector<1x32xf32> to vector<16x32xf32>
    %119 = arith.addf %115, %118 : vector<16x32xf32>
    %c0_96 = arith.constant 0 : index
    %c0_97 = arith.constant 0 : index
    %c0_98 = arith.constant 0 : index
    %120 = vector.load %arg11[%c0_96, %c0_97, %c0_98] : memref<2x32x32xf32, #tpu.memory_space<vmem>>, vector<1x32x32xf32>
    %121 = vector.shape_cast %120 : vector<1x32x32xf32> to vector<32x32xf32>
    %cst_99 = arith.constant dense<0.000000e+00> : vector<16x32xf32>
    %122 = tpu.matmul %98, %121, %cst_99 {dimension_numbers = #tpu.dot_dimension_numbers<[1], [0], [0], [1], [0, 0, 1, 1], [], []>} : vector<16x32xf32>, vector<32x32xf32>, vector<16x32xf32> -> vector<16x32xf32>
    %c0_100 = arith.constant 0 : index
    %c0_101 = arith.constant 0 : index
    %c0_102 = arith.constant 0 : index
    %123 = vector.load %arg12[%c0_100, %c0_101, %c0_102] : memref<2x1x32xf32, #tpu.memory_space<vmem>>, vector<1x1x32xf32>
    %124 = vector.shape_cast %123 : vector<1x1x32xf32> to vector<1x32xf32>
    %125 = vector.broadcast %124 : vector<1x32xf32> to vector<16x32xf32>
    %126 = arith.addf %122, %125 : vector<16x32xf32>
    %127 = vector.shape_cast %112 : vector<16x32xf32> to vector<2x8x32xf32>
    %128 = vector.shape_cast %119 : vector<16x32xf32> to vector<2x8x32xf32>
    %129 = vector.shape_cast %126 : vector<16x32xf32> to vector<2x8x32xf32>
    %130 = vector.extract_strided_slice %127 {offsets = [0, 0, 0], sizes = [2, 8, 8], strides = [1, 1, 1]} : vector<2x8x32xf32> to vector<2x8x8xf32>
    %131 = vector.extract_strided_slice %128 {offsets = [0, 0, 0], sizes = [2, 8, 8], strides = [1, 1, 1]} : vector<2x8x32xf32> to vector<2x8x8xf32>
    "tpu.trace_start"() <{level = 10 : i32, message = "bqd,bkd->bqk"}> : () -> ()
    %cst_103 = arith.constant dense<0.000000e+00> : vector<2x8x8xf32>
    %132 = tpu.matmul %130, %131, %cst_103 {dimension_numbers = #tpu.dot_dimension_numbers<[2], [2], [1], [1], [0, 0, 0, 1, 1, 1], [0], [0]>} : vector<2x8x8xf32>, vector<2x8x8xf32>, vector<2x8x8xf32> -> vector<2x8x8xf32>
    "tpu.trace_stop"() : () -> ()
    %133 = vector.broadcast %105 : vector<2x1x8xf32> to vector<2x8x8xf32>
    %134 = arith.addf %132, %133 : vector<2x8x8xf32>
    %135 = math.exp %134 : vector<2x8x8xf32>
    %cst_104 = arith.constant dense<0.000000e+00> : vector<2x8xf32>
    %136 = vector.multi_reduction <add>, %135, %cst_104 [2] : vector<2x8x8xf32> to vector<2x8xf32>
    %137 = vector.shape_cast %136 : vector<2x8xf32> to vector<2x8x1xf32>
    %138 = tpu.reciprocal %137 {approx = true} : vector<2x8x1xf32> -> vector<2x8x1xf32>
    %139 = vector.broadcast %138 : vector<2x8x1xf32> to vector<2x8x8xf32>
    %140 = arith.mulf %135, %139 : vector<2x8x8xf32>
    %141 = vector.extract_strided_slice %129 {offsets = [0, 0, 0], sizes = [2, 8, 8], strides = [1, 1, 1]} : vector<2x8x32xf32> to vector<2x8x8xf32>
    "tpu.trace_start"() <{level = 10 : i32, message = "bqk,bkd->bqd"}> : () -> ()
    %cst_105 = arith.constant dense<0.000000e+00> : vector<2x8x8xf32>
    %142 = tpu.matmul %140, %141, %cst_105 {dimension_numbers = #tpu.dot_dimension_numbers<[2], [1], [1], [2], [0, 0, 0, 1, 1, 2], [0], [0]>} : vector<2x8x8xf32>, vector<2x8x8xf32>, vector<2x8x8xf32> -> vector<2x8x8xf32>
    "tpu.trace_stop"() : () -> ()
    %143 = vector.extract_strided_slice %127 {offsets = [0, 0, 8], sizes = [2, 8, 8], strides = [1, 1, 1]} : vector<2x8x32xf32> to vector<2x8x8xf32>
    %144 = vector.extract_strided_slice %128 {offsets = [0, 0, 8], sizes = [2, 8, 8], strides = [1, 1, 1]} : vector<2x8x32xf32> to vector<2x8x8xf32>
    "tpu.trace_start"() <{level = 10 : i32, message = "bqd,bkd->bqk"}> : () -> ()
    %cst_106 = arith.constant dense<0.000000e+00> : vector<2x8x8xf32>
    %145 = tpu.matmul %143, %144, %cst_106 {dimension_numbers = #tpu.dot_dimension_numbers<[2], [2], [1], [1], [0, 0, 0, 1, 1, 1], [0], [0]>} : vector<2x8x8xf32>, vector<2x8x8xf32>, vector<2x8x8xf32> -> vector<2x8x8xf32>
    "tpu.trace_stop"() : () -> ()
    %146 = vector.broadcast %105 : vector<2x1x8xf32> to vector<2x8x8xf32>
    %147 = arith.addf %145, %146 : vector<2x8x8xf32>
    %148 = math.exp %147 : vector<2x8x8xf32>
    %cst_107 = arith.constant dense<0.000000e+00> : vector<2x8xf32>
    %149 = vector.multi_reduction <add>, %148, %cst_107 [2] : vector<2x8x8xf32> to vector<2x8xf32>
    %150 = vector.shape_cast %149 : vector<2x8xf32> to vector<2x8x1xf32>
    %151 = tpu.reciprocal %150 {approx = true} : vector<2x8x1xf32> -> vector<2x8x1xf32>
    %152 = vector.broadcast %151 : vector<2x8x1xf32> to vector<2x8x8xf32>
    %153 = arith.mulf %148, %152 : vector<2x8x8xf32>
    %154 = vector.extract_strided_slice %129 {offsets = [0, 0, 8], sizes = [2, 8, 8], strides = [1, 1, 1]} : vector<2x8x32xf32> to vector<2x8x8xf32>
    "tpu.trace_start"() <{level = 10 : i32, message = "bqk,bkd->bqd"}> : () -> ()
    %cst_108 = arith.constant dense<0.000000e+00> : vector<2x8x8xf32>
    %155 = tpu.matmul %153, %154, %cst_108 {dimension_numbers = #tpu.dot_dimension_numbers<[2], [1], [1], [2], [0, 0, 0, 1, 1, 2], [0], [0]>} : vector<2x8x8xf32>, vector<2x8x8xf32>, vector<2x8x8xf32> -> vector<2x8x8xf32>
    "tpu.trace_stop"() : () -> ()
    %156 = vector.extract_strided_slice %127 {offsets = [0, 0, 16], sizes = [2, 8, 8], strides = [1, 1, 1]} : vector<2x8x32xf32> to vector<2x8x8xf32>
    %157 = vector.extract_strided_slice %128 {offsets = [0, 0, 16], sizes = [2, 8, 8], strides = [1, 1, 1]} : vector<2x8x32xf32> to vector<2x8x8xf32>
    "tpu.trace_start"() <{level = 10 : i32, message = "bqd,bkd->bqk"}> : () -> ()
    %cst_109 = arith.constant dense<0.000000e+00> : vector<2x8x8xf32>
    %158 = tpu.matmul %156, %157, %cst_109 {dimension_numbers = #tpu.dot_dimension_numbers<[2], [2], [1], [1], [0, 0, 0, 1, 1, 1], [0], [0]>} : vector<2x8x8xf32>, vector<2x8x8xf32>, vector<2x8x8xf32> -> vector<2x8x8xf32>
    "tpu.trace_stop"() : () -> ()
    %159 = vector.broadcast %105 : vector<2x1x8xf32> to vector<2x8x8xf32>
    %160 = arith.addf %158, %159 : vector<2x8x8xf32>
    %161 = math.exp %160 : vector<2x8x8xf32>
    %cst_110 = arith.constant dense<0.000000e+00> : vector<2x8xf32>
    %162 = vector.multi_reduction <add>, %161, %cst_110 [2] : vector<2x8x8xf32> to vector<2x8xf32>
    %163 = vector.shape_cast %162 : vector<2x8xf32> to vector<2x8x1xf32>
    %164 = tpu.reciprocal %163 {approx = true} : vector<2x8x1xf32> -> vector<2x8x1xf32>
    %165 = vector.broadcast %164 : vector<2x8x1xf32> to vector<2x8x8xf32>
    %166 = arith.mulf %161, %165 : vector<2x8x8xf32>
    %167 = vector.extract_strided_slice %129 {offsets = [0, 0, 16], sizes = [2, 8, 8], strides = [1, 1, 1]} : vector<2x8x32xf32> to vector<2x8x8xf32>
    "tpu.trace_start"() <{level = 10 : i32, message = "bqk,bkd->bqd"}> : () -> ()
    %cst_111 = arith.constant dense<0.000000e+00> : vector<2x8x8xf32>
    %168 = tpu.matmul %166, %167, %cst_111 {dimension_numbers = #tpu.dot_dimension_numbers<[2], [1], [1], [2], [0, 0, 0, 1, 1, 2], [0], [0]>} : vector<2x8x8xf32>, vector<2x8x8xf32>, vector<2x8x8xf32> -> vector<2x8x8xf32>
    "tpu.trace_stop"() : () -> ()
    %169 = vector.extract_strided_slice %127 {offsets = [0, 0, 24], sizes = [2, 8, 8], strides = [1, 1, 1]} : vector<2x8x32xf32> to vector<2x8x8xf32>
    %170 = vector.extract_strided_slice %128 {offsets = [0, 0, 24], sizes = [2, 8, 8], strides = [1, 1, 1]} : vector<2x8x32xf32> to vector<2x8x8xf32>
    "tpu.trace_start"() <{level = 10 : i32, message = "bqd,bkd->bqk"}> : () -> ()
    %cst_112 = arith.constant dense<0.000000e+00> : vector<2x8x8xf32>
    %171 = tpu.matmul %169, %170, %cst_112 {dimension_numbers = #tpu.dot_dimension_numbers<[2], [2], [1], [1], [0, 0, 0, 1, 1, 1], [0], [0]>} : vector<2x8x8xf32>, vector<2x8x8xf32>, vector<2x8x8xf32> -> vector<2x8x8xf32>
    "tpu.trace_stop"() : () -> ()
    %172 = vector.broadcast %105 : vector<2x1x8xf32> to vector<2x8x8xf32>
    %173 = arith.addf %171, %172 : vector<2x8x8xf32>
    %174 = math.exp %173 : vector<2x8x8xf32>
    %cst_113 = arith.constant dense<0.000000e+00> : vector<2x8xf32>
    %175 = vector.multi_reduction <add>, %174, %cst_113 [2] : vector<2x8x8xf32> to vector<2x8xf32>
    %176 = vector.shape_cast %175 : vector<2x8xf32> to vector<2x8x1xf32>
    %177 = tpu.reciprocal %176 {approx = true} : vector<2x8x1xf32> -> vector<2x8x1xf32>
    %178 = vector.broadcast %177 : vector<2x8x1xf32> to vector<2x8x8xf32>
    %179 = arith.mulf %174, %178 : vector<2x8x8xf32>
    %180 = vector.extract_strided_slice %129 {offsets = [0, 0, 24], sizes = [2, 8, 8], strides = [1, 1, 1]} : vector<2x8x32xf32> to vector<2x8x8xf32>
    "tpu.trace_start"() <{level = 10 : i32, message = "bqk,bkd->bqd"}> : () -> ()
    %cst_114 = arith.constant dense<0.000000e+00> : vector<2x8x8xf32>
    %181 = tpu.matmul %179, %180, %cst_114 {dimension_numbers = #tpu.dot_dimension_numbers<[2], [1], [1], [2], [0, 0, 0, 1, 1, 2], [0], [0]>} : vector<2x8x8xf32>, vector<2x8x8xf32>, vector<2x8x8xf32> -> vector<2x8x8xf32>
    "tpu.trace_stop"() : () -> ()
    %182 = tpu.concatenate %142, %155, %168, %181 in 2 : vector<2x8x8xf32>, vector<2x8x8xf32>, vector<2x8x8xf32>, vector<2x8x8xf32> -> vector<2x8x32xf32>
    %183 = vector.shape_cast %182 : vector<2x8x32xf32> to vector<16x32xf32>
    %c0_115 = arith.constant 0 : index
    %c0_116 = arith.constant 0 : index
    %c0_117 = arith.constant 0 : index
    %184 = vector.load %arg13[%c0_115, %c0_116, %c0_117] : memref<2x32x32xf32, #tpu.memory_space<vmem>>, vector<1x32x32xf32>
    %185 = vector.shape_cast %184 : vector<1x32x32xf32> to vector<32x32xf32>
    %cst_118 = arith.constant dense<0.000000e+00> : vector<16x32xf32>
    %186 = tpu.matmul %183, %185, %cst_118 {dimension_numbers = #tpu.dot_dimension_numbers<[1], [0], [0], [1], [0, 0, 1, 1], [], []>} : vector<16x32xf32>, vector<32x32xf32>, vector<16x32xf32> -> vector<16x32xf32>
    %c0_119 = arith.constant 0 : index
    %c0_120 = arith.constant 0 : index
    %c0_121 = arith.constant 0 : index
    %187 = vector.load %arg14[%c0_119, %c0_120, %c0_121] : memref<2x1x32xf32, #tpu.memory_space<vmem>>, vector<1x1x32xf32>
    %188 = vector.shape_cast %187 : vector<1x1x32xf32> to vector<1x32xf32>
    %189 = vector.broadcast %188 : vector<1x32xf32> to vector<16x32xf32>
    %190 = arith.addf %186, %189 : vector<16x32xf32>
    %191 = arith.addf %98, %190 : vector<16x32xf32>
    %c0_122 = arith.constant 0 : index
    %c0_123 = arith.constant 0 : index
    %c0_124 = arith.constant 0 : index
    %192 = vector.load %arg15[%c0_122, %c0_123, %c0_124] : memref<2x1x32xf32, #tpu.memory_space<vmem>>, vector<1x1x32xf32>
    %193 = vector.shape_cast %192 : vector<1x1x32xf32> to vector<1x32xf32>
    %c0_125 = arith.constant 0 : index
    %c0_126 = arith.constant 0 : index
    %c0_127 = arith.constant 0 : index
    %194 = vector.load %arg16[%c0_125, %c0_126, %c0_127] : memref<2x1x32xf32, #tpu.memory_space<vmem>>, vector<1x1x32xf32>
    %195 = vector.shape_cast %194 : vector<1x1x32xf32> to vector<1x32xf32>
    %cst_128 = arith.constant dense<0.000000e+00> : vector<16xf32>
    %196 = vector.multi_reduction <add>, %191, %cst_128 [1] : vector<16x32xf32> to vector<16xf32>
    %197 = vector.shape_cast %196 : vector<16xf32> to vector<16x1xf32>
    %cst_129 = arith.constant 3.200000e+01 : f32
    %198 = vector.broadcast %cst_129 : f32 to vector<16x1xf32>
    %199 = arith.divf %197, %198 : vector<16x1xf32>
    %200 = arith.mulf %191, %191 : vector<16x32xf32>
    %cst_130 = arith.constant dense<0.000000e+00> : vector<16xf32>
    %201 = vector.multi_reduction <add>, %200, %cst_130 [1] : vector<16x32xf32> to vector<16xf32>
    %202 = vector.shape_cast %201 : vector<16xf32> to vector<16x1xf32>
    %cst_131 = arith.constant 3.200000e+01 : f32
    %203 = vector.broadcast %cst_131 : f32 to vector<16x1xf32>
    %204 = arith.divf %202, %203 : vector<16x1xf32>
    %205 = arith.mulf %199, %199 : vector<16x1xf32>
    %206 = arith.subf %204, %205 : vector<16x1xf32>
    %cst_132 = arith.constant 9.99999996E-13 : f32
    %207 = vector.broadcast %cst_132 : f32 to vector<16x1xf32>
    %208 = arith.addf %206, %207 : vector<16x1xf32>
    %209 = math.rsqrt %208 : vector<16x1xf32>
    %210 = vector.broadcast %193 : vector<1x32xf32> to vector<16x32xf32>
    %211 = vector.broadcast %209 : vector<16x1xf32> to vector<16x32xf32>
    %212 = arith.mulf %210, %211 : vector<16x32xf32>
    %213 = arith.mulf %191, %212 : vector<16x32xf32>
    %214 = vector.broadcast %199 : vector<16x1xf32> to vector<16x32xf32>
    %215 = arith.mulf %214, %212 : vector<16x32xf32>
    %216 = vector.broadcast %195 : vector<1x32xf32> to vector<16x32xf32>
    %217 = arith.subf %216, %215 : vector<16x32xf32>
    %218 = arith.addf %213, %217 : vector<16x32xf32>
    %c0_133 = arith.constant 0 : index
    %c0_134 = arith.constant 0 : index
    %c0_135 = arith.constant 0 : index
    %219 = vector.load %arg17[%c0_133, %c0_134, %c0_135] : memref<2x32x64xf32, #tpu.memory_space<vmem>>, vector<1x32x64xf32>
    %220 = vector.shape_cast %219 : vector<1x32x64xf32> to vector<32x64xf32>
    %cst_136 = arith.constant dense<0.000000e+00> : vector<16x64xf32>
    %221 = tpu.matmul %218, %220, %cst_136 {dimension_numbers = #tpu.dot_dimension_numbers<[1], [0], [0], [1], [0, 0, 1, 1], [], []>} : vector<16x32xf32>, vector<32x64xf32>, vector<16x64xf32> -> vector<16x64xf32>
    %c0_137 = arith.constant 0 : index
    %c0_138 = arith.constant 0 : index
    %c0_139 = arith.constant 0 : index
    %222 = vector.load %arg18[%c0_137, %c0_138, %c0_139] : memref<2x1x64xf32, #tpu.memory_space<vmem>>, vector<1x1x64xf32>
    %223 = vector.shape_cast %222 : vector<1x1x64xf32> to vector<1x64xf32>
    %224 = vector.broadcast %223 : vector<1x64xf32> to vector<16x64xf32>
    %225 = arith.addf %221, %224 : vector<16x64xf32>
    %cst_140 = arith.constant 5.000000e-01 : f32
    %226 = vector.broadcast %cst_140 : f32 to vector<16x64xf32>
    %227 = arith.mulf %226, %225 : vector<16x64xf32>
    %cst_141 = arith.constant 4.471500e-02 : f32
    %228 = vector.broadcast %cst_141 : f32 to vector<16x64xf32>
    %229 = arith.mulf %228, %225 : vector<16x64xf32>
    %230 = arith.mulf %229, %225 : vector<16x64xf32>
    %231 = arith.mulf %230, %225 : vector<16x64xf32>
    %232 = arith.addf %225, %231 : vector<16x64xf32>
    %cst_142 = arith.constant 0.797884583 : f32
    %233 = vector.broadcast %cst_142 : f32 to vector<16x64xf32>
    %234 = arith.mulf %233, %232 : vector<16x64xf32>
    %235 = math.tanh %234 : vector<16x64xf32>
    %cst_143 = arith.constant 1.000000e+00 : f32
    %236 = vector.broadcast %cst_143 : f32 to vector<16x64xf32>
    %237 = arith.addf %236, %235 : vector<16x64xf32>
    %238 = arith.mulf %227, %237 : vector<16x64xf32>
    %c0_144 = arith.constant 0 : index
    %c0_145 = arith.constant 0 : index
    %c0_146 = arith.constant 0 : index
    %239 = vector.load %arg19[%c0_144, %c0_145, %c0_146] : memref<2x64x32xf32, #tpu.memory_space<vmem>>, vector<1x64x32xf32>
    %240 = vector.shape_cast %239 : vector<1x64x32xf32> to vector<64x32xf32>
    %cst_147 = arith.constant dense<0.000000e+00> : vector<16x32xf32>
    %241 = tpu.matmul %238, %240, %cst_147 {dimension_numbers = #tpu.dot_dimension_numbers<[1], [0], [0], [1], [0, 0, 1, 1], [], []>} : vector<16x64xf32>, vector<64x32xf32>, vector<16x32xf32> -> vector<16x32xf32>
    %c0_148 = arith.constant 0 : index
    %c0_149 = arith.constant 0 : index
    %c0_150 = arith.constant 0 : index
    %242 = vector.load %arg20[%c0_148, %c0_149, %c0_150] : memref<2x1x32xf32, #tpu.memory_space<vmem>>, vector<1x1x32xf32>
    %243 = vector.shape_cast %242 : vector<1x1x32xf32> to vector<1x32xf32>
    %244 = vector.broadcast %243 : vector<1x32xf32> to vector<16x32xf32>
    %245 = arith.addf %241, %244 : vector<16x32xf32>
    %246 = arith.addf %218, %245 : vector<16x32xf32>
    %c0_151 = arith.constant 0 : index
    %c0_152 = arith.constant 0 : index
    %c0_153 = arith.constant 0 : index
    %247 = vector.load %arg21[%c0_151, %c0_152, %c0_153] : memref<2x1x32xf32, #tpu.memory_space<vmem>>, vector<1x1x32xf32>
    %248 = vector.shape_cast %247 : vector<1x1x32xf32> to vector<1x32xf32>
    %c0_154 = arith.constant 0 : index
    %c0_155 = arith.constant 0 : index
    %c0_156 = arith.constant 0 : index
    %249 = vector.load %arg22[%c0_154, %c0_155, %c0_156] : memref<2x1x32xf32, #tpu.memory_space<vmem>>, vector<1x1x32xf32>
    %250 = vector.shape_cast %249 : vector<1x1x32xf32> to vector<1x32xf32>
    %cst_157 = arith.constant dense<0.000000e+00> : vector<16xf32>
    %251 = vector.multi_reduction <add>, %246, %cst_157 [1] : vector<16x32xf32> to vector<16xf32>
    %252 = vector.shape_cast %251 : vector<16xf32> to vector<16x1xf32>
    %cst_158 = arith.constant 3.200000e+01 : f32
    %253 = vector.broadcast %cst_158 : f32 to vector<16x1xf32>
    %254 = arith.divf %252, %253 : vector<16x1xf32>
    %255 = arith.mulf %246, %246 : vector<16x32xf32>
    %cst_159 = arith.constant dense<0.000000e+00> : vector<16xf32>
    %256 = vector.multi_reduction <add>, %255, %cst_159 [1] : vector<16x32xf32> to vector<16xf32>
    %257 = vector.shape_cast %256 : vector<16xf32> to vector<16x1xf32>
    %cst_160 = arith.constant 3.200000e+01 : f32
    %258 = vector.broadcast %cst_160 : f32 to vector<16x1xf32>
    %259 = arith.divf %257, %258 : vector<16x1xf32>
    %260 = arith.mulf %254, %254 : vector<16x1xf32>
    %261 = arith.subf %259, %260 : vector<16x1xf32>
    %cst_161 = arith.constant 9.99999996E-13 : f32
    %262 = vector.broadcast %cst_161 : f32 to vector<16x1xf32>
    %263 = arith.addf %261, %262 : vector<16x1xf32>
    %264 = math.rsqrt %263 : vector<16x1xf32>
    %265 = vector.broadcast %248 : vector<1x32xf32> to vector<16x32xf32>
    %266 = vector.broadcast %264 : vector<16x1xf32> to vector<16x32xf32>
    %267 = arith.mulf %265, %266 : vector<16x32xf32>
    %268 = arith.mulf %246, %267 : vector<16x32xf32>
    %269 = vector.broadcast %254 : vector<16x1xf32> to vector<16x32xf32>
    %270 = arith.mulf %269, %267 : vector<16x32xf32>
    %271 = vector.broadcast %250 : vector<1x32xf32> to vector<16x32xf32>
    %272 = arith.subf %271, %270 : vector<16x32xf32>
    %273 = arith.addf %268, %272 : vector<16x32xf32>
    %c1_162 = arith.constant 1 : index
    %c0_163 = arith.constant 0 : index
    %c0_164 = arith.constant 0 : index
    %274 = vector.load %arg7[%c1_162, %c0_163, %c0_164] : memref<2x32x32xf32, #tpu.memory_space<vmem>>, vector<1x32x32xf32>
    %275 = vector.shape_cast %274 : vector<1x32x32xf32> to vector<32x32xf32>
    %cst_165 = arith.constant dense<0.000000e+00> : vector<16x32xf32>
    %276 = tpu.matmul %273, %275, %cst_165 {dimension_numbers = #tpu.dot_dimension_numbers<[1], [0], [0], [1], [0, 0, 1, 1], [], []>} : vector<16x32xf32>, vector<32x32xf32>, vector<16x32xf32> -> vector<16x32xf32>
    %c1_166 = arith.constant 1 : index
    %c0_167 = arith.constant 0 : index
    %c0_168 = arith.constant 0 : index
    %277 = vector.load %arg8[%c1_166, %c0_167, %c0_168] : memref<2x1x32xf32, #tpu.memory_space<vmem>>, vector<1x1x32xf32>
    %278 = vector.shape_cast %277 : vector<1x1x32xf32> to vector<1x32xf32>
    %279 = vector.broadcast %278 : vector<1x32xf32> to vector<16x32xf32>
    %280 = arith.addf %276, %279 : vector<16x32xf32>
    %c1_169 = arith.constant 1 : index
    %c0_170 = arith.constant 0 : index
    %c0_171 = arith.constant 0 : index
    %281 = vector.load %arg9[%c1_169, %c0_170, %c0_171] : memref<2x32x32xf32, #tpu.memory_space<vmem>>, vector<1x32x32xf32>
    %282 = vector.shape_cast %281 : vector<1x32x32xf32> to vector<32x32xf32>
    %cst_172 = arith.constant dense<0.000000e+00> : vector<16x32xf32>
    %283 = tpu.matmul %273, %282, %cst_172 {dimension_numbers = #tpu.dot_dimension_numbers<[1], [0], [0], [1], [0, 0, 1, 1], [], []>} : vector<16x32xf32>, vector<32x32xf32>, vector<16x32xf32> -> vector<16x32xf32>
    %c1_173 = arith.constant 1 : index
    %c0_174 = arith.constant 0 : index
    %c0_175 = arith.constant 0 : index
    %284 = vector.load %arg10[%c1_173, %c0_174, %c0_175] : memref<2x1x32xf32, #tpu.memory_space<vmem>>, vector<1x1x32xf32>
    %285 = vector.shape_cast %284 : vector<1x1x32xf32> to vector<1x32xf32>
    %286 = vector.broadcast %285 : vector<1x32xf32> to vector<16x32xf32>
    %287 = arith.addf %283, %286 : vector<16x32xf32>
    %c1_176 = arith.constant 1 : index
    %c0_177 = arith.constant 0 : index
    %c0_178 = arith.constant 0 : index
    %288 = vector.load %arg11[%c1_176, %c0_177, %c0_178] : memref<2x32x32xf32, #tpu.memory_space<vmem>>, vector<1x32x32xf32>
    %289 = vector.shape_cast %288 : vector<1x32x32xf32> to vector<32x32xf32>
    %cst_179 = arith.constant dense<0.000000e+00> : vector<16x32xf32>
    %290 = tpu.matmul %273, %289, %cst_179 {dimension_numbers = #tpu.dot_dimension_numbers<[1], [0], [0], [1], [0, 0, 1, 1], [], []>} : vector<16x32xf32>, vector<32x32xf32>, vector<16x32xf32> -> vector<16x32xf32>
    %c1_180 = arith.constant 1 : index
    %c0_181 = arith.constant 0 : index
    %c0_182 = arith.constant 0 : index
    %291 = vector.load %arg12[%c1_180, %c0_181, %c0_182] : memref<2x1x32xf32, #tpu.memory_space<vmem>>, vector<1x1x32xf32>
    %292 = vector.shape_cast %291 : vector<1x1x32xf32> to vector<1x32xf32>
    %293 = vector.broadcast %292 : vector<1x32xf32> to vector<16x32xf32>
    %294 = arith.addf %290, %293 : vector<16x32xf32>
    %295 = vector.shape_cast %280 : vector<16x32xf32> to vector<2x8x32xf32>
    %296 = vector.shape_cast %287 : vector<16x32xf32> to vector<2x8x32xf32>
    %297 = vector.shape_cast %294 : vector<16x32xf32> to vector<2x8x32xf32>
    %298 = vector.extract_strided_slice %295 {offsets = [0, 0, 0], sizes = [2, 8, 8], strides = [1, 1, 1]} : vector<2x8x32xf32> to vector<2x8x8xf32>
    %299 = vector.extract_strided_slice %296 {offsets = [0, 0, 0], sizes = [2, 8, 8], strides = [1, 1, 1]} : vector<2x8x32xf32> to vector<2x8x8xf32>
    "tpu.trace_start"() <{level = 10 : i32, message = "bqd,bkd->bqk"}> : () -> ()
    %cst_183 = arith.constant dense<0.000000e+00> : vector<2x8x8xf32>
    %300 = tpu.matmul %298, %299, %cst_183 {dimension_numbers = #tpu.dot_dimension_numbers<[2], [2], [1], [1], [0, 0, 0, 1, 1, 1], [0], [0]>} : vector<2x8x8xf32>, vector<2x8x8xf32>, vector<2x8x8xf32> -> vector<2x8x8xf32>
    "tpu.trace_stop"() : () -> ()
    %301 = vector.broadcast %105 : vector<2x1x8xf32> to vector<2x8x8xf32>
    %302 = arith.addf %300, %301 : vector<2x8x8xf32>
    %303 = math.exp %302 : vector<2x8x8xf32>
    %cst_184 = arith.constant dense<0.000000e+00> : vector<2x8xf32>
    %304 = vector.multi_reduction <add>, %303, %cst_184 [2] : vector<2x8x8xf32> to vector<2x8xf32>
    %305 = vector.shape_cast %304 : vector<2x8xf32> to vector<2x8x1xf32>
    %306 = tpu.reciprocal %305 {approx = true} : vector<2x8x1xf32> -> vector<2x8x1xf32>
    %307 = vector.broadcast %306 : vector<2x8x1xf32> to vector<2x8x8xf32>
    %308 = arith.mulf %303, %307 : vector<2x8x8xf32>
    %309 = vector.extract_strided_slice %297 {offsets = [0, 0, 0], sizes = [2, 8, 8], strides = [1, 1, 1]} : vector<2x8x32xf32> to vector<2x8x8xf32>
    "tpu.trace_start"() <{level = 10 : i32, message = "bqk,bkd->bqd"}> : () -> ()
    %cst_185 = arith.constant dense<0.000000e+00> : vector<2x8x8xf32>
    %310 = tpu.matmul %308, %309, %cst_185 {dimension_numbers = #tpu.dot_dimension_numbers<[2], [1], [1], [2], [0, 0, 0, 1, 1, 2], [0], [0]>} : vector<2x8x8xf32>, vector<2x8x8xf32>, vector<2x8x8xf32> -> vector<2x8x8xf32>
    "tpu.trace_stop"() : () -> ()
    %311 = vector.extract_strided_slice %295 {offsets = [0, 0, 8], sizes = [2, 8, 8], strides = [1, 1, 1]} : vector<2x8x32xf32> to vector<2x8x8xf32>
    %312 = vector.extract_strided_slice %296 {offsets = [0, 0, 8], sizes = [2, 8, 8], strides = [1, 1, 1]} : vector<2x8x32xf32> to vector<2x8x8xf32>
    "tpu.trace_start"() <{level = 10 : i32, message = "bqd,bkd->bqk"}> : () -> ()
    %cst_186 = arith.constant dense<0.000000e+00> : vector<2x8x8xf32>
    %313 = tpu.matmul %311, %312, %cst_186 {dimension_numbers = #tpu.dot_dimension_numbers<[2], [2], [1], [1], [0, 0, 0, 1, 1, 1], [0], [0]>} : vector<2x8x8xf32>, vector<2x8x8xf32>, vector<2x8x8xf32> -> vector<2x8x8xf32>
    "tpu.trace_stop"() : () -> ()
    %314 = vector.broadcast %105 : vector<2x1x8xf32> to vector<2x8x8xf32>
    %315 = arith.addf %313, %314 : vector<2x8x8xf32>
    %316 = math.exp %315 : vector<2x8x8xf32>
    %cst_187 = arith.constant dense<0.000000e+00> : vector<2x8xf32>
    %317 = vector.multi_reduction <add>, %316, %cst_187 [2] : vector<2x8x8xf32> to vector<2x8xf32>
    %318 = vector.shape_cast %317 : vector<2x8xf32> to vector<2x8x1xf32>
    %319 = tpu.reciprocal %318 {approx = true} : vector<2x8x1xf32> -> vector<2x8x1xf32>
    %320 = vector.broadcast %319 : vector<2x8x1xf32> to vector<2x8x8xf32>
    %321 = arith.mulf %316, %320 : vector<2x8x8xf32>
    %322 = vector.extract_strided_slice %297 {offsets = [0, 0, 8], sizes = [2, 8, 8], strides = [1, 1, 1]} : vector<2x8x32xf32> to vector<2x8x8xf32>
    "tpu.trace_start"() <{level = 10 : i32, message = "bqk,bkd->bqd"}> : () -> ()
    %cst_188 = arith.constant dense<0.000000e+00> : vector<2x8x8xf32>
    %323 = tpu.matmul %321, %322, %cst_188 {dimension_numbers = #tpu.dot_dimension_numbers<[2], [1], [1], [2], [0, 0, 0, 1, 1, 2], [0], [0]>} : vector<2x8x8xf32>, vector<2x8x8xf32>, vector<2x8x8xf32> -> vector<2x8x8xf32>
    "tpu.trace_stop"() : () -> ()
    %324 = vector.extract_strided_slice %295 {offsets = [0, 0, 16], sizes = [2, 8, 8], strides = [1, 1, 1]} : vector<2x8x32xf32> to vector<2x8x8xf32>
    %325 = vector.extract_strided_slice %296 {offsets = [0, 0, 16], sizes = [2, 8, 8], strides = [1, 1, 1]} : vector<2x8x32xf32> to vector<2x8x8xf32>
    "tpu.trace_start"() <{level = 10 : i32, message = "bqd,bkd->bqk"}> : () -> ()
    %cst_189 = arith.constant dense<0.000000e+00> : vector<2x8x8xf32>
    %326 = tpu.matmul %324, %325, %cst_189 {dimension_numbers = #tpu.dot_dimension_numbers<[2], [2], [1], [1], [0, 0, 0, 1, 1, 1], [0], [0]>} : vector<2x8x8xf32>, vector<2x8x8xf32>, vector<2x8x8xf32> -> vector<2x8x8xf32>
    "tpu.trace_stop"() : () -> ()
    %327 = vector.broadcast %105 : vector<2x1x8xf32> to vector<2x8x8xf32>
    %328 = arith.addf %326, %327 : vector<2x8x8xf32>
    %329 = math.exp %328 : vector<2x8x8xf32>
    %cst_190 = arith.constant dense<0.000000e+00> : vector<2x8xf32>
    %330 = vector.multi_reduction <add>, %329, %cst_190 [2] : vector<2x8x8xf32> to vector<2x8xf32>
    %331 = vector.shape_cast %330 : vector<2x8xf32> to vector<2x8x1xf32>
    %332 = tpu.reciprocal %331 {approx = true} : vector<2x8x1xf32> -> vector<2x8x1xf32>
    %333 = vector.broadcast %332 : vector<2x8x1xf32> to vector<2x8x8xf32>
    %334 = arith.mulf %329, %333 : vector<2x8x8xf32>
    %335 = vector.extract_strided_slice %297 {offsets = [0, 0, 16], sizes = [2, 8, 8], strides = [1, 1, 1]} : vector<2x8x32xf32> to vector<2x8x8xf32>
    "tpu.trace_start"() <{level = 10 : i32, message = "bqk,bkd->bqd"}> : () -> ()
    %cst_191 = arith.constant dense<0.000000e+00> : vector<2x8x8xf32>
    %336 = tpu.matmul %334, %335, %cst_191 {dimension_numbers = #tpu.dot_dimension_numbers<[2], [1], [1], [2], [0, 0, 0, 1, 1, 2], [0], [0]>} : vector<2x8x8xf32>, vector<2x8x8xf32>, vector<2x8x8xf32> -> vector<2x8x8xf32>
    "tpu.trace_stop"() : () -> ()
    %337 = vector.extract_strided_slice %295 {offsets = [0, 0, 24], sizes = [2, 8, 8], strides = [1, 1, 1]} : vector<2x8x32xf32> to vector<2x8x8xf32>
    %338 = vector.extract_strided_slice %296 {offsets = [0, 0, 24], sizes = [2, 8, 8], strides = [1, 1, 1]} : vector<2x8x32xf32> to vector<2x8x8xf32>
    "tpu.trace_start"() <{level = 10 : i32, message = "bqd,bkd->bqk"}> : () -> ()
    %cst_192 = arith.constant dense<0.000000e+00> : vector<2x8x8xf32>
    %339 = tpu.matmul %337, %338, %cst_192 {dimension_numbers = #tpu.dot_dimension_numbers<[2], [2], [1], [1], [0, 0, 0, 1, 1, 1], [0], [0]>} : vector<2x8x8xf32>, vector<2x8x8xf32>, vector<2x8x8xf32> -> vector<2x8x8xf32>
    "tpu.trace_stop"() : () -> ()
    %340 = vector.broadcast %105 : vector<2x1x8xf32> to vector<2x8x8xf32>
    %341 = arith.addf %339, %340 : vector<2x8x8xf32>
    %342 = math.exp %341 : vector<2x8x8xf32>
    %cst_193 = arith.constant dense<0.000000e+00> : vector<2x8xf32>
    %343 = vector.multi_reduction <add>, %342, %cst_193 [2] : vector<2x8x8xf32> to vector<2x8xf32>
    %344 = vector.shape_cast %343 : vector<2x8xf32> to vector<2x8x1xf32>
    %345 = tpu.reciprocal %344 {approx = true} : vector<2x8x1xf32> -> vector<2x8x1xf32>
    %346 = vector.broadcast %345 : vector<2x8x1xf32> to vector<2x8x8xf32>
    %347 = arith.mulf %342, %346 : vector<2x8x8xf32>
    %348 = vector.extract_strided_slice %297 {offsets = [0, 0, 24], sizes = [2, 8, 8], strides = [1, 1, 1]} : vector<2x8x32xf32> to vector<2x8x8xf32>
    "tpu.trace_start"() <{level = 10 : i32, message = "bqk,bkd->bqd"}> : () -> ()
    %cst_194 = arith.constant dense<0.000000e+00> : vector<2x8x8xf32>
    %349 = tpu.matmul %347, %348, %cst_194 {dimension_numbers = #tpu.dot_dimension_numbers<[2], [1], [1], [2], [0, 0, 0, 1, 1, 2], [0], [0]>} : vector<2x8x8xf32>, vector<2x8x8xf32>, vector<2x8x8xf32> -> vector<2x8x8xf32>
    "tpu.trace_stop"() : () -> ()
    %350 = tpu.concatenate %310, %323, %336, %349 in 2 : vector<2x8x8xf32>, vector<2x8x8xf32>, vector<2x8x8xf32>, vector<2x8x8xf32> -> vector<2x8x32xf32>
    %351 = vector.shape_cast %350 : vector<2x8x32xf32> to vector<16x32xf32>
    %c1_195 = arith.constant 1 : index
    %c0_196 = arith.constant 0 : index
    %c0_197 = arith.constant 0 : index
    %352 = vector.load %arg13[%c1_195, %c0_196, %c0_197] : memref<2x32x32xf32, #tpu.memory_space<vmem>>, vector<1x32x32xf32>
    %353 = vector.shape_cast %352 : vector<1x32x32xf32> to vector<32x32xf32>
    %cst_198 = arith.constant dense<0.000000e+00> : vector<16x32xf32>
    %354 = tpu.matmul %351, %353, %cst_198 {dimension_numbers = #tpu.dot_dimension_numbers<[1], [0], [0], [1], [0, 0, 1, 1], [], []>} : vector<16x32xf32>, vector<32x32xf32>, vector<16x32xf32> -> vector<16x32xf32>
    %c1_199 = arith.constant 1 : index
    %c0_200 = arith.constant 0 : index
    %c0_201 = arith.constant 0 : index
    %355 = vector.load %arg14[%c1_199, %c0_200, %c0_201] : memref<2x1x32xf32, #tpu.memory_space<vmem>>, vector<1x1x32xf32>
    %356 = vector.shape_cast %355 : vector<1x1x32xf32> to vector<1x32xf32>
    %357 = vector.broadcast %356 : vector<1x32xf32> to vector<16x32xf32>
    %358 = arith.addf %354, %357 : vector<16x32xf32>
    %359 = arith.addf %273, %358 : vector<16x32xf32>
    %c1_202 = arith.constant 1 : index
    %c0_203 = arith.constant 0 : index
    %c0_204 = arith.constant 0 : index
    %360 = vector.load %arg15[%c1_202, %c0_203, %c0_204] : memref<2x1x32xf32, #tpu.memory_space<vmem>>, vector<1x1x32xf32>
    %361 = vector.shape_cast %360 : vector<1x1x32xf32> to vector<1x32xf32>
    %c1_205 = arith.constant 1 : index
    %c0_206 = arith.constant 0 : index
    %c0_207 = arith.constant 0 : index
    %362 = vector.load %arg16[%c1_205, %c0_206, %c0_207] : memref<2x1x32xf32, #tpu.memory_space<vmem>>, vector<1x1x32xf32>
    %363 = vector.shape_cast %362 : vector<1x1x32xf32> to vector<1x32xf32>
    %cst_208 = arith.constant dense<0.000000e+00> : vector<16xf32>
    %364 = vector.multi_reduction <add>, %359, %cst_208 [1] : vector<16x32xf32> to vector<16xf32>
    %365 = vector.shape_cast %364 : vector<16xf32> to vector<16x1xf32>
    %cst_209 = arith.constant 3.200000e+01 : f32
    %366 = vector.broadcast %cst_209 : f32 to vector<16x1xf32>
    %367 = arith.divf %365, %366 : vector<16x1xf32>
    %368 = arith.mulf %359, %359 : vector<16x32xf32>
    %cst_210 = arith.constant dense<0.000000e+00> : vector<16xf32>
    %369 = vector.multi_reduction <add>, %368, %cst_210 [1] : vector<16x32xf32> to vector<16xf32>
    %370 = vector.shape_cast %369 : vector<16xf32> to vector<16x1xf32>
    %cst_211 = arith.constant 3.200000e+01 : f32
    %371 = vector.broadcast %cst_211 : f32 to vector<16x1xf32>
    %372 = arith.divf %370, %371 : vector<16x1xf32>
    %373 = arith.mulf %367, %367 : vector<16x1xf32>
    %374 = arith.subf %372, %373 : vector<16x1xf32>
    %cst_212 = arith.constant 9.99999996E-13 : f32
    %375 = vector.broadcast %cst_212 : f32 to vector<16x1xf32>
    %376 = arith.addf %374, %375 : vector<16x1xf32>
    %377 = math.rsqrt %376 : vector<16x1xf32>
    %378 = vector.broadcast %361 : vector<1x32xf32> to vector<16x32xf32>
    %379 = vector.broadcast %377 : vector<16x1xf32> to vector<16x32xf32>
    %380 = arith.mulf %378, %379 : vector<16x32xf32>
    %381 = arith.mulf %359, %380 : vector<16x32xf32>
    %382 = vector.broadcast %367 : vector<16x1xf32> to vector<16x32xf32>
    %383 = arith.mulf %382, %380 : vector<16x32xf32>
    %384 = vector.broadcast %363 : vector<1x32xf32> to vector<16x32xf32>
    %385 = arith.subf %384, %383 : vector<16x32xf32>
    %386 = arith.addf %381, %385 : vector<16x32xf32>
    %c1_213 = arith.constant 1 : index
    %c0_214 = arith.constant 0 : index
    %c0_215 = arith.constant 0 : index
    %387 = vector.load %arg17[%c1_213, %c0_214, %c0_215] : memref<2x32x64xf32, #tpu.memory_space<vmem>>, vector<1x32x64xf32>
    %388 = vector.shape_cast %387 : vector<1x32x64xf32> to vector<32x64xf32>
    %cst_216 = arith.constant dense<0.000000e+00> : vector<16x64xf32>
    %389 = tpu.matmul %386, %388, %cst_216 {dimension_numbers = #tpu.dot_dimension_numbers<[1], [0], [0], [1], [0, 0, 1, 1], [], []>} : vector<16x32xf32>, vector<32x64xf32>, vector<16x64xf32> -> vector<16x64xf32>
    %c1_217 = arith.constant 1 : index
    %c0_218 = arith.constant 0 : index
    %c0_219 = arith.constant 0 : index
    %390 = vector.load %arg18[%c1_217, %c0_218, %c0_219] : memref<2x1x64xf32, #tpu.memory_space<vmem>>, vector<1x1x64xf32>
    %391 = vector.shape_cast %390 : vector<1x1x64xf32> to vector<1x64xf32>
    %392 = vector.broadcast %391 : vector<1x64xf32> to vector<16x64xf32>
    %393 = arith.addf %389, %392 : vector<16x64xf32>
    %cst_220 = arith.constant 5.000000e-01 : f32
    %394 = vector.broadcast %cst_220 : f32 to vector<16x64xf32>
    %395 = arith.mulf %394, %393 : vector<16x64xf32>
    %cst_221 = arith.constant 4.471500e-02 : f32
    %396 = vector.broadcast %cst_221 : f32 to vector<16x64xf32>
    %397 = arith.mulf %396, %393 : vector<16x64xf32>
    %398 = arith.mulf %397, %393 : vector<16x64xf32>
    %399 = arith.mulf %398, %393 : vector<16x64xf32>
    %400 = arith.addf %393, %399 : vector<16x64xf32>
    %cst_222 = arith.constant 0.797884583 : f32
    %401 = vector.broadcast %cst_222 : f32 to vector<16x64xf32>
    %402 = arith.mulf %401, %400 : vector<16x64xf32>
    %403 = math.tanh %402 : vector<16x64xf32>
    %cst_223 = arith.constant 1.000000e+00 : f32
    %404 = vector.broadcast %cst_223 : f32 to vector<16x64xf32>
    %405 = arith.addf %404, %403 : vector<16x64xf32>
    %406 = arith.mulf %395, %405 : vector<16x64xf32>
    %c1_224 = arith.constant 1 : index
    %c0_225 = arith.constant 0 : index
    %c0_226 = arith.constant 0 : index
    %407 = vector.load %arg19[%c1_224, %c0_225, %c0_226] : memref<2x64x32xf32, #tpu.memory_space<vmem>>, vector<1x64x32xf32>
    %408 = vector.shape_cast %407 : vector<1x64x32xf32> to vector<64x32xf32>
    %cst_227 = arith.constant dense<0.000000e+00> : vector<16x32xf32>
    %409 = tpu.matmul %406, %408, %cst_227 {dimension_numbers = #tpu.dot_dimension_numbers<[1], [0], [0], [1], [0, 0, 1, 1], [], []>} : vector<16x64xf32>, vector<64x32xf32>, vector<16x32xf32> -> vector<16x32xf32>
    %c1_228 = arith.constant 1 : index
    %c0_229 = arith.constant 0 : index
    %c0_230 = arith.constant 0 : index
    %410 = vector.load %arg20[%c1_228, %c0_229, %c0_230] : memref<2x1x32xf32, #tpu.memory_space<vmem>>, vector<1x1x32xf32>
    %411 = vector.shape_cast %410 : vector<1x1x32xf32> to vector<1x32xf32>
    %412 = vector.broadcast %411 : vector<1x32xf32> to vector<16x32xf32>
    %413 = arith.addf %409, %412 : vector<16x32xf32>
    %414 = arith.addf %386, %413 : vector<16x32xf32>
    %c1_231 = arith.constant 1 : index
    %c0_232 = arith.constant 0 : index
    %c0_233 = arith.constant 0 : index
    %415 = vector.load %arg21[%c1_231, %c0_232, %c0_233] : memref<2x1x32xf32, #tpu.memory_space<vmem>>, vector<1x1x32xf32>
    %416 = vector.shape_cast %415 : vector<1x1x32xf32> to vector<1x32xf32>
    %c1_234 = arith.constant 1 : index
    %c0_235 = arith.constant 0 : index
    %c0_236 = arith.constant 0 : index
    %417 = vector.load %arg22[%c1_234, %c0_235, %c0_236] : memref<2x1x32xf32, #tpu.memory_space<vmem>>, vector<1x1x32xf32>
    %418 = vector.shape_cast %417 : vector<1x1x32xf32> to vector<1x32xf32>
    %cst_237 = arith.constant dense<0.000000e+00> : vector<16xf32>
    %419 = vector.multi_reduction <add>, %414, %cst_237 [1] : vector<16x32xf32> to vector<16xf32>
    %420 = vector.shape_cast %419 : vector<16xf32> to vector<16x1xf32>
    %cst_238 = arith.constant 3.200000e+01 : f32
    %421 = vector.broadcast %cst_238 : f32 to vector<16x1xf32>
    %422 = arith.divf %420, %421 : vector<16x1xf32>
    %423 = arith.mulf %414, %414 : vector<16x32xf32>
    %cst_239 = arith.constant dense<0.000000e+00> : vector<16xf32>
    %424 = vector.multi_reduction <add>, %423, %cst_239 [1] : vector<16x32xf32> to vector<16xf32>
    %425 = vector.shape_cast %424 : vector<16xf32> to vector<16x1xf32>
    %cst_240 = arith.constant 3.200000e+01 : f32
    %426 = vector.broadcast %cst_240 : f32 to vector<16x1xf32>
    %427 = arith.divf %425, %426 : vector<16x1xf32>
    %428 = arith.mulf %422, %422 : vector<16x1xf32>
    %429 = arith.subf %427, %428 : vector<16x1xf32>
    %cst_241 = arith.constant 9.99999996E-13 : f32
    %430 = vector.broadcast %cst_241 : f32 to vector<16x1xf32>
    %431 = arith.addf %429, %430 : vector<16x1xf32>
    %432 = math.rsqrt %431 : vector<16x1xf32>
    %433 = vector.broadcast %416 : vector<1x32xf32> to vector<16x32xf32>
    %434 = vector.broadcast %432 : vector<16x1xf32> to vector<16x32xf32>
    %435 = arith.mulf %433, %434 : vector<16x32xf32>
    %436 = arith.mulf %414, %435 : vector<16x32xf32>
    %437 = vector.broadcast %422 : vector<16x1xf32> to vector<16x32xf32>
    %438 = arith.mulf %437, %435 : vector<16x32xf32>
    %439 = vector.broadcast %418 : vector<1x32xf32> to vector<16x32xf32>
    %440 = arith.subf %439, %438 : vector<16x32xf32>
    %441 = arith.addf %436, %440 : vector<16x32xf32>
    %c0_242 = arith.constant 0 : index
    %c0_243 = arith.constant 0 : index
    %442 = vector.load %arg23[%c0_242, %c0_243] : memref<32x128xf32, #tpu.memory_space<vmem>>, vector<32x128xf32>
    %cst_244 = arith.constant dense<0.000000e+00> : vector<16x128xf32>
    %443 = tpu.matmul %441, %442, %cst_244 {dimension_numbers = #tpu.dot_dimension_numbers<[1], [0], [0], [1], [0, 0, 1, 1], [], []>} : vector<16x32xf32>, vector<32x128xf32>, vector<16x128xf32> -> vector<16x128xf32>
    %c0_245 = arith.constant 0 : index
    %c0_246 = arith.constant 0 : index
    %444 = vector.load %arg24[%c0_245, %c0_246] : memref<1x128xf32, #tpu.memory_space<vmem>>, vector<1x128xf32>
    %445 = vector.broadcast %444 : vector<1x128xf32> to vector<16x128xf32>
    %446 = arith.addf %443, %445 : vector<16x128xf32>
    %cst_247 = arith.constant 0.000000e+00 : f32
    %447 = vector.broadcast %cst_247 : f32 to vector<16x128xf32>
    %448 = arith.maximumf %446, %447 : vector<16x128xf32>
    %c0_248 = arith.constant 0 : index
    %c0_249 = arith.constant 0 : index
    %449 = vector.load %arg25[%c0_248, %c0_249] : memref<128x128xf32, #tpu.memory_space<vmem>>, vector<128x128xf32>
    %cst_250 = arith.constant dense<0.000000e+00> : vector<16x128xf32>
    %450 = tpu.matmul %448, %449, %cst_250 {dimension_numbers = #tpu.dot_dimension_numbers<[1], [0], [0], [1], [0, 0, 1, 1], [], []>} : vector<16x128xf32>, vector<128x128xf32>, vector<16x128xf32> -> vector<16x128xf32>
    %c0_251 = arith.constant 0 : index
    %c0_252 = arith.constant 0 : index
    %451 = vector.load %arg26[%c0_251, %c0_252] : memref<1x128xf32, #tpu.memory_space<vmem>>, vector<1x128xf32>
    %452 = vector.broadcast %451 : vector<1x128xf32> to vector<16x128xf32>
    %453 = arith.addf %450, %452 : vector<16x128xf32>
    %c0_253 = arith.constant 0 : index
    %c0_254 = arith.constant 0 : index
    %454 = vector.load %arg27[%c0_253, %c0_254] : memref<16x128xf32, #tpu.memory_space<vmem>>, vector<16x128xf32>
    tpu.vector_store %arg27[%c0_253, %c0_254], %453 {strides = array<i32>} : memref<16x128xf32, #tpu.memory_space<vmem>>, vector<16x128xf32>,
    return
  }
}

</mosaic_0001>

<llo_original>
// kernel: rubert_mlp_text_forward.1
$region0: #{rubert_mlp_text_forward.1}
  #allocation0 [shape = 'u32[]', space=smem, size = 0x4, offset = 0x4, fixed_abs, tag = 'smem constant byte address 0x4 - core index']
  #allocation1 [shape = 'u32[72,128]{1,0:T(1,128)}', space=vmem, size = 0x9000, scoped, tag = 'internal scratch']
  #allocation2 [shape = 'f32[16,32]{1,0:T(8,128)}', space=vmem, size = 0x2000, scoped, tag = 'scratch operand']
  %s0 = inlined_call_operand.vmem [shape: s32[2,8], index: 0, kind: input, shape index: {}]
  %s1 = inlined_call_operand.vmem [shape: s32[2,8], index: 1, kind: input, shape index: {}]
  %s2 = inlined_call_operand.vmem [shape: f32[100,32], index: 2, kind: input, shape index: {}]
  %s3 = inlined_call_operand.hbm [shape: f32[32,32], index: 3, kind: input, shape index: {}]
  %s4 = inlined_call_operand.vmem [shape: f32[2,32], index: 4, kind: input, shape index: {}]
  %s5 = inlined_call_operand.vmem [shape: f32[1,32], index: 5, kind: input, shape index: {}]
  %s6 = inlined_call_operand.hbm [shape: f32[1,32], index: 6, kind: input, shape index: {}]
  %s7 = inlined_call_operand.vmem [shape: f32[2,32,32], index: 7, kind: input, shape index: {}]
  %s8 = inlined_call_operand.vmem [shape: f32[2,1,32], index: 8, kind: input, shape index: {}]
  %s9 = inlined_call_operand.vmem [shape: f32[2,32,32], index: 9, kind: input, shape index: {}]
  %s10 = inlined_call_operand.hbm [shape: f32[2,1,32], index: 10, kind: input, shape index: {}]
  %s11 = inlined_call_operand.vmem [shape: f32[2,32,32], index: 11, kind: input, shape index: {}]
  %s12 = inlined_call_operand.vmem [shape: f32[2,1,32], index: 12, kind: input, shape index: {}]
  %s13 = inlined_call_operand.hbm [shape: f32[2,32,32], index: 13, kind: input, shape index: {}]
  %s14 = inlined_call_operand.hbm [shape: f32[2,1,32], index: 14, kind: input, shape index: {}]
  %s15 = inlined_call_operand.vmem [shape: f32[2,1,32], index: 15, kind: input, shape index: {}]
  %s16 = inlined_call_operand.vmem [shape: f32[2,1,32], index: 16, kind: input, shape index: {}]
  %s17 = inlined_call_operand.hbm [shape: f32[2,32,64], index: 17, kind: input, shape index: {}]
  %s18 = inlined_call_operand.hbm [shape: f32[2,1,64], index: 18, kind: input, shape index: {}]
  %s19 = inlined_call_operand.vmem [shape: f32[2,64,32], index: 19, kind: input, shape index: {}]
  %s20 = inlined_call_operand.hbm [shape: f32[2,1,32], index: 20, kind: input, shape index: {}]
  %s21 = inlined_call_operand.hbm [shape: f32[2,1,32], index: 21, kind: input, shape index: {}]
  %s22 = inlined_call_operand.hbm [shape: f32[2,1,32], index: 22, kind: input, shape index: {}]
  %s23 = inlined_call_operand.hbm [shape: f32[32,128], index: 23, kind: input, shape index: {}]
  %s24 = inlined_call_operand.vmem [shape: f32[1,128], index: 24, kind: input, shape index: {}]
  %s25 = inlined_call_operand.vmem [shape: f32[128,128], index: 25, kind: input, shape index: {}]
  %s26 = inlined_call_operand.vmem [shape: f32[1,128], index: 26, kind: input, shape index: {}]
  %s27 = inlined_call_operand.vmem [shape: f32[16,128], index: 27, kind: output, shape index: {}]
  %s28 = sld [smem:[#allocation0]]
  $region166: #{rubert_mlp_text_forward.1} parent=0
    _
  %s30 = ssub.s32 1, %s28
  %s31 = scalar_select 0, %s30, %s28
  $region1: #{rubert_mlp_text_forward.1} parent=0
    #allocation3 [shape = 'u8[1024]{0}', space=smem, size = 0x400, scoped, tag = 'input window, operand 0, single buffered']
    #allocation4 [shape = 's32[1]{0}', space=sflag, size = 0x4, scoped, tag = 'scoped memory for rubert_mlp_text_forward.1']
    #allocation5 [shape = 's32[1]{0}', space=sflag, size = 0x4, scoped, tag = 'scoped memory for rubert_mlp_text_forward.1']
    #allocation6 [shape = 'u8[16384]{0}', space=vmem, size = 0x4000, scoped, tag = 'input window, operand 3, single buffered']
    #allocation7 [shape = 'u8[512]{0}', space=vmem, size = 0x400, scoped, tag = 'input window, operand 6, single buffered']
    #allocation8 [shape = 's32[1]{0}', space=sflag, size = 0x4, scoped, tag = 'scoped memory for rubert_mlp_text_forward.1']
    #allocation9 [shape = 'u8[1024]{0}', space=vmem, size = 0x400, scoped, tag = 'input window, operand 10, single buffered']
    #allocation10 [shape = 'u8[32768]{0}', space=vmem, size = 0x8000, scoped, tag = 'input window, operand 13, single buffered']
    #allocation11 [shape = 's32[1]{0}', space=sflag, size = 0x4, scoped, tag = 'scoped memory for rubert_mlp_text_forward.1']
    #allocation12 [shape = 'u8[1024]{0}', space=vmem, size = 0x400, scoped, tag = 'input window, operand 14, single buffered']
    #allocation13 [shape = 'u8[32768]{0}', space=vmem, size = 0x8000, scoped, tag = 'input window, operand 17, single buffered']
    #allocation14 [shape = 's32[1]{0}', space=sflag, size = 0x4, scoped, tag = 'scoped memory for rubert_mlp_text_forward.1']
    #allocation15 [shape = 'u8[1024]{0}', space=vmem, size = 0x400, scoped, tag = 'input window, operand 18, single buffered']
    #allocation16 [shape = 'u8[1024]{0}', space=vmem, size = 0x400, scoped, tag = 'input window, operand 20, single buffered']
    #allocation17 [shape = 's32[1]{0}', space=sflag, size = 0x4, scoped, tag = 'scoped memory for rubert_mlp_text_forward.1']
    #allocation18 [shape = 'u8[1024]{0}', space=vmem, size = 0x400, scoped, tag = 'input window, operand 21, single buffered']
    #allocation19 [shape = 'u8[1024]{0}', space=vmem, size = 0x400, scoped, tag = 'input window, operand 22, single buffered']
    #allocation20 [shape = 's32[1]{0}', space=sflag, size = 0x4, scoped, tag = 'scoped memory for rubert_mlp_text_forward.1']
    #allocation21 [shape = 'u8[16384]{0}', space=vmem, size = 0x4000, scoped, tag = 'input window, operand 23, single buffered']
    %32 = vsyncpa [#allocation5], 0
    %33 = vsyncpa [#allocation4], 0
    %34 = vsyncpa [#allocation8], 0
    %35 = vsyncpa [#allocation11], 0
    %36 = vsyncpa [#allocation14], 0
    %37 = vsyncpa [#allocation17], 0
    %38 = vsyncpa [#allocation20], 0
    // Predicated region
    $region2: #{rubert_mlp_text_forward.1} parent=1 // pred_check
      _
    $region3: #{rubert_mlp_text_forward.1} parent=1 // pred_check_branch
      %40 = sbr.rel (0) target = $region5
    $region4: #{rubert_mlp_text_forward.1} parent=1 // pred_region
      %42 = vsyncadd [#allocation5], 0
      %s44 = sshll.u32 %s0, 4
      %s45 = int_to_ptr.vmem [resolvable:$true] %s44
      %47 = dma.vmem_to_smem %s45, 32, [#allocation3], [#allocation5]
    $region5: #{rubert_mlp_text_forward.1} parent=1 // pred_fallthru
      _
    // Predicated region
    $region6: #{rubert_mlp_text_forward.1} parent=1 // pred_check
      _
    $region7: #{rubert_mlp_text_forward.1} parent=1 // pred_check_branch
      %49 = sbr.rel (0) target = $region9
    $region8: #{rubert_mlp_text_forward.1} parent=1 // pred_region
      _
    $region9: #{rubert_mlp_text_forward.1} parent=1 // pred_fallthru
      _
    // Predicated region
    $region10: #{rubert_mlp_text_forward.1} parent=1 // pred_check
      _
    $region11: #{rubert_mlp_text_forward.1} parent=1 // pred_check_branch
      %51 = sbr.rel (0) target = $region13
    $region12: #{rubert_mlp_text_forward.1} parent=1 // pred_region
      _
    $region13: #{rubert_mlp_text_forward.1} parent=1 // pred_fallthru
      _
    // Predicated region
    $region14: #{rubert_mlp_text_forward.1} parent=1 // pred_check
      _
    $region15: #{rubert_mlp_text_forward.1} parent=1 // pred_check_branch
      %53 = sbr.rel (0) target = $region17
    $region16: #{rubert_mlp_text_forward.1} parent=1 // pred_region
      %55 = vsyncadd [#allocation4], 0
      %s56 = sshll.u32 %s3, 4
      %s57 = int_to_ptr.hbm [resolvable:$true] %s56
      %s58 = sshll.u32 [#allocation6], 4
      %s59 = int_to_ptr.vmem [resolvable:$true] %s58
      %64 = dma.hbm_to_vmem [thread:$0]  %s57, 512, %s59, [#allocation4], 128, 128, 8
    $region17: #{rubert_mlp_text_forward.1} parent=1 // pred_fallthru
      _
    // Predicated region
    $region18: #{rubert_mlp_text_forward.1} parent=1 // pred_check
      _
    $region19: #{rubert_mlp_text_forward.1} parent=1 // pred_check_branch
      %66 = sbr.rel (0) target = $region21
    $region20: #{rubert_mlp_text_forward.1} parent=1 // pred_region
      _
    $region21: #{rubert_mlp_text_forward.1} parent=1 // pred_fallthru
      _
    // Predicated region
    $region22: #{rubert_mlp_text_forward.1} parent=1 // pred_check
      _
    $region23: #{rubert_mlp_text_forward.1} parent=1 // pred_check_branch
      %68 = sbr.rel (0) target = $region25
    $region24: #{rubert_mlp_text_forward.1} parent=1 // pred_region
      _
    $region25: #{rubert_mlp_text_forward.1} parent=1 // pred_fallthru
      _
    // Predicated region
    $region26: #{rubert_mlp_text_forward.1} parent=1 // pred_check
      _
    $region27: #{rubert_mlp_text_forward.1} parent=1 // pred_check_branch
      %70 = sbr.rel (0) target = $region29
    $region28: #{rubert_mlp_text_forward.1} parent=1 // pred_region
      %72 = vsyncadd [#allocation8], 0
      %s74 = sshll.u32 %s6, 4
      %s75 = int_to_ptr.hbm [resolvable:$true] %s74
      %s76 = sshll.u32 [#allocation7], 4
      %s77 = int_to_ptr.vmem [resolvable:$true] %s76
      %79 = dma.hbm_to_vmem [thread:$0]  %s75, 16, %s77, [#allocation8]
    $region29: #{rubert_mlp_text_forward.1} parent=1 // pred_fallthru
      _
    // Predicated region
    $region30: #{rubert_mlp_text_forward.1} parent=1 // pred_check
      _
    $region31: #{rubert_mlp_text_forward.1} parent=1 // pred_check_branch
      %81 = sbr.rel (0) target = $region33
    $region32: #{rubert_mlp_text_forward.1} parent=1 // pred_region
      _
    $region33: #{rubert_mlp_text_forward.1} parent=1 // pred_fallthru
      _
    // Predicated region
    $region34: #{rubert_mlp_text_forward.1} parent=1 // pred_check
      _
    $region35: #{rubert_mlp_text_forward.1} parent=1 // pred_check_branch
      %83 = sbr.rel (0) target = $region37
    $region36: #{rubert_mlp_text_forward.1} parent=1 // pred_region
      _
    $region37: #{rubert_mlp_text_forward.1} parent=1 // pred_fallthru
      _
    // Predicated region
    $region38: #{rubert_mlp_text_forward.1} parent=1 // pred_check
      _
    $region39: #{rubert_mlp_text_forward.1} parent=1 // pred_check_branch
      %85 = sbr.rel (0) target = $region41
    $region40: #{rubert_mlp_text_forward.1} parent=1 // pred_region
      _
    $region41: #{rubert_mlp_text_forward.1} parent=1 // pred_fallthru
      _
    // Predicated region
    $region42: #{rubert_mlp_text_forward.1} parent=1 // pred_check
      _
    $region43: #{rubert_mlp_text_forward.1} parent=1 // pred_check_branch
      %87 = sbr.rel (0) target = $region45
    $region44: #{rubert_mlp_text_forward.1} parent=1 // pred_region
      %89 = vsyncadd [#allocation8], 0
      %s90 = sshll.u32 %s10, 4
      %s91 = int_to_ptr.hbm [resolvable:$true] %s90
      %s92 = sshll.u32 [#allocation9], 4
      %s93 = int_to_ptr.vmem [resolvable:$true] %s92
      %98 = dma.hbm_to_vmem [thread:$0]  %s91, 32, %s93, [#allocation8], 16, 16, 1
    $region45: #{rubert_mlp_text_forward.1} parent=1 // pred_fallthru
      _
    // Predicated region
    $region46: #{rubert_mlp_text_forward.1} parent=1 // pred_check
      _
    $region47: #{rubert_mlp_text_forward.1} parent=1 // pred_check_branch
      %100 = sbr.rel (0) target = $region49
    $region48: #{rubert_mlp_text_forward.1} parent=1 // pred_region
      _
    $region49: #{rubert_mlp_text_forward.1} parent=1 // pred_fallthru
      _
    // Predicated region
    $region50: #{rubert_mlp_text_forward.1} parent=1 // pred_check
      _
    $region51: #{rubert_mlp_text_forward.1} parent=1 // pred_check_branch
      %102 = sbr.rel (0) target = $region53
    $region52: #{rubert_mlp_text_forward.1} parent=1 // pred_region
      _
    $region53: #{rubert_mlp_text_forward.1} parent=1 // pred_fallthru
      _
    // Predicated region
    $region54: #{rubert_mlp_text_forward.1} parent=1 // pred_check
      _
    $region55: #{rubert_mlp_text_forward.1} parent=1 // pred_check_branch
      %104 = sbr.rel (0) target = $region57
    $region56: #{rubert_mlp_text_forward.1} parent=1 // pred_region
      %106 = vsyncadd [#allocation11], 0
      %s107 = sshll.u32 %s13, 4
      %s108 = int_to_ptr.hbm [resolvable:$true] %s107
      %s109 = sshll.u32 [#allocation10], 4
      %s110 = int_to_ptr.vmem [resolvable:$true] %s109
      %115 = dma.hbm_to_vmem [thread:$0]  %s108, 1024, %s110, [#allocation11], 128, 128, 8
    $region57: #{rubert_mlp_text_forward.1} parent=1 // pred_fallthru
      _
    // Predicated region
    $region58: #{rubert_mlp_text_forward.1} parent=1 // pred_check
      _
    $region59: #{rubert_mlp_text_forward.1} parent=1 // pred_check_branch
      %117 = sbr.rel (0) target = $region61
    $region60: #{rubert_mlp_text_forward.1} parent=1 // pred_region
      %119 = vsyncadd [#allocation11], 0
      %s120 = sshll.u32 %s14, 4
      %s121 = int_to_ptr.hbm [resolvable:$true] %s120
      %s122 = sshll.u32 [#allocation12], 4
      %s123 = int_to_ptr.vmem [resolvable:$true] %s122
      %128 = dma.hbm_to_vmem [thread:$0]  %s121, 32, %s123, [#allocation11], 16, 16, 1
    $region61: #{rubert_mlp_text_forward.1} parent=1 // pred_fallthru
      _
    // Predicated region
    $region62: #{rubert_mlp_text_forward.1} parent=1 // pred_check
      _
    $region63: #{rubert_mlp_text_forward.1} parent=1 // pred_check_branch
      %130 = sbr.rel (0) target = $region65
    $region64: #{rubert_mlp_text_forward.1} parent=1 // pred_region
      _
    $region65: #{rubert_mlp_text_forward.1} parent=1 // pred_fallthru
      _
    // Predicated region
    $region66: #{rubert_mlp_text_forward.1} parent=1 // pred_check
      _
    $region67: #{rubert_mlp_text_forward.1} parent=1 // pred_check_branch
      %132 = sbr.rel (0) target = $region69
    $region68: #{rubert_mlp_text_forward.1} parent=1 // pred_region
      _
    $region69: #{rubert_mlp_text_forward.1} parent=1 // pred_fallthru
      _
    // Predicated region
    $region70: #{rubert_mlp_text_forward.1} parent=1 // pred_check
      _
    $region71: #{rubert_mlp_text_forward.1} parent=1 // pred_check_branch
      %134 = sbr.rel (0) target = $region73
    $region72: #{rubert_mlp_text_forward.1} parent=1 // pred_region
      %136 = vsyncadd [#allocation14], 0
      %s137 = sshll.u32 %s17, 4
      %s138 = int_to_ptr.hbm [resolvable:$true] %s137
      %s139 = sshll.u32 [#allocation13], 4
      %s140 = int_to_ptr.vmem [resolvable:$true] %s139
      %145 = dma.hbm_to_vmem [thread:$0]  %s138, 1024, %s140, [#allocation14], 128, 128, 8
    $region73: #{rubert_mlp_text_forward.1} parent=1 // pred_fallthru
      _
    // Predicated region
    $region74: #{rubert_mlp_text_forward.1} parent=1 // pred_check
      _
    $region75: #{rubert_mlp_text_forward.1} parent=1 // pred_check_branch
      %147 = sbr.rel (0) target = $region77
    $region76: #{rubert_mlp_text_forward.1} parent=1 // pred_region
      %149 = vsyncadd [#allocation14], 0
      %s150 = sshll.u32 %s18, 4
      %s151 = int_to_ptr.hbm [resolvable:$true] %s150
      %s152 = sshll.u32 [#allocation15], 4
      %s153 = int_to_ptr.vmem [resolvable:$true] %s152
      %158 = dma.hbm_to_vmem [thread:$0]  %s151, 32, %s153, [#allocation14], 16, 16, 1
    $region77: #{rubert_mlp_text_forward.1} parent=1 // pred_fallthru
      _
    // Predicated region
    $region78: #{rubert_mlp_text_forward.1} parent=1 // pred_check
      _
    $region79: #{rubert_mlp_text_forward.1} parent=1 // pred_check_branch
      %160 = sbr.rel (0) target = $region81
    $region80: #{rubert_mlp_text_forward.1} parent=1 // pred_region
      _
    $region81: #{rubert_mlp_text_forward.1} parent=1 // pred_fallthru
      _
    // Predicated region
    $region82: #{rubert_mlp_text_forward.1} parent=1 // pred_check
      _
    $region83: #{rubert_mlp_text_forward.1} parent=1 // pred_check_branch
      %162 = sbr.rel (0) target = $region85
    $region84: #{rubert_mlp_text_forward.1} parent=1 // pred_region
      %164 = vsyncadd [#allocation17], 0
      %s165 = sshll.u32 %s20, 4
      %s166 = int_to_ptr.hbm [resolvable:$true] %s165
      %s167 = sshll.u32 [#allocation16], 4
      %s168 = int_to_ptr.vmem [resolvable:$true] %s167
      %173 = dma.hbm_to_vmem [thread:$0]  %s166, 32, %s168, [#allocation17], 16, 16, 1
    $region85: #{rubert_mlp_text_forward.1} parent=1 // pred_fallthru
      _
    // Predicated region
    $region86: #{rubert_mlp_text_forward.1} parent=1 // pred_check
      _
    $region87: #{rubert_mlp_text_forward.1} parent=1 // pred_check_branch
      %175 = sbr.rel (0) target = $region89
    $region88: #{rubert_mlp_text_forward.1} parent=1 // pred_region
      %177 = vsyncadd [#allocation17], 0
      %s178 = sshll.u32 %s21, 4
      %s179 = int_to_ptr.hbm [resolvable:$true] %s178
      %s180 = sshll.u32 [#allocation18], 4
      %s181 = int_to_ptr.vmem [resolvable:$true] %s180
      %186 = dma.hbm_to_vmem [thread:$0]  %s179, 32, %s181, [#allocation17], 16, 16, 1
    $region89: #{rubert_mlp_text_forward.1} parent=1 // pred_fallthru
      _
    // Predicated region
    $region90: #{rubert_mlp_text_forward.1} parent=1 // pred_check
      _
    $region91: #{rubert_mlp_text_forward.1} parent=1 // pred_check_branch
      %188 = sbr.rel (0) target = $region93
    $region92: #{rubert_mlp_text_forward.1} parent=1 // pred_region
      %190 = vsyncadd [#allocation20], 0
      %s191 = sshll.u32 %s22, 4
      %s192 = int_to_ptr.hbm [resolvable:$true] %s191
      %s193 = sshll.u32 [#allocation19], 4
      %s194 = int_to_ptr.vmem [resolvable:$true] %s193
      %199 = dma.hbm_to_vmem [thread:$0]  %s192, 32, %s194, [#allocation20], 16, 16, 1
    $region93: #{rubert_mlp_text_forward.1} parent=1 // pred_fallthru
      _
    // Predicated region
    $region94: #{rubert_mlp_text_forward.1} parent=1 // pred_check
      _
    $region95: #{rubert_mlp_text_forward.1} parent=1 // pred_check_branch
      %201 = sbr.rel (0) target = $region97
    $region96: #{rubert_mlp_text_forward.1} parent=1 // pred_region
      %203 = vsyncadd [#allocation20], 0
      %s204 = sshll.u32 %s23, 4
      %s205 = int_to_ptr.hbm [resolvable:$true] %s204
      %s206 = sshll.u32 [#allocation21], 4
      %s207 = int_to_ptr.vmem [resolvable:$true] %s206
      %212 = dma.hbm_to_vmem [thread:$0]  %s205, 512, %s207, [#allocation20], 128, 128, 8
    $region97: #{rubert_mlp_text_forward.1} parent=1 // pred_fallthru
      _
    // Predicated region
    $region98: #{rubert_mlp_text_forward.1} parent=1 // pred_check
      _
    $region99: #{rubert_mlp_text_forward.1} parent=1 // pred_check_branch
      %214 = sbr.rel (0) target = $region101
    $region100: #{rubert_mlp_text_forward.1} parent=1 // pred_region
      _
    $region101: #{rubert_mlp_text_forward.1} parent=1 // pred_fallthru
      _
    // Predicated region
    $region102: #{rubert_mlp_text_forward.1} parent=1 // pred_check
      _
    $region103: #{rubert_mlp_text_forward.1} parent=1 // pred_check_branch
      %216 = sbr.rel (0) target = $region105
    $region104: #{rubert_mlp_text_forward.1} parent=1 // pred_region
      _
    $region105: #{rubert_mlp_text_forward.1} parent=1 // pred_fallthru
      _
    // Predicated region
    $region106: #{rubert_mlp_text_forward.1} parent=1 // pred_check
      _
    $region107: #{rubert_mlp_text_forward.1} parent=1 // pred_check_branch
      %218 = sbr.rel (0) target = $region109
    $region108: #{rubert_mlp_text_forward.1} parent=1 // pred_region
      _
    $region109: #{rubert_mlp_text_forward.1} parent=1 // pred_fallthru
      _
    // Predicated region
    $region110: #{rubert_mlp_text_forward.1} parent=1 // pred_check
      _
    $region111: #{rubert_mlp_text_forward.1} parent=1 // pred_check_branch
      %220 = sbr.rel (0) target = $region113
    $region112: #{rubert_mlp_text_forward.1} parent=1 // pred_region
      %222 = dma.done [#allocation5], 32
    $region113: #{rubert_mlp_text_forward.1} parent=1 // pred_fallthru
      _
    // Predicated region
    $region114: #{rubert_mlp_text_forward.1} parent=1 // pred_check
      _
    $region115: #{rubert_mlp_text_forward.1} parent=1 // pred_check_branch
      %224 = sbr.rel (0) target = $region117
    $region116: #{rubert_mlp_text_forward.1} parent=1 // pred_region
      %226 = dma.done [#allocation4], 512
    $region117: #{rubert_mlp_text_forward.1} parent=1 // pred_fallthru
      _
    // Predicated region
    $region118: #{rubert_mlp_text_forward.1} parent=1 // pred_check
      _
    $region119: #{rubert_mlp_text_forward.1} parent=1 // pred_check_branch
      %228 = sbr.rel (0) target = $region121
    $region120: #{rubert_mlp_text_forward.1} parent=1 // pred_region
      %230 = dma.done [#allocation8], 16
    $region121: #{rubert_mlp_text_forward.1} parent=1 // pred_fallthru
      _
    // Predicated region
    $region122: #{rubert_mlp_text_forward.1} parent=1 // pred_check
      _
    $region123: #{rubert_mlp_text_forward.1} parent=1 // pred_check_branch
      %232 = sbr.rel (0) target = $region125
    $region124: #{rubert_mlp_text_forward.1} parent=1 // pred_region
      %234 = dma.done [#allocation8], 32
    $region125: #{rubert_mlp_text_forward.1} parent=1 // pred_fallthru
      _
    // Predicated region
    $region126: #{rubert_mlp_text_forward.1} parent=1 // pred_check
      _
    $region127: #{rubert_mlp_text_forward.1} parent=1 // pred_check_branch
      %236 = sbr.rel (0) target = $region129
    $region128: #{rubert_mlp_text_forward.1} parent=1 // pred_region
      %238 = dma.done [#allocation11], 1024
    $region129: #{rubert_mlp_text_forward.1} parent=1 // pred_fallthru
      _
    // Predicated region
    $region130: #{rubert_mlp_text_forward.1} parent=1 // pred_check
      _
    $region131: #{rubert_mlp_text_forward.1} parent=1 // pred_check_branch
      %240 = sbr.rel (0) target = $region133
    $region132: #{rubert_mlp_text_forward.1} parent=1 // pred_region
      %242 = dma.done [#allocation11], 32
    $region133: #{rubert_mlp_text_forward.1} parent=1 // pred_fallthru
      _
    // Predicated region
    $region134: #{rubert_mlp_text_forward.1} parent=1 // pred_check
      _
    $region135: #{rubert_mlp_text_forward.1} parent=1 // pred_check_branch
      %244 = sbr.rel (0) target = $region137
    $region136: #{rubert_mlp_text_forward.1} parent=1 // pred_region
      %246 = dma.done [#allocation14], 1024
    $region137: #{rubert_mlp_text_forward.1} parent=1 // pred_fallthru
      _
    // Predicated region
    $region138: #{rubert_mlp_text_forward.1} parent=1 // pred_check
      _
    $region139: #{rubert_mlp_text_forward.1} parent=1 // pred_check_branch
      %248 = sbr.rel (0) target = $region141
    $region140: #{rubert_mlp_text_forward.1} parent=1 // pred_region
      %250 = dma.done [#allocation14], 32
    $region141: #{rubert_mlp_text_forward.1} parent=1 // pred_fallthru
      _
    // Predicated region
    $region142: #{rubert_mlp_text_forward.1} parent=1 // pred_check
      _
    $region143: #{rubert_mlp_text_forward.1} parent=1 // pred_check_branch
      %252 = sbr.rel (0) target = $region145
    $region144: #{rubert_mlp_text_forward.1} parent=1 // pred_region
      %254 = dma.done [#allocation17], 32
    $region145: #{rubert_mlp_text_forward.1} parent=1 // pred_fallthru
      _
    // Predicated region
    $region146: #{rubert_mlp_text_forward.1} parent=1 // pred_check
      _
    $region147: #{rubert_mlp_text_forward.1} parent=1 // pred_check_branch
      %256 = sbr.rel (0) target = $region149
    $region148: #{rubert_mlp_text_forward.1} parent=1 // pred_region
      %258 = dma.done [#allocation17], 32
    $region149: #{rubert_mlp_text_forward.1} parent=1 // pred_fallthru
      _
    // Predicated region
    $region150: #{rubert_mlp_text_forward.1} parent=1 // pred_check
      _
    $region151: #{rubert_mlp_text_forward.1} parent=1 // pred_check_branch
      %260 = sbr.rel (0) target = $region153
    $region152: #{rubert_mlp_text_forward.1} parent=1 // pred_region
      %262 = dma.done [#allocation20], 32
    $region153: #{rubert_mlp_text_forward.1} parent=1 // pred_fallthru
      _
    // Predicated region
    $region154: #{rubert_mlp_text_forward.1} parent=1 // pred_check
      _
    $region155: #{rubert_mlp_text_forward.1} parent=1 // pred_check_branch
      %264 = sbr.rel (0) target = $region157
    $region156: #{rubert_mlp_text_forward.1} parent=1 // pred_region
      %266 = dma.done [#allocation20], 512
    $region157: #{rubert_mlp_text_forward.1} parent=1 // pred_fallthru
      _
    %267 = sfence
    %s268 = sld [smem:[#allocation3]]
    %s269 = scalar_lea.vmem %s2, %s268
    %v270 = vld [vmem:[%s269] sm:$0x1]
    %vm271 = vcmask 253952
    %272 = vst.msk [vmem:[#allocation2] sm:$0x1] %vm271, %v270
    %s273 = sld [smem:[#allocation3 + $0x1]]
    %s274 = scalar_lea.vmem %s2, %s273
    %v275 = vld [vmem:[%s274] sm:$0x1]
    %276 = vst.msk [vmem:[#allocation2 + $0x1] sm:$0x1] %vm271, %v275
    %s277 = sld [smem:[#allocation3 + $0x2]]
    %s278 = scalar_lea.vmem %s2, %s277
    %v279 = vld [vmem:[%s278] sm:$0x1]
    %280 = vst.msk [vmem:[#allocation2 + $0x2] sm:$0x1] %vm271, %v279
    %s281 = sld [smem:[#allocation3 + $0x3]]
    %s282 = scalar_lea.vmem %s2, %s281
    %v283 = vld [vmem:[%s282] sm:$0x1]
    %284 = vst.msk [vmem:[#allocation2 + $0x3] sm:$0x1] %vm271, %v283
    %s285 = sld [smem:[#allocation3 + $0x4]]
    %s286 = scalar_lea.vmem %s2, %s285
    %v287 = vld [vmem:[%s286] sm:$0x1]
    %288 = vst.msk [vmem:[#allocation2 + $0x4] sm:$0x1] %vm271, %v287
    %s289 = sld [smem:[#allocation3 + $0x5]]
    %s290 = scalar_lea.vmem %s2, %s289
    %v291 = vld [vmem:[%s290] sm:$0x1]
    %292 = vst.msk [vmem:[#allocation2 + $0x5] sm:$0x1] %vm271, %v291
    %s293 = sld [smem:[#allocation3 + $0x6]]
    %s294 = scalar_lea.vmem %s2, %s293
    %v295 = vld [vmem:[%s294] sm:$0x1]
    %296 = vst.msk [vmem:[#allocation2 + $0x6] sm:$0x1] %vm271, %v295
    %s297 = sld [smem:[#allocation3 + $0x7]]
    %s298 = scalar_lea.vmem %s2, %s297
    %v299 = vld [vmem:[%s298] sm:$0x1]
    %300 = vst.msk [vmem:[#allocation2 + $0x7] sm:$0x1] %vm271, %v299
    %s301 = sld [smem:[#allocation3 + $0x80]]
    %s302 = scalar_lea.vmem %s2, %s301
    %v303 = vld [vmem:[%s302] sm:$0x1]
    %304 = vst.msk [vmem:[#allocation2 + $0x8] sm:$0x1] %vm271, %v303
    %s305 = sld [smem:[#allocation3 + $0x81]]
    %s306 = scalar_lea.vmem %s2, %s305
    %v307 = vld [vmem:[%s306] sm:$0x1]
    %308 = vst.msk [vmem:[#allocation2 + $0x9] sm:$0x1] %vm271, %v307
    %s309 = sld [smem:[#allocation3 + $0x82]]
    %s310 = scalar_lea.vmem %s2, %s309
    %v311 = vld [vmem:[%s310] sm:$0x1]
    %312 = vst.msk [vmem:[#allocation2 + $0xa] sm:$0x1] %vm271, %v311
    %s313 = sld [smem:[#allocation3 + $0x83]]
    %s314 = scalar_lea.vmem %s2, %s313
    %v315 = vld [vmem:[%s314] sm:$0x1]
    %316 = vst.msk [vmem:[#allocation2 + $0xb] sm:$0x1] %vm271, %v315
    %s317 = sld [smem:[#allocation3 + $0x84]]
    %s318 = scalar_lea.vmem %s2, %s317
    %v319 = vld [vmem:[%s318] sm:$0x1]
    %320 = vst.msk [vmem:[#allocation2 + $0xc] sm:$0x1] %vm271, %v319
    %s321 = sld [smem:[#allocation3 + $0x85]]
    %s322 = scalar_lea.vmem %s2, %s321
    %v323 = vld [vmem:[%s322] sm:$0x1]
    %324 = vst.msk [vmem:[#allocation2 + $0xd] sm:$0x1] %vm271, %v323
    %s325 = sld [smem:[#allocation3 + $0x86]]
    %s326 = scalar_lea.vmem %s2, %s325
    %v327 = vld [vmem:[%s326] sm:$0x1]
    %328 = vst.msk [vmem:[#allocation2 + $0xe] sm:$0x1] %vm271, %v327
    %s329 = sld [smem:[#allocation3 + $0x87]]
    %s330 = scalar_lea.vmem %s2, %s329
    %v331 = vld [vmem:[%s330] sm:$0x1]
    %332 = vst.msk [vmem:[#allocation2 + $0xf] sm:$0x1] %vm271, %v331
    %v333 = vld [vmem:[#allocation6] sm:$0xff]
    %v334 = vld [vmem:[%s4] sm:$0x1]
    %v335 = vperm.slane %v334, 0
    %v336 = vadd.f32 %v333, %v335
    %v337 = vld [vmem:[#allocation2] sm:$0xff]
    %v338 = vld [vmem:[#allocation2 + $0x8] sm:$0xff]
    %v339 = vadd.f32 %v337, %v336
    %v340 = vadd.f32 %v338, %v336
    %v341 = vld [vmem:[%s5] sm:$0x1]
    %v342 = vld [vmem:[#allocation7] sm:$0x1]
    %vm343 = vcmask 261120
    %v344 = vsel %vm343, %v339, 0.0
    %345 = vadd.xlane.f32.xlu0 %v344
    %v346 = vpop.xlane.xlu0 %345
    %v347 = vsel %vm343, %v340, 0.0
    %348 = vadd.xlane.f32.xlu0 %v347
    %v349 = vpop.xlane.xlu0 %348
    %v350 = vrcp.pop 32.0
    %v351 = vmul.f32 32.0, %v350
    %v352 = vsub.f32 1.0, %v351
    %v353 = vmul.f32 %v350, %v352
    %v354 = vadd.f32 %v350, %v353
    %vm355 = vweird.f32 %v350
    %v356 = vsel %vm355, %v350, %v354
    %v357 = vmul.f32 %v346, %v356
    %v358 = vmul.f32 %v349, %v356
    %v359 = vmul.f32 %v339, %v339
    %v360 = vmul.f32 %v340, %v340
    %v361 = vsel %vm343, %v359, 0.0
    %362 = vadd.xlane.f32.xlu0 %v361
    %v363 = vpop.xlane.xlu0 %362
    %v364 = vsel %vm343, %v360, 0.0
    %365 = vadd.xlane.f32.xlu0 %v364
    %v366 = vpop.xlane.xlu0 %365
    %v367 = vmul.f32 %v363, %v356
    %v368 = vmul.f32 %v366, %v356
    %v369 = vmul.f32 %v357, %v357
    %v370 = vmul.f32 %v358, %v358
    %v371 = vsub.f32 %v367, %v369
    %v372 = vsub.f32 %v368, %v370
    %v373 = vadd.f32 %v371, 1e-12
    %v374 = vadd.f32 %v372, 1e-12
    %v375 = vrsqrt.pop %v373
    %v376 = vmul.f32 %v375, %v373
    %v377 = vmul.f32 %v376, %v375
    %v378 = vmul.f32 0.5, %v377
    %v379 = vsub.f32 1.5, %v378
    %v380 = vmul.f32 %v375, %v379
    %vm381 = vweird.f32 %v373
    %vm382 = vweird.f32 %v375
    %vm383 = vmor %vm381, %vm382
    %v384 = vsel %vm383, %v375, %v380
    %v385 = vrsqrt.pop %v374
    %v386 = vmul.f32 %v385, %v374
    %v387 = vmul.f32 %v386, %v385
    %v388 = vmul.f32 0.5, %v387
    %v389 = vsub.f32 1.5, %v388
    %v390 = vmul.f32 %v385, %v389
    %vm391 = vweird.f32 %v374
    %vm392 = vweird.f32 %v385
    %vm393 = vmor %vm391, %vm392
    %v394 = vsel %vm393, %v385, %v390
    %v396 = vperm.slane %v341, 0
    %v398 = vmul.f32 %v396, %v384
    %v399 = vmul.f32 %v396, %v394
    %v400 = vmul.f32 %v339, %v398
    %v401 = vmul.f32 %v340, %v399
    %v402 = vmul.f32 %v357, %v398
    %v403 = vmul.f32 %v358, %v399
    %v405 = vperm.slane %v342, 0
    %v407 = vsub.f32 %v405, %v402
    %v408 = vsub.f32 %v405, %v403
    %v409 = vadd.f32 %v400, %v407
    %v410 = vadd.f32 %v401, %v408
    %v411 = vld [vmem:[%s1] sm:$0x3]
    %v412 = vcvt.s32.f32 %v411
    %v413 = vsub.f32 1.0, %v412
    %v414 = vmul.f32 %v413, -10000.0
    %v416 = vrot.slane %v414, 1
    %v417 = vld [vmem:[%s7] sm:$0xff]
    %v418 = vld [vmem:[%s7 + $0x8] sm:$0xff]
    %v419 = vld [vmem:[%s7 + $0x10] sm:$0xff]
    %v420 = vld [vmem:[%s7 + $0x18] sm:$0xff]
    %v421 = vld [vmem:[%s8] sm:$0x1]
    %v423 = vperm.slane %v421, 0
    %v426 = vsel %vm343, %v409, 0
    %v429 = vsel %vm343, %v410, 0
    %431 = vmatpush.msra.mxu0 0.0
    %432 = vmatpush.msra.mxu0 0.0
    %433 = vmatpush.msra.mxu0 0.0
    %434 = vmatpush.msra.mxu0 0.0
    %435 = vmatpush.msra.mxu0 0.0
    %436 = vmatpush.msra.mxu0 0.0
    %437 = vmatpush.msra.mxu0 0.0
    %438 = vmatpush.msra.mxu0 0.0
    %439 = vmatpush.msra.mxu0 0.0
    %440 = vmatpush.msra.mxu0 0.0
    %441 = vmatpush.msra.mxu0 0.0
    %442 = vmatpush.msra.mxu0 0.0
    %443 = vmatpush.msra.mxu0 %v420
    %444 = vmatpush.msra.mxu0 %v419
    %445 = vmatpush.msra.mxu0 %v418
    %446 = vmatpush.msra.mxu0 %v417
    %447 = vmatmul.f32.gmra.mxu0 %v426
    %v448 = vpop.f32.mrf.mxu0
    %v449 = vadd.f32 %v423, %v448
    %450 = vmatmul.f32.gmra.mxu0 %v429
    %v451 = vpop.f32.mrf.mxu0
    %v452 = vadd.f32 %v423, %v451
    %453 = vdwg.mxu0
    %v454 = vld [vmem:[%s9] sm:$0xff]
    %v455 = vld [vmem:[%s9 + $0x8] sm:$0xff]
    %v456 = vld [vmem:[%s9 + $0x10] sm:$0xff]
    %v457 = vld [vmem:[%s9 + $0x18] sm:$0xff]
    %v458 = vld [vmem:[#allocation9] sm:$0x1]
    %v460 = vperm.slane %v458, 0
    %462 = vmatpush.msra.mxu0 0.0
    %463 = vmatpush.msra.mxu0 0.0
    %464 = vmatpush.msra.mxu0 0.0
    %465 = vmatpush.msra.mxu0 0.0
    %466 = vmatpush.msra.mxu0 0.0
    %467 = vmatpush.msra.mxu0 0.0
    %468 = vmatpush.msra.mxu0 0.0
    %469 = vmatpush.msra.mxu0 0.0
    %470 = vmatpush.msra.mxu0 0.0
    %471 = vmatpush.msra.mxu0 0.0
    %472 = vmatpush.msra.mxu0 0.0
    %473 = vmatpush.msra.mxu0 0.0
    %474 = vmatpush.msra.mxu0 %v457
    %475 = vmatpush.msra.mxu0 %v456
    %476 = vmatpush.msra.mxu0 %v455
    %477 = vmatpush.msra.mxu0 %v454
    %478 = vmatmul.f32.gmra.mxu0 %v426
    %v479 = vpop.f32.mrf.mxu0
    %v480 = vadd.f32 %v460, %v479
    %481 = vmatmul.f32.gmra.mxu0 %v429
    %v482 = vpop.f32.mrf.mxu0
    %v483 = vadd.f32 %v460, %v482
    %484 = vdwg.mxu0
    %v485 = vld [vmem:[%s11] sm:$0xff]
    %v486 = vld [vmem:[%s11 + $0x8] sm:$0xff]
    %v487 = vld [vmem:[%s11 + $0x10] sm:$0xff]
    %v488 = vld [vmem:[%s11 + $0x18] sm:$0xff]
    %v489 = vld [vmem:[%s12] sm:$0x1]
    %v491 = vperm.slane %v489, 0
    %493 = vmatpush.msra.mxu0 0.0
    %494 = vmatpush.msra.mxu0 0.0
    %495 = vmatpush.msra.mxu0 0.0
    %496 = vmatpush.msra.mxu0 0.0
    %497 = vmatpush.msra.mxu0 0.0
    %498 = vmatpush.msra.mxu0 0.0
    %499 = vmatpush.msra.mxu0 0.0
    %500 = vmatpush.msra.mxu0 0.0
    %501 = vmatpush.msra.mxu0 0.0
    %502 = vmatpush.msra.mxu0 0.0
    %503 = vmatpush.msra.mxu0 0.0
    %504 = vmatpush.msra.mxu0 0.0
    %505 = vmatpush.msra.mxu0 %v488
    %506 = vmatpush.msra.mxu0 %v487
    %507 = vmatpush.msra.mxu0 %v486
    %508 = vmatpush.msra.mxu0 %v485
    %509 = vmatmul.f32.gmra.mxu0 %v426
    %v510 = vpop.f32.mrf.mxu0
    %v511 = vadd.f32 %v491, %v510
    %512 = vmatmul.f32.gmra.mxu0 %v429
    %v513 = vpop.f32.mrf.mxu0
    %v514 = vadd.f32 %v491, %v513
    %515 = vdwg.mxu0
    %v516 = vperm.slane %v414, 0
    %v517 = vperm.slane %v416, 0
    %vm520 = vcmask 64512
    %v522 = vsel %vm520, %v449, 0
    %v525 = vsel %vm520, %v480, 0
    %527 = vmatpush.xpose.msra.mxu0 0.0
    %528 = vmatpush.xpose.msra.mxu0 0.0
    %529 = vmatpush.xpose.msra.mxu0 0.0
    %530 = vmatpush.xpose.msra.mxu0 0.0
    %531 = vmatpush.xpose.msra.mxu0 0.0
    %532 = vmatpush.xpose.msra.mxu0 0.0
    %533 = vmatpush.xpose.msra.mxu0 0.0
    %534 = vmatpush.xpose.msra.mxu0 0.0
    %535 = vmatpush.xpose.msra.mxu0 0.0
    %536 = vmatpush.xpose.msra.mxu0 0.0
    %537 = vmatpush.xpose.msra.mxu0 0.0
    %538 = vmatpush.xpose.msra.mxu0 0.0
    %539 = vmatpush.xpose.msra.mxu0 0.0
    %540 = vmatpush.xpose.msra.mxu0 0.0
    %541 = vmatpush.xpose.msra.mxu0 0.0
    %542 = vmatpush.xpose.msra.mxu0 %v525
    %543 = vmatmul.f32.gmra.mxu0 %v522
    %v544 = vpop.f32.mrf.mxu0
    %v545 = vadd.f32 %v516, %v544
    %546 = vdwg.mxu0
    %v548 = vsel %vm520, %v452, 0
    %v551 = vsel %vm520, %v483, 0
    %553 = vmatpush.xpose.msra.mxu0 0.0
    %554 = vmatpush.xpose.msra.mxu0 0.0
    %555 = vmatpush.xpose.msra.mxu0 0.0
    %556 = vmatpush.xpose.msra.mxu0 0.0
    %557 = vmatpush.xpose.msra.mxu0 0.0
    %558 = vmatpush.xpose.msra.mxu0 0.0
    %559 = vmatpush.xpose.msra.mxu0 0.0
    %560 = vmatpush.xpose.msra.mxu0 0.0
    %561 = vmatpush.xpose.msra.mxu0 0.0
    %562 = vmatpush.xpose.msra.mxu0 0.0
    %563 = vmatpush.xpose.msra.mxu0 0.0
    %564 = vmatpush.xpose.msra.mxu0 0.0
    %565 = vmatpush.xpose.msra.mxu0 0.0
    %566 = vmatpush.xpose.msra.mxu0 0.0
    %567 = vmatpush.xpose.msra.mxu0 0.0
    %568 = vmatpush.xpose.msra.mxu0 %v551
    %569 = vmatmul.f32.gmra.mxu0 %v548
    %v570 = vpop.f32.mrf.mxu0
    %v571 = vadd.f32 %v517, %v570
    %572 = vdwg.mxu0
    %v573 = vmul.f32 %v545, 1.442695
    %v574 = vpow.pop %v573
    %v575 = vmul.f32 %v571, 1.442695
    %v576 = vpow.pop %v575
    %v577 = vsel %vm520, %v574, 0.0
    %578 = vadd.xlane.f32.xlu0 %v577
    %v579 = vpop.xlane.xlu0 %578
    %v580 = vsel %vm520, %v576, 0.0
    %581 = vadd.xlane.f32.xlu0 %v580
    %v582 = vpop.xlane.xlu0 %581
    %v583 = vrcp.pop %v579
    %v584 = vrcp.pop %v582
    %v585 = vmul.f32 %v574, %v583
    %v586 = vmul.f32 %v576, %v584
    %v588 = vsel %vm520, %v585, 0
    %590 = vmatpush.msra.mxu0 0.0
    %591 = vmatpush.msra.mxu0 0.0
    %592 = vmatpush.msra.mxu0 0.0
    %593 = vmatpush.msra.mxu0 0.0
    %594 = vmatpush.msra.mxu0 0.0
    %595 = vmatpush.msra.mxu0 0.0
    %596 = vmatpush.msra.mxu0 0.0
    %597 = vmatpush.msra.mxu0 0.0
    %598 = vmatpush.msra.mxu0 0.0
    %599 = vmatpush.msra.mxu0 0.0
    %600 = vmatpush.msra.mxu0 0.0
    %601 = vmatpush.msra.mxu0 0.0
    %602 = vmatpush.msra.mxu0 0.0
    %603 = vmatpush.msra.mxu0 0.0
    %604 = vmatpush.msra.mxu0 0.0
    %605 = vmatpush.msra.mxu0 %v511
    %606 = vmatmul.f32.gmra.mxu0 %v588
    %v607 = vpop.f32.mrf.mxu0
    %v608 = vadd.f32 0.0, %v607
    %609 = vdwg.mxu0
    %v611 = vsel %vm520, %v586, 0
    %613 = vmatpush.msra.mxu0 0.0
    %614 = vmatpush.msra.mxu0 0.0
    %615 = vmatpush.msra.mxu0 0.0
    %616 = vmatpush.msra.mxu0 0.0
    %617 = vmatpush.msra.mxu0 0.0
    %618 = vmatpush.msra.mxu0 0.0
    %619 = vmatpush.msra.mxu0 0.0
    %620 = vmatpush.msra.mxu0 0.0
    %621 = vmatpush.msra.mxu0 0.0
    %622 = vmatpush.msra.mxu0 0.0
    %623 = vmatpush.msra.mxu0 0.0
    %624 = vmatpush.msra.mxu0 0.0
    %625 = vmatpush.msra.mxu0 0.0
    %626 = vmatpush.msra.mxu0 0.0
    %627 = vmatpush.msra.mxu0 0.0
    %628 = vmatpush.msra.mxu0 %v514
    %629 = vmatmul.f32.gmra.mxu0 %v611
    %v630 = vpop.f32.mrf.mxu0
    %v631 = vadd.f32 0.0, %v630
    %632 = vdwg.mxu0
    %633 = vrot.lane.b32.xlu0 %v449, 120
    %v634 = vpop.permute.xlu0 %633
    %635 = vrot.lane.b32.xlu0 %v480, 120
    %v636 = vpop.permute.xlu0 %635
    %v637 = vsel %vm520, %v634, 0
    %v639 = vsel %vm520, %v636, 0
    %641 = vmatpush.xpose.msra.mxu0 0.0
    %642 = vmatpush.xpose.msra.mxu0 0.0
    %643 = vmatpush.xpose.msra.mxu0 0.0
    %644 = vmatpush.xpose.msra.mxu0 0.0
    %645 = vmatpush.xpose.msra.mxu0 0.0
    %646 = vmatpush.xpose.msra.mxu0 0.0
    %647 = vmatpush.xpose.msra.mxu0 0.0
    %648 = vmatpush.xpose.msra.mxu0 0.0
    %649 = vmatpush.xpose.msra.mxu0 0.0
    %650 = vmatpush.xpose.msra.mxu0 0.0
    %651 = vmatpush.xpose.msra.mxu0 0.0
    %652 = vmatpush.xpose.msra.mxu0 0.0
    %653 = vmatpush.xpose.msra.mxu0 0.0
    %654 = vmatpush.xpose.msra.mxu0 0.0
    %655 = vmatpush.xpose.msra.mxu0 0.0
    %656 = vmatpush.xpose.msra.mxu0 %v639
    %657 = vmatmul.f32.gmra.mxu0 %v637
    %v658 = vpop.f32.mrf.mxu0
    %v659 = vadd.f32 %v516, %v658
    %660 = vdwg.mxu0
    %661 = vrot.lane.b32.xlu0 %v452, 120
    %v662 = vpop.permute.xlu0 %661
    %663 = vrot.lane.b32.xlu0 %v483, 120
    %v664 = vpop.permute.xlu0 %663
    %v665 = vsel %vm520, %v662, 0
    %v667 = vsel %vm520, %v664, 0
    %669 = vmatpush.xpose.msra.mxu0 0.0
    %670 = vmatpush.xpose.msra.mxu0 0.0
    %671 = vmatpush.xpose.msra.mxu0 0.0
    %672 = vmatpush.xpose.msra.mxu0 0.0
    %673 = vmatpush.xpose.msra.mxu0 0.0
    %674 = vmatpush.xpose.msra.mxu0 0.0
    %675 = vmatpush.xpose.msra.mxu0 0.0
    %676 = vmatpush.xpose.msra.mxu0 0.0
    %677 = vmatpush.xpose.msra.mxu0 0.0
    %678 = vmatpush.xpose.msra.mxu0 0.0
    %679 = vmatpush.xpose.msra.mxu0 0.0
    %680 = vmatpush.xpose.msra.mxu0 0.0
    %681 = vmatpush.xpose.msra.mxu0 0.0
    %682 = vmatpush.xpose.msra.mxu0 0.0
    %683 = vmatpush.xpose.msra.mxu0 0.0
    %684 = vmatpush.xpose.msra.mxu0 %v667
    %685 = vmatmul.f32.gmra.mxu0 %v665
    %v686 = vpop.f32.mrf.mxu0
    %v687 = vadd.f32 %v517, %v686
    %688 = vdwg.mxu0
    %v689 = vmul.f32 %v659, 1.442695
    %v690 = vpow.pop %v689
    %v691 = vmul.f32 %v687, 1.442695
    %v692 = vpow.pop %v691
    %v693 = vsel %vm520, %v690, 0.0
    %694 = vadd.xlane.f32.xlu0 %v693
    %v695 = vpop.xlane.xlu0 %694
    %v696 = vsel %vm520, %v692, 0.0
    %697 = vadd.xlane.f32.xlu0 %v696
    %v698 = vpop.xlane.xlu0 %697
    %v699 = vrcp.pop %v695
    %v700 = vrcp.pop %v698
    %v701 = vmul.f32 %v690, %v699
    %v702 = vmul.f32 %v692, %v700
    %704 = vrot.lane.b32.xlu0 %v511, 120
    %v705 = vpop.permute.xlu0 %704
    %v708 = vsel %vm520, %v701, 0
    %710 = vmatpush.msra.mxu0 0.0
    %711 = vmatpush.msra.mxu0 0.0
    %712 = vmatpush.msra.mxu0 0.0
    %713 = vmatpush.msra.mxu0 0.0
    %714 = vmatpush.msra.mxu0 0.0
    %715 = vmatpush.msra.mxu0 0.0
    %716 = vmatpush.msra.mxu0 0.0
    %717 = vmatpush.msra.mxu0 0.0
    %718 = vmatpush.msra.mxu0 0.0
    %719 = vmatpush.msra.mxu0 0.0
    %720 = vmatpush.msra.mxu0 0.0
    %721 = vmatpush.msra.mxu0 0.0
    %722 = vmatpush.msra.mxu0 0.0
    %723 = vmatpush.msra.mxu0 0.0
    %724 = vmatpush.msra.mxu0 0.0
    %725 = vmatpush.msra.mxu0 %v705
    %726 = vmatmul.f32.gmra.mxu0 %v708
    %v727 = vpop.f32.mrf.mxu0
    %v728 = vadd.f32 0.0, %v727
    %729 = vdwg.mxu0
    %731 = vrot.lane.b32.xlu0 %v514, 120
    %v732 = vpop.permute.xlu0 %731
    %v735 = vsel %vm520, %v702, 0
    %737 = vmatpush.msra.mxu0 0.0
    %738 = vmatpush.msra.mxu0 0.0
    %739 = vmatpush.msra.mxu0 0.0
    %740 = vmatpush.msra.mxu0 0.0
    %741 = vmatpush.msra.mxu0 0.0
    %742 = vmatpush.msra.mxu0 0.0
    %743 = vmatpush.msra.mxu0 0.0
    %744 = vmatpush.msra.mxu0 0.0
    %745 = vmatpush.msra.mxu0 0.0
    %746 = vmatpush.msra.mxu0 0.0
    %747 = vmatpush.msra.mxu0 0.0
    %748 = vmatpush.msra.mxu0 0.0
    %749 = vmatpush.msra.mxu0 0.0
    %750 = vmatpush.msra.mxu0 0.0
    %751 = vmatpush.msra.mxu0 0.0
    %752 = vmatpush.msra.mxu0 %v732
    %753 = vmatmul.f32.gmra.mxu0 %v735
    %v754 = vpop.f32.mrf.mxu0
    %v755 = vadd.f32 0.0, %v754
    %756 = vdwg.mxu0
    %757 = vrot.lane.b32.xlu0 %v449, 112
    %v758 = vpop.permute.xlu0 %757
    %759 = vrot.lane.b32.xlu0 %v480, 112
    %v760 = vpop.permute.xlu0 %759
    %v761 = vsel %vm520, %v758, 0
    %v763 = vsel %vm520, %v760, 0
    %765 = vmatpush.xpose.msra.mxu0 0.0
    %766 = vmatpush.xpose.msra.mxu0 0.0
    %767 = vmatpush.xpose.msra.mxu0 0.0
    %768 = vmatpush.xpose.msra.mxu0 0.0
    %769 = vmatpush.xpose.msra.mxu0 0.0
    %770 = vmatpush.xpose.msra.mxu0 0.0
    %771 = vmatpush.xpose.msra.mxu0 0.0
    %772 = vmatpush.xpose.msra.mxu0 0.0
    %773 = vmatpush.xpose.msra.mxu0 0.0
    %774 = vmatpush.xpose.msra.mxu0 0.0
    %775 = vmatpush.xpose.msra.mxu0 0.0
    %776 = vmatpush.xpose.msra.mxu0 0.0
    %777 = vmatpush.xpose.msra.mxu0 0.0
    %778 = vmatpush.xpose.msra.mxu0 0.0
    %779 = vmatpush.xpose.msra.mxu0 0.0
    %780 = vmatpush.xpose.msra.mxu0 %v763
    %781 = vmatmul.f32.gmra.mxu0 %v761
    %v782 = vpop.f32.mrf.mxu0
    %v783 = vadd.f32 %v516, %v782
    %784 = vdwg.mxu0
    %785 = vrot.lane.b32.xlu0 %v452, 112
    %v786 = vpop.permute.xlu0 %785
    %787 = vrot.lane.b32.xlu0 %v483, 112
    %v788 = vpop.permute.xlu0 %787
    %v789 = vsel %vm520, %v786, 0
    %v791 = vsel %vm520, %v788, 0
    %793 = vmatpush.xpose.msra.mxu0 0.0
    %794 = vmatpush.xpose.msra.mxu0 0.0
    %795 = vmatpush.xpose.msra.mxu0 0.0
    %796 = vmatpush.xpose.msra.mxu0 0.0
    %797 = vmatpush.xpose.msra.mxu0 0.0
    %798 = vmatpush.xpose.msra.mxu0 0.0
    %799 = vmatpush.xpose.msra.mxu0 0.0
    %800 = vmatpush.xpose.msra.mxu0 0.0
    %801 = vmatpush.xpose.msra.mxu0 0.0
    %802 = vmatpush.xpose.msra.mxu0 0.0
    %803 = vmatpush.xpose.msra.mxu0 0.0
    %804 = vmatpush.xpose.msra.mxu0 0.0
    %805 = vmatpush.xpose.msra.mxu0 0.0
    %806 = vmatpush.xpose.msra.mxu0 0.0
    %807 = vmatpush.xpose.msra.mxu0 0.0
    %808 = vmatpush.xpose.msra.mxu0 %v791
    %809 = vmatmul.f32.gmra.mxu0 %v789
    %v810 = vpop.f32.mrf.mxu0
    %v811 = vadd.f32 %v517, %v810
    %812 = vdwg.mxu0
    %v813 = vmul.f32 %v783, 1.442695
    %v814 = vpow.pop %v813
    %v815 = vmul.f32 %v811, 1.442695
    %v816 = vpow.pop %v815
    %v817 = vsel %vm520, %v814, 0.0
    %818 = vadd.xlane.f32.xlu0 %v817
    %v819 = vpop.xlane.xlu0 %818
    %v820 = vsel %vm520, %v816, 0.0
    %821 = vadd.xlane.f32.xlu0 %v820
    %v822 = vpop.xlane.xlu0 %821
    %v823 = vrcp.pop %v819
    %v824 = vrcp.pop %v822
    %v825 = vmul.f32 %v814, %v823
    %v826 = vmul.f32 %v816, %v824
    %827 = vrot.lane.b32.xlu0 %v511, 112
    %v828 = vpop.permute.xlu0 %827
    %v831 = vsel %vm520, %v825, 0
    %833 = vmatpush.msra.mxu0 0.0
    %834 = vmatpush.msra.mxu0 0.0
    %835 = vmatpush.msra.mxu0 0.0
    %836 = vmatpush.msra.mxu0 0.0
    %837 = vmatpush.msra.mxu0 0.0
    %838 = vmatpush.msra.mxu0 0.0
    %839 = vmatpush.msra.mxu0 0.0
    %840 = vmatpush.msra.mxu0 0.0
    %841 = vmatpush.msra.mxu0 0.0
    %842 = vmatpush.msra.mxu0 0.0
    %843 = vmatpush.msra.mxu0 0.0
    %844 = vmatpush.msra.mxu0 0.0
    %845 = vmatpush.msra.mxu0 0.0
    %846 = vmatpush.msra.mxu0 0.0
    %847 = vmatpush.msra.mxu0 0.0
    %848 = vmatpush.msra.mxu0 %v828
    %849 = vmatmul.f32.gmra.mxu0 %v831
    %v850 = vpop.f32.mrf.mxu0
    %v851 = vadd.f32 0.0, %v850
    %852 = vdwg.mxu0
    %853 = vrot.lane.b32.xlu0 %v514, 112
    %v854 = vpop.permute.xlu0 %853
    %v857 = vsel %vm520, %v826, 0
    %859 = vmatpush.msra.mxu0 0.0
    %860 = vmatpush.msra.mxu0 0.0
    %861 = vmatpush.msra.mxu0 0.0
    %862 = vmatpush.msra.mxu0 0.0
    %863 = vmatpush.msra.mxu0 0.0
    %864 = vmatpush.msra.mxu0 0.0
    %865 = vmatpush.msra.mxu0 0.0
    %866 = vmatpush.msra.mxu0 0.0
    %867 = vmatpush.msra.mxu0 0.0
    %868 = vmatpush.msra.mxu0 0.0
    %869 = vmatpush.msra.mxu0 0.0
    %870 = vmatpush.msra.mxu0 0.0
    %871 = vmatpush.msra.mxu0 0.0
    %872 = vmatpush.msra.mxu0 0.0
    %873 = vmatpush.msra.mxu0 0.0
    %874 = vmatpush.msra.mxu0 %v854
    %875 = vmatmul.f32.gmra.mxu0 %v857
    %v876 = vpop.f32.mrf.mxu0
    %v877 = vadd.f32 0.0, %v876
    %878 = vdwg.mxu0
    %879 = vrot.lane.b32.xlu0 %v449, 104
    %v880 = vpop.permute.xlu0 %879
    %881 = vrot.lane.b32.xlu0 %v480, 104
    %v882 = vpop.permute.xlu0 %881
    %v883 = vsel %vm520, %v880, 0
    %v885 = vsel %vm520, %v882, 0
    %887 = vmatpush.xpose.msra.mxu0 0.0
    %888 = vmatpush.xpose.msra.mxu0 0.0
    %889 = vmatpush.xpose.msra.mxu0 0.0
    %890 = vmatpush.xpose.msra.mxu0 0.0
    %891 = vmatpush.xpose.msra.mxu0 0.0
    %892 = vmatpush.xpose.msra.mxu0 0.0
    %893 = vmatpush.xpose.msra.mxu0 0.0
    %894 = vmatpush.xpose.msra.mxu0 0.0
    %895 = vmatpush.xpose.msra.mxu0 0.0
    %896 = vmatpush.xpose.msra.mxu0 0.0
    %897 = vmatpush.xpose.msra.mxu0 0.0
    %898 = vmatpush.xpose.msra.mxu0 0.0
    %899 = vmatpush.xpose.msra.mxu0 0.0
    %900 = vmatpush.xpose.msra.mxu0 0.0
    %901 = vmatpush.xpose.msra.mxu0 0.0
    %902 = vmatpush.xpose.msra.mxu0 %v885
    %903 = vmatmul.f32.gmra.mxu0 %v883
    %v904 = vpop.f32.mrf.mxu0
    %v905 = vadd.f32 %v516, %v904
    %906 = vdwg.mxu0
    %907 = vrot.lane.b32.xlu0 %v452, 104
    %v908 = vpop.permute.xlu0 %907
    %909 = vrot.lane.b32.xlu0 %v483, 104
    %v910 = vpop.permute.xlu0 %909
    %v911 = vsel %vm520, %v908, 0
    %v913 = vsel %vm520, %v910, 0
    %915 = vmatpush.xpose.msra.mxu0 0.0
    %916 = vmatpush.xpose.msra.mxu0 0.0
    %917 = vmatpush.xpose.msra.mxu0 0.0
    %918 = vmatpush.xpose.msra.mxu0 0.0
    %919 = vmatpush.xpose.msra.mxu0 0.0
    %920 = vmatpush.xpose.msra.mxu0 0.0
    %921 = vmatpush.xpose.msra.mxu0 0.0
    %922 = vmatpush.xpose.msra.mxu0 0.0
    %923 = vmatpush.xpose.msra.mxu0 0.0
    %924 = vmatpush.xpose.msra.mxu0 0.0
    %925 = vmatpush.xpose.msra.mxu0 0.0
    %926 = vmatpush.xpose.msra.mxu0 0.0
    %927 = vmatpush.xpose.msra.mxu0 0.0
    %928 = vmatpush.xpose.msra.mxu0 0.0
    %929 = vmatpush.xpose.msra.mxu0 0.0
    %930 = vmatpush.xpose.msra.mxu0 %v913
    %931 = vmatmul.f32.gmra.mxu0 %v911
    %v932 = vpop.f32.mrf.mxu0
    %v933 = vadd.f32 %v517, %v932
    %934 = vdwg.mxu0
    %v935 = vmul.f32 %v905, 1.442695
    %v936 = vpow.pop %v935
    %v937 = vmul.f32 %v933, 1.442695
    %v938 = vpow.pop %v937
    %v939 = vsel %vm520, %v936, 0.0
    %940 = vadd.xlane.f32.xlu0 %v939
    %v941 = vpop.xlane.xlu0 %940
    %v942 = vsel %vm520, %v938, 0.0
    %943 = vadd.xlane.f32.xlu0 %v942
    %v944 = vpop.xlane.xlu0 %943
    %v945 = vrcp.pop %v941
    %v946 = vrcp.pop %v944
    %v947 = vmul.f32 %v936, %v945
    %v948 = vmul.f32 %v938, %v946
    %949 = vrot.lane.b32.xlu0 %v511, 104
    %v950 = vpop.permute.xlu0 %949
    %v953 = vsel %vm520, %v947, 0
    %955 = vmatpush.msra.mxu0 0.0
    %956 = vmatpush.msra.mxu0 0.0
    %957 = vmatpush.msra.mxu0 0.0
    %958 = vmatpush.msra.mxu0 0.0
    %959 = vmatpush.msra.mxu0 0.0
    %960 = vmatpush.msra.mxu0 0.0
    %961 = vmatpush.msra.mxu0 0.0
    %962 = vmatpush.msra.mxu0 0.0
    %963 = vmatpush.msra.mxu0 0.0
    %964 = vmatpush.msra.mxu0 0.0
    %965 = vmatpush.msra.mxu0 0.0
    %966 = vmatpush.msra.mxu0 0.0
    %967 = vmatpush.msra.mxu0 0.0
    %968 = vmatpush.msra.mxu0 0.0
    %969 = vmatpush.msra.mxu0 0.0
    %970 = vmatpush.msra.mxu0 %v950
    %971 = vmatmul.f32.gmra.mxu0 %v953
    %v972 = vpop.f32.mrf.mxu0
    %v973 = vadd.f32 0.0, %v972
    %974 = vdwg.mxu0
    %975 = vrot.lane.b32.xlu0 %v514, 104
    %v976 = vpop.permute.xlu0 %975
    %v979 = vsel %vm520, %v948, 0
    %981 = vmatpush.msra.mxu0 0.0
    %982 = vmatpush.msra.mxu0 0.0
    %983 = vmatpush.msra.mxu0 0.0
    %984 = vmatpush.msra.mxu0 0.0
    %985 = vmatpush.msra.mxu0 0.0
    %986 = vmatpush.msra.mxu0 0.0
    %987 = vmatpush.msra.mxu0 0.0
    %988 = vmatpush.msra.mxu0 0.0
    %989 = vmatpush.msra.mxu0 0.0
    %990 = vmatpush.msra.mxu0 0.0
    %991 = vmatpush.msra.mxu0 0.0
    %992 = vmatpush.msra.mxu0 0.0
    %993 = vmatpush.msra.mxu0 0.0
    %994 = vmatpush.msra.mxu0 0.0
    %995 = vmatpush.msra.mxu0 0.0
    %996 = vmatpush.msra.mxu0 %v976
    %997 = vmatmul.f32.gmra.mxu0 %v979
    %v998 = vpop.f32.mrf.mxu0
    %v999 = vadd.f32 0.0, %v998
    %1000 = vdwg.mxu0
    %1003 = vrot.lane.b32.xlu0 %v728, 8
    %v1004 = vpop.permute.xlu0 %1003
    %1005 = vrot.lane.b32.xlu0 %v755, 8
    %v1006 = vpop.permute.xlu0 %1005
    %1011 = vrot.lane.b32.xlu0 %v851, 16
    %v1012 = vpop.permute.xlu0 %1011
    %1013 = vrot.lane.b32.xlu0 %v877, 16
    %v1014 = vpop.permute.xlu0 %1013
    %1019 = vrot.lane.b32.xlu0 %v973, 24
    %v1020 = vpop.permute.xlu0 %1019
    %1021 = vrot.lane.b32.xlu0 %v999, 24
    %v1022 = vpop.permute.xlu0 %1021
    %v1025 = vsel %vm520, %v608, %v1004
    %v1026 = vsel %vm520, %v631, %v1006
    %vm1027 = vcmask 130048
    %v1028 = vsel %vm1027, %v1025, %v1012
    %v1029 = vsel %vm1027, %v1026, %v1014
    %vm1030 = vcmask 195584
    %v1031 = vsel %vm1030, %v1028, %v1020
    %v1032 = vsel %vm1030, %v1029, %v1022
    %v1033 = vld [vmem:[#allocation10] sm:$0xff]
    %v1034 = vld [vmem:[#allocation10 + $0x8] sm:$0xff]
    %v1035 = vld [vmem:[#allocation10 + $0x10] sm:$0xff]
    %v1036 = vld [vmem:[#allocation10 + $0x18] sm:$0xff]
    %v1037 = vld [vmem:[#allocation12] sm:$0x1]
    %v1039 = vperm.slane %v1037, 0
    %v1042 = vsel %vm343, %v1031, 0
    %v1045 = vsel %vm343, %v1032, 0
    %1047 = vmatpush.msra.mxu0 0.0
    %1048 = vmatpush.msra.mxu0 0.0
    %1049 = vmatpush.msra.mxu0 0.0
    %1050 = vmatpush.msra.mxu0 0.0
    %1051 = vmatpush.msra.mxu0 0.0
    %1052 = vmatpush.msra.mxu0 0.0
    %1053 = vmatpush.msra.mxu0 0.0
    %1054 = vmatpush.msra.mxu0 0.0
    %1055 = vmatpush.msra.mxu0 0.0
    %1056 = vmatpush.msra.mxu0 0.0
    %1057 = vmatpush.msra.mxu0 0.0
    %1058 = vmatpush.msra.mxu0 0.0
    %1059 = vmatpush.msra.mxu0 %v1036
    %1060 = vmatpush.msra.mxu0 %v1035
    %1061 = vmatpush.msra.mxu0 %v1034
    %1062 = vmatpush.msra.mxu0 %v1033
    %1063 = vmatmul.f32.gmra.mxu0 %v1042
    %v1064 = vpop.f32.mrf.mxu0
    %v1065 = vadd.f32 %v1039, %v1064
    %1066 = vmatmul.f32.gmra.mxu0 %v1045
    %v1067 = vpop.f32.mrf.mxu0
    %v1068 = vadd.f32 %v1039, %v1067
    %1069 = vdwg.mxu0
    %v1070 = vadd.f32 %v409, %v1065
    %v1071 = vadd.f32 %v410, %v1068
    %v1072 = vld [vmem:[%s15] sm:$0x1]
    %v1073 = vld [vmem:[%s16] sm:$0x1]
    %v1074 = vsel %vm343, %v1070, 0.0
    %1075 = vadd.xlane.f32.xlu0 %v1074
    %v1076 = vpop.xlane.xlu0 %1075
    %v1077 = vsel %vm343, %v1071, 0.0
    %1078 = vadd.xlane.f32.xlu0 %v1077
    %v1079 = vpop.xlane.xlu0 %1078
    %v1080 = vmul.f32 %v1076, %v356
    %v1081 = vmul.f32 %v1079, %v356
    %v1082 = vmul.f32 %v1070, %v1070
    %v1083 = vmul.f32 %v1071, %v1071
    %v1084 = vsel %vm343, %v1082, 0.0
    %1085 = vadd.xlane.f32.xlu0 %v1084
    %v1086 = vpop.xlane.xlu0 %1085
    %v1087 = vsel %vm343, %v1083, 0.0
    %1088 = vadd.xlane.f32.xlu0 %v1087
    %v1089 = vpop.xlane.xlu0 %1088
    %v1090 = vmul.f32 %v1086, %v356
    %v1091 = vmul.f32 %v1089, %v356
    %v1092 = vmul.f32 %v1080, %v1080
    %v1093 = vmul.f32 %v1081, %v1081
    %v1094 = vsub.f32 %v1090, %v1092
    %v1095 = vsub.f32 %v1091, %v1093
    %v1096 = vadd.f32 %v1094, 1e-12
    %v1097 = vadd.f32 %v1095, 1e-12
    %v1098 = vrsqrt.pop %v1096
    %v1099 = vmul.f32 %v1098, %v1096
    %v1100 = vmul.f32 %v1099, %v1098
    %v1101 = vmul.f32 0.5, %v1100
    %v1102 = vsub.f32 1.5, %v1101
    %v1103 = vmul.f32 %v1098, %v1102
    %vm1104 = vweird.f32 %v1096
    %vm1105 = vweird.f32 %v1098
    %vm1106 = vmor %vm1104, %vm1105
    %v1107 = vsel %vm1106, %v1098, %v1103
    %v1108 = vrsqrt.pop %v1097
    %v1109 = vmul.f32 %v1108, %v1097
    %v1110 = vmul.f32 %v1109, %v1108
    %v1111 = vmul.f32 0.5, %v1110
    %v1112 = vsub.f32 1.5, %v1111
    %v1113 = vmul.f32 %v1108, %v1112
    %vm1114 = vweird.f32 %v1097
    %vm1115 = vweird.f32 %v1108
    %vm1116 = vmor %vm1114, %vm1115
    %v1117 = vsel %vm1116, %v1108, %v1113
    %v1119 = vperm.slane %v1072, 0
    %v1121 = vmul.f32 %v1119, %v1107
    %v1122 = vmul.f32 %v1119, %v1117
    %v1123 = vmul.f32 %v1070, %v1121
    %v1124 = vmul.f32 %v1071, %v1122
    %v1125 = vmul.f32 %v1080, %v1121
    %v1126 = vmul.f32 %v1081, %v1122
    %v1128 = vperm.slane %v1073, 0
    %v1130 = vsub.f32 %v1128, %v1125
    %v1131 = vsub.f32 %v1128, %v1126
    %v1132 = vadd.f32 %v1123, %v1130
    %v1133 = vadd.f32 %v1124, %v1131
    %v1134 = vld [vmem:[#allocation13] sm:$0xff]
    %v1135 = vld [vmem:[#allocation13 + $0x8] sm:$0xff]
    %v1136 = vld [vmem:[#allocation13 + $0x10] sm:$0xff]
    %v1137 = vld [vmem:[#allocation13 + $0x18] sm:$0xff]
    %v1138 = vld [vmem:[#allocation15] sm:$0x1]
    %v1140 = vperm.slane %v1138, 0
    %v1143 = vsel %vm343, %v1132, 0
    %v1146 = vsel %vm343, %v1133, 0
    %1148 = vmatpush.msra.mxu0 0.0
    %1149 = vmatpush.msra.mxu0 0.0
    %1150 = vmatpush.msra.mxu0 0.0
    %1151 = vmatpush.msra.mxu0 0.0
    %1152 = vmatpush.msra.mxu0 0.0
    %1153 = vmatpush.msra.mxu0 0.0
    %1154 = vmatpush.msra.mxu0 0.0
    %1155 = vmatpush.msra.mxu0 0.0
    %1156 = vmatpush.msra.mxu0 0.0
    %1157 = vmatpush.msra.mxu0 0.0
    %1158 = vmatpush.msra.mxu0 0.0
    %1159 = vmatpush.msra.mxu0 0.0
    %1160 = vmatpush.msra.mxu0 %v1137
    %1161 = vmatpush.msra.mxu0 %v1136
    %1162 = vmatpush.msra.mxu0 %v1135
    %1163 = vmatpush.msra.mxu0 %v1134
    %1164 = vmatmul.f32.gmra.mxu0 %v1143
    %v1165 = vpop.f32.mrf.mxu0
    %v1166 = vadd.f32 %v1140, %v1165
    %1167 = vmatmul.f32.gmra.mxu0 %v1146
    %v1168 = vpop.f32.mrf.mxu0
    %v1169 = vadd.f32 %v1140, %v1168
    %1170 = vdwg.mxu0
    %v1171 = vmul.f32 %v1166, 0.5
    %v1172 = vmul.f32 %v1169, 0.5
    %v1173 = vmul.f32 %v1166, 0.044715
    %v1174 = vmul.f32 %v1169, 0.044715
    %v1175 = vmul.f32 %v1173, %v1166
    %v1176 = vmul.f32 %v1174, %v1169
    %v1177 = vmul.f32 %v1175, %v1166
    %v1178 = vmul.f32 %v1176, %v1169
    %v1179 = vadd.f32 %v1166, %v1177
    %v1180 = vadd.f32 %v1169, %v1178
    %v1181 = vmul.f32 %v1179, 0.7978846
    %v1182 = vmul.f32 %v1180, 0.7978846
    %v1183 = vtanh.pop %v1181
    %v1184 = vtanh.pop %v1182
    %v1185 = vadd.f32 %v1183, 1.0
    %v1186 = vadd.f32 %v1184, 1.0
    %v1187 = vmul.f32 %v1171, %v1185
    %v1188 = vmul.f32 %v1172, %v1186
    %v1189 = vld [vmem:[%s19] sm:$0xff]
    %v1190 = vld [vmem:[%s19 + $0x8] sm:$0xff]
    %v1191 = vld [vmem:[%s19 + $0x10] sm:$0xff]
    %v1192 = vld [vmem:[%s19 + $0x18] sm:$0xff]
    %v1193 = vld [vmem:[%s19 + $0x20] sm:$0xff]
    %v1194 = vld [vmem:[%s19 + $0x28] sm:$0xff]
    %v1195 = vld [vmem:[%s19 + $0x30] sm:$0xff]
    %v1196 = vld [vmem:[%s19 + $0x38] sm:$0xff]
    %v1197 = vld [vmem:[#allocation16] sm:$0x1]
    %v1199 = vperm.slane %v1197, 0
    %vm1201 = vcmask 523264
    %v1203 = vsel %vm1201, %v1187, 0
    %v1206 = vsel %vm1201, %v1188, 0
    %1208 = vmatpush.msra.mxu0 0.0
    %1209 = vmatpush.msra.mxu0 0.0
    %1210 = vmatpush.msra.mxu0 0.0
    %1211 = vmatpush.msra.mxu0 0.0
    %1212 = vmatpush.msra.mxu0 0.0
    %1213 = vmatpush.msra.mxu0 0.0
    %1214 = vmatpush.msra.mxu0 0.0
    %1215 = vmatpush.msra.mxu0 0.0
    %1216 = vmatpush.msra.mxu0 %v1196
    %1217 = vmatpush.msra.mxu0 %v1195
    %1218 = vmatpush.msra.mxu0 %v1194
    %1219 = vmatpush.msra.mxu0 %v1193
    %1220 = vmatpush.msra.mxu0 %v1192
    %1221 = vmatpush.msra.mxu0 %v1191
    %1222 = vmatpush.msra.mxu0 %v1190
    %1223 = vmatpush.msra.mxu0 %v1189
    %1224 = vmatmul.f32.gmra.mxu0 %v1203
    %v1225 = vpop.f32.mrf.mxu0
    %v1226 = vadd.f32 %v1199, %v1225
    %1227 = vmatmul.f32.gmra.mxu0 %v1206
    %v1228 = vpop.f32.mrf.mxu0
    %v1229 = vadd.f32 %v1199, %v1228
    %1230 = vdwg.mxu0
    %v1231 = vadd.f32 %v1132, %v1226
    %v1232 = vadd.f32 %v1133, %v1229
    %v1233 = vld [vmem:[#allocation18] sm:$0x1]
    %v1234 = vld [vmem:[#allocation19] sm:$0x1]
    %v1235 = vsel %vm343, %v1231, 0.0
    %1236 = vadd.xlane.f32.xlu0 %v1235
    %v1237 = vpop.xlane.xlu0 %1236
    %v1238 = vsel %vm343, %v1232, 0.0
    %1239 = vadd.xlane.f32.xlu0 %v1238
    %v1240 = vpop.xlane.xlu0 %1239
    %v1241 = vmul.f32 %v1237, %v356
    %v1242 = vmul.f32 %v1240, %v356
    %v1243 = vmul.f32 %v1231, %v1231
    %v1244 = vmul.f32 %v1232, %v1232
    %v1245 = vsel %vm343, %v1243, 0.0
    %1246 = vadd.xlane.f32.xlu0 %v1245
    %v1247 = vpop.xlane.xlu0 %1246
    %v1248 = vsel %vm343, %v1244, 0.0
    %1249 = vadd.xlane.f32.xlu0 %v1248
    %v1250 = vpop.xlane.xlu0 %1249
    %v1251 = vmul.f32 %v1247, %v356
    %v1252 = vmul.f32 %v1250, %v356
    %v1253 = vmul.f32 %v1241, %v1241
    %v1254 = vmul.f32 %v1242, %v1242
    %v1255 = vsub.f32 %v1251, %v1253
    %v1256 = vsub.f32 %v1252, %v1254
    %v1257 = vadd.f32 %v1255, 1e-12
    %v1258 = vadd.f32 %v1256, 1e-12
    %v1259 = vrsqrt.pop %v1257
    %v1260 = vmul.f32 %v1259, %v1257
    %v1261 = vmul.f32 %v1260, %v1259
    %v1262 = vmul.f32 0.5, %v1261
    %v1263 = vsub.f32 1.5, %v1262
    %v1264 = vmul.f32 %v1259, %v1263
    %vm1265 = vweird.f32 %v1257
    %vm1266 = vweird.f32 %v1259
    %vm1267 = vmor %vm1265, %vm1266
    %v1268 = vsel %vm1267, %v1259, %v1264
    %v1269 = vrsqrt.pop %v1258
    %v1270 = vmul.f32 %v1269, %v1258
    %v1271 = vmul.f32 %v1270, %v1269
    %v1272 = vmul.f32 0.5, %v1271
    %v1273 = vsub.f32 1.5, %v1272
    %v1274 = vmul.f32 %v1269, %v1273
    %vm1275 = vweird.f32 %v1258
    %vm1276 = vweird.f32 %v1269
    %vm1277 = vmor %vm1275, %vm1276
    %v1278 = vsel %vm1277, %v1269, %v1274
    %v1280 = vperm.slane %v1233, 0
    %v1282 = vmul.f32 %v1280, %v1268
    %v1283 = vmul.f32 %v1280, %v1278
    %v1284 = vmul.f32 %v1231, %v1282
    %v1285 = vmul.f32 %v1232, %v1283
    %v1286 = vmul.f32 %v1241, %v1282
    %v1287 = vmul.f32 %v1242, %v1283
    %v1289 = vperm.slane %v1234, 0
    %v1291 = vsub.f32 %v1289, %v1286
    %v1292 = vsub.f32 %v1289, %v1287
    %v1293 = vadd.f32 %v1284, %v1291
    %v1294 = vadd.f32 %v1285, %v1292
    %s1295 = scalar_lea.vmem %s7, 32
    %v1296 = vld [vmem:[%s1295] sm:$0xff]
    %v1297 = vld [vmem:[%s1295 + $0x8] sm:$0xff]
    %v1298 = vld [vmem:[%s1295 + $0x10] sm:$0xff]
    %v1299 = vld [vmem:[%s1295 + $0x18] sm:$0xff]
    %s1300 = scalar_lea.vmem %s8, 1
    %v1301 = vld [vmem:[%s1300] sm:$0x1]
    %v1303 = vperm.slane %v1301, 0
    %v1306 = vsel %vm343, %v1293, 0
    %v1309 = vsel %vm343, %v1294, 0
    %1311 = vmatpush.msra.mxu0 0.0
    %1312 = vmatpush.msra.mxu0 0.0
    %1313 = vmatpush.msra.mxu0 0.0
    %1314 = vmatpush.msra.mxu0 0.0
    %1315 = vmatpush.msra.mxu0 0.0
    %1316 = vmatpush.msra.mxu0 0.0
    %1317 = vmatpush.msra.mxu0 0.0
    %1318 = vmatpush.msra.mxu0 0.0
    %1319 = vmatpush.msra.mxu0 0.0
    %1320 = vmatpush.msra.mxu0 0.0
    %1321 = vmatpush.msra.mxu0 0.0
    %1322 = vmatpush.msra.mxu0 0.0
    %1323 = vmatpush.msra.mxu0 %v1299
    %1324 = vmatpush.msra.mxu0 %v1298
    %1325 = vmatpush.msra.mxu0 %v1297
    %1326 = vmatpush.msra.mxu0 %v1296
    %1327 = vmatmul.f32.gmra.mxu0 %v1306
    %v1328 = vpop.f32.mrf.mxu0
    %v1329 = vadd.f32 %v1303, %v1328
    %1330 = vmatmul.f32.gmra.mxu0 %v1309
    %v1331 = vpop.f32.mrf.mxu0
    %v1332 = vadd.f32 %v1303, %v1331
    %1333 = vdwg.mxu0
    %s1334 = scalar_lea.vmem %s9, 32
    %v1335 = vld [vmem:[%s1334] sm:$0xff]
    %v1336 = vld [vmem:[%s1334 + $0x8] sm:$0xff]
    %v1337 = vld [vmem:[%s1334 + $0x10] sm:$0xff]
    %v1338 = vld [vmem:[%s1334 + $0x18] sm:$0xff]
    %s1339 = scalar_lea.vmem [#allocation9], 1
    %v1340 = vld [vmem:[%s1339] sm:$0x1]
    %v1342 = vperm.slane %v1340, 0
    %1344 = vmatpush.msra.mxu0 0.0
    %1345 = vmatpush.msra.mxu0 0.0
    %1346 = vmatpush.msra.mxu0 0.0
    %1347 = vmatpush.msra.mxu0 0.0
    %1348 = vmatpush.msra.mxu0 0.0
    %1349 = vmatpush.msra.mxu0 0.0
    %1350 = vmatpush.msra.mxu0 0.0
    %1351 = vmatpush.msra.mxu0 0.0
    %1352 = vmatpush.msra.mxu0 0.0
    %1353 = vmatpush.msra.mxu0 0.0
    %1354 = vmatpush.msra.mxu0 0.0
    %1355 = vmatpush.msra.mxu0 0.0
    %1356 = vmatpush.msra.mxu0 %v1338
    %1357 = vmatpush.msra.mxu0 %v1337
    %1358 = vmatpush.msra.mxu0 %v1336
    %1359 = vmatpush.msra.mxu0 %v1335
    %1360 = vmatmul.f32.gmra.mxu0 %v1306
    %v1361 = vpop.f32.mrf.mxu0
    %v1362 = vadd.f32 %v1342, %v1361
    %1363 = vmatmul.f32.gmra.mxu0 %v1309
    %v1364 = vpop.f32.mrf.mxu0
    %v1365 = vadd.f32 %v1342, %v1364
    %1366 = vdwg.mxu0
    %s1367 = scalar_lea.vmem %s11, 32
    %v1368 = vld [vmem:[%s1367] sm:$0xff]
    %v1369 = vld [vmem:[%s1367 + $0x8] sm:$0xff]
    %v1370 = vld [vmem:[%s1367 + $0x10] sm:$0xff]
    %v1371 = vld [vmem:[%s1367 + $0x18] sm:$0xff]
    %s1372 = scalar_lea.vmem %s12, 1
    %v1373 = vld [vmem:[%s1372] sm:$0x1]
    %v1375 = vperm.slane %v1373, 0
    %1377 = vmatpush.msra.mxu0 0.0
    %1378 = vmatpush.msra.mxu0 0.0
    %1379 = vmatpush.msra.mxu0 0.0
    %1380 = vmatpush.msra.mxu0 0.0
    %1381 = vmatpush.msra.mxu0 0.0
    %1382 = vmatpush.msra.mxu0 0.0
    %1383 = vmatpush.msra.mxu0 0.0
    %1384 = vmatpush.msra.mxu0 0.0
    %1385 = vmatpush.msra.mxu0 0.0
    %1386 = vmatpush.msra.mxu0 0.0
    %1387 = vmatpush.msra.mxu0 0.0
    %1388 = vmatpush.msra.mxu0 0.0
    %1389 = vmatpush.msra.mxu0 %v1371
    %1390 = vmatpush.msra.mxu0 %v1370
    %1391 = vmatpush.msra.mxu0 %v1369
    %1392 = vmatpush.msra.mxu0 %v1368
    %1393 = vmatmul.f32.gmra.mxu0 %v1306
    %v1394 = vpop.f32.mrf.mxu0
    %v1395 = vadd.f32 %v1375, %v1394
    %1396 = vmatmul.f32.gmra.mxu0 %v1309
    %v1397 = vpop.f32.mrf.mxu0
    %v1398 = vadd.f32 %v1375, %v1397
    %1399 = vdwg.mxu0
    %v1401 = vsel %vm520, %v1329, 0
    %v1404 = vsel %vm520, %v1362, 0
    %1406 = vmatpush.xpose.msra.mxu0 0.0
    %1407 = vmatpush.xpose.msra.mxu0 0.0
    %1408 = vmatpush.xpose.msra.mxu0 0.0
    %1409 = vmatpush.xpose.msra.mxu0 0.0
    %1410 = vmatpush.xpose.msra.mxu0 0.0
    %1411 = vmatpush.xpose.msra.mxu0 0.0
    %1412 = vmatpush.xpose.msra.mxu0 0.0
    %1413 = vmatpush.xpose.msra.mxu0 0.0
    %1414 = vmatpush.xpose.msra.mxu0 0.0
    %1415 = vmatpush.xpose.msra.mxu0 0.0
    %1416 = vmatpush.xpose.msra.mxu0 0.0
    %1417 = vmatpush.xpose.msra.mxu0 0.0
    %1418 = vmatpush.xpose.msra.mxu0 0.0
    %1419 = vmatpush.xpose.msra.mxu0 0.0
    %1420 = vmatpush.xpose.msra.mxu0 0.0
    %1421 = vmatpush.xpose.msra.mxu0 %v1404
    %1422 = vmatmul.f32.gmra.mxu0 %v1401
    %v1423 = vpop.f32.mrf.mxu0
    %v1424 = vadd.f32 %v516, %v1423
    %1425 = vdwg.mxu0
    %v1427 = vsel %vm520, %v1332, 0
    %v1430 = vsel %vm520, %v1365, 0
    %1432 = vmatpush.xpose.msra.mxu0 0.0
    %1433 = vmatpush.xpose.msra.mxu0 0.0
    %1434 = vmatpush.xpose.msra.mxu0 0.0
    %1435 = vmatpush.xpose.msra.mxu0 0.0
    %1436 = vmatpush.xpose.msra.mxu0 0.0
    %1437 = vmatpush.xpose.msra.mxu0 0.0
    %1438 = vmatpush.xpose.msra.mxu0 0.0
    %1439 = vmatpush.xpose.msra.mxu0 0.0
    %1440 = vmatpush.xpose.msra.mxu0 0.0
    %1441 = vmatpush.xpose.msra.mxu0 0.0
    %1442 = vmatpush.xpose.msra.mxu0 0.0
    %1443 = vmatpush.xpose.msra.mxu0 0.0
    %1444 = vmatpush.xpose.msra.mxu0 0.0
    %1445 = vmatpush.xpose.msra.mxu0 0.0
    %1446 = vmatpush.xpose.msra.mxu0 0.0
    %1447 = vmatpush.xpose.msra.mxu0 %v1430
    %1448 = vmatmul.f32.gmra.mxu0 %v1427
    %v1449 = vpop.f32.mrf.mxu0
    %v1450 = vadd.f32 %v517, %v1449
    %1451 = vdwg.mxu0
    %v1452 = vmul.f32 %v1424, 1.442695
    %v1453 = vpow.pop %v1452
    %v1454 = vmul.f32 %v1450, 1.442695
    %v1455 = vpow.pop %v1454
    %v1456 = vsel %vm520, %v1453, 0.0
    %1457 = vadd.xlane.f32.xlu0 %v1456
    %v1458 = vpop.xlane.xlu0 %1457
    %v1459 = vsel %vm520, %v1455, 0.0
    %1460 = vadd.xlane.f32.xlu0 %v1459
    %v1461 = vpop.xlane.xlu0 %1460
    %v1462 = vrcp.pop %v1458
    %v1463 = vrcp.pop %v1461
    %v1464 = vmul.f32 %v1453, %v1462
    %v1465 = vmul.f32 %v1455, %v1463
    %v1467 = vsel %vm520, %v1464, 0
    %1469 = vmatpush.msra.mxu0 0.0
    %1470 = vmatpush.msra.mxu0 0.0
    %1471 = vmatpush.msra.mxu0 0.0
    %1472 = vmatpush.msra.mxu0 0.0
    %1473 = vmatpush.msra.mxu0 0.0
    %1474 = vmatpush.msra.mxu0 0.0
    %1475 = vmatpush.msra.mxu0 0.0
    %1476 = vmatpush.msra.mxu0 0.0
    %1477 = vmatpush.msra.mxu0 0.0
    %1478 = vmatpush.msra.mxu0 0.0
    %1479 = vmatpush.msra.mxu0 0.0
    %1480 = vmatpush.msra.mxu0 0.0
    %1481 = vmatpush.msra.mxu0 0.0
    %1482 = vmatpush.msra.mxu0 0.0
    %1483 = vmatpush.msra.mxu0 0.0
    %1484 = vmatpush.msra.mxu0 %v1395
    %1485 = vmatmul.f32.gmra.mxu0 %v1467
    %v1486 = vpop.f32.mrf.mxu0
    %v1487 = vadd.f32 0.0, %v1486
    %1488 = vdwg.mxu0
    %v1490 = vsel %vm520, %v1465, 0
    %1492 = vmatpush.msra.mxu0 0.0
    %1493 = vmatpush.msra.mxu0 0.0
    %1494 = vmatpush.msra.mxu0 0.0
    %1495 = vmatpush.msra.mxu0 0.0
    %1496 = vmatpush.msra.mxu0 0.0
    %1497 = vmatpush.msra.mxu0 0.0
    %1498 = vmatpush.msra.mxu0 0.0
    %1499 = vmatpush.msra.mxu0 0.0
    %1500 = vmatpush.msra.mxu0 0.0
    %1501 = vmatpush.msra.mxu0 0.0
    %1502 = vmatpush.msra.mxu0 0.0
    %1503 = vmatpush.msra.mxu0 0.0
    %1504 = vmatpush.msra.mxu0 0.0
    %1505 = vmatpush.msra.mxu0 0.0
    %1506 = vmatpush.msra.mxu0 0.0
    %1507 = vmatpush.msra.mxu0 %v1398
    %1508 = vmatmul.f32.gmra.mxu0 %v1490
    %v1509 = vpop.f32.mrf.mxu0
    %v1510 = vadd.f32 0.0, %v1509
    %1511 = vdwg.mxu0
    %1512 = vrot.lane.b32.xlu0 %v1329, 120
    %v1513 = vpop.permute.xlu0 %1512
    %1514 = vrot.lane.b32.xlu0 %v1362, 120
    %v1515 = vpop.permute.xlu0 %1514
    %v1516 = vsel %vm520, %v1513, 0
    %v1518 = vsel %vm520, %v1515, 0
    %1520 = vmatpush.xpose.msra.mxu0 0.0
    %1521 = vmatpush.xpose.msra.mxu0 0.0
    %1522 = vmatpush.xpose.msra.mxu0 0.0
    %1523 = vmatpush.xpose.msra.mxu0 0.0
    %1524 = vmatpush.xpose.msra.mxu0 0.0
    %1525 = vmatpush.xpose.msra.mxu0 0.0
    %1526 = vmatpush.xpose.msra.mxu0 0.0
    %1527 = vmatpush.xpose.msra.mxu0 0.0
    %1528 = vmatpush.xpose.msra.mxu0 0.0
    %1529 = vmatpush.xpose.msra.mxu0 0.0
    %1530 = vmatpush.xpose.msra.mxu0 0.0
    %1531 = vmatpush.xpose.msra.mxu0 0.0
    %1532 = vmatpush.xpose.msra.mxu0 0.0
    %1533 = vmatpush.xpose.msra.mxu0 0.0
    %1534 = vmatpush.xpose.msra.mxu0 0.0
    %1535 = vmatpush.xpose.msra.mxu0 %v1518
    %1536 = vmatmul.f32.gmra.mxu0 %v1516
    %v1537 = vpop.f32.mrf.mxu0
    %v1538 = vadd.f32 %v516, %v1537
    %1539 = vdwg.mxu0
    %1540 = vrot.lane.b32.xlu0 %v1332, 120
    %v1541 = vpop.permute.xlu0 %1540
    %1542 = vrot.lane.b32.xlu0 %v1365, 120
    %v1543 = vpop.permute.xlu0 %1542
    %v1544 = vsel %vm520, %v1541, 0
    %v1546 = vsel %vm520, %v1543, 0
    %1548 = vmatpush.xpose.msra.mxu0 0.0
    %1549 = vmatpush.xpose.msra.mxu0 0.0
    %1550 = vmatpush.xpose.msra.mxu0 0.0
    %1551 = vmatpush.xpose.msra.mxu0 0.0
    %1552 = vmatpush.xpose.msra.mxu0 0.0
    %1553 = vmatpush.xpose.msra.mxu0 0.0
    %1554 = vmatpush.xpose.msra.mxu0 0.0
    %1555 = vmatpush.xpose.msra.mxu0 0.0
    %1556 = vmatpush.xpose.msra.mxu0 0.0
    %1557 = vmatpush.xpose.msra.mxu0 0.0
    %1558 = vmatpush.xpose.msra.mxu0 0.0
    %1559 = vmatpush.xpose.msra.mxu0 0.0
    %1560 = vmatpush.xpose.msra.mxu0 0.0
    %1561 = vmatpush.xpose.msra.mxu0 0.0
    %1562 = vmatpush.xpose.msra.mxu0 0.0
    %1563 = vmatpush.xpose.msra.mxu0 %v1546
    %1564 = vmatmul.f32.gmra.mxu0 %v1544
    %v1565 = vpop.f32.mrf.mxu0
    %v1566 = vadd.f32 %v517, %v1565
    %1567 = vdwg.mxu0
    %v1568 = vmul.f32 %v1538, 1.442695
    %v1569 = vpow.pop %v1568
    %v1570 = vmul.f32 %v1566, 1.442695
    %v1571 = vpow.pop %v1570
    %v1572 = vsel %vm520, %v1569, 0.0
    %1573 = vadd.xlane.f32.xlu0 %v1572
    %v1574 = vpop.xlane.xlu0 %1573
    %v1575 = vsel %vm520, %v1571, 0.0
    %1576 = vadd.xlane.f32.xlu0 %v1575
    %v1577 = vpop.xlane.xlu0 %1576
    %v1578 = vrcp.pop %v1574
    %v1579 = vrcp.pop %v1577
    %v1580 = vmul.f32 %v1569, %v1578
    %v1581 = vmul.f32 %v1571, %v1579
    %1583 = vrot.lane.b32.xlu0 %v1395, 120
    %v1584 = vpop.permute.xlu0 %1583
    %v1587 = vsel %vm520, %v1580, 0
    %1589 = vmatpush.msra.mxu0 0.0
    %1590 = vmatpush.msra.mxu0 0.0
    %1591 = vmatpush.msra.mxu0 0.0
    %1592 = vmatpush.msra.mxu0 0.0
    %1593 = vmatpush.msra.mxu0 0.0
    %1594 = vmatpush.msra.mxu0 0.0
    %1595 = vmatpush.msra.mxu0 0.0
    %1596 = vmatpush.msra.mxu0 0.0
    %1597 = vmatpush.msra.mxu0 0.0
    %1598 = vmatpush.msra.mxu0 0.0
    %1599 = vmatpush.msra.mxu0 0.0
    %1600 = vmatpush.msra.mxu0 0.0
    %1601 = vmatpush.msra.mxu0 0.0
    %1602 = vmatpush.msra.mxu0 0.0
    %1603 = vmatpush.msra.mxu0 0.0
    %1604 = vmatpush.msra.mxu0 %v1584
    %1605 = vmatmul.f32.gmra.mxu0 %v1587
    %v1606 = vpop.f32.mrf.mxu0
    %v1607 = vadd.f32 0.0, %v1606
    %1608 = vdwg.mxu0
    %1610 = vrot.lane.b32.xlu0 %v1398, 120
    %v1611 = vpop.permute.xlu0 %1610
    %v1614 = vsel %vm520, %v1581, 0
    %1616 = vmatpush.msra.mxu0 0.0
    %1617 = vmatpush.msra.mxu0 0.0
    %1618 = vmatpush.msra.mxu0 0.0
    %1619 = vmatpush.msra.mxu0 0.0
    %1620 = vmatpush.msra.mxu0 0.0
    %1621 = vmatpush.msra.mxu0 0.0
    %1622 = vmatpush.msra.mxu0 0.0
    %1623 = vmatpush.msra.mxu0 0.0
    %1624 = vmatpush.msra.mxu0 0.0
    %1625 = vmatpush.msra.mxu0 0.0
    %1626 = vmatpush.msra.mxu0 0.0
    %1627 = vmatpush.msra.mxu0 0.0
    %1628 = vmatpush.msra.mxu0 0.0
    %1629 = vmatpush.msra.mxu0 0.0
    %1630 = vmatpush.msra.mxu0 0.0
    %1631 = vmatpush.msra.mxu0 %v1611
    %1632 = vmatmul.f32.gmra.mxu0 %v1614
    %v1633 = vpop.f32.mrf.mxu0
    %v1634 = vadd.f32 0.0, %v1633
    %1635 = vdwg.mxu0
    %1636 = vrot.lane.b32.xlu0 %v1329, 112
    %v1637 = vpop.permute.xlu0 %1636
    %1638 = vrot.lane.b32.xlu0 %v1362, 112
    %v1639 = vpop.permute.xlu0 %1638
    %v1640 = vsel %vm520, %v1637, 0
    %v1642 = vsel %vm520, %v1639, 0
    %1644 = vmatpush.xpose.msra.mxu0 0.0
    %1645 = vmatpush.xpose.msra.mxu0 0.0
    %1646 = vmatpush.xpose.msra.mxu0 0.0
    %1647 = vmatpush.xpose.msra.mxu0 0.0
    %1648 = vmatpush.xpose.msra.mxu0 0.0
    %1649 = vmatpush.xpose.msra.mxu0 0.0
    %1650 = vmatpush.xpose.msra.mxu0 0.0
    %1651 = vmatpush.xpose.msra.mxu0 0.0
    %1652 = vmatpush.xpose.msra.mxu0 0.0
    %1653 = vmatpush.xpose.msra.mxu0 0.0
    %1654 = vmatpush.xpose.msra.mxu0 0.0
    %1655 = vmatpush.xpose.msra.mxu0 0.0
    %1656 = vmatpush.xpose.msra.mxu0 0.0
    %1657 = vmatpush.xpose.msra.mxu0 0.0
    %1658 = vmatpush.xpose.msra.mxu0 0.0
    %1659 = vmatpush.xpose.msra.mxu0 %v1642
    %1660 = vmatmul.f32.gmra.mxu0 %v1640
    %v1661 = vpop.f32.mrf.mxu0
    %v1662 = vadd.f32 %v516, %v1661
    %1663 = vdwg.mxu0
    %1664 = vrot.lane.b32.xlu0 %v1332, 112
    %v1665 = vpop.permute.xlu0 %1664
    %1666 = vrot.lane.b32.xlu0 %v1365, 112
    %v1667 = vpop.permute.xlu0 %1666
    %v1668 = vsel %vm520, %v1665, 0
    %v1670 = vsel %vm520, %v1667, 0
    %1672 = vmatpush.xpose.msra.mxu0 0.0
    %1673 = vmatpush.xpose.msra.mxu0 0.0
    %1674 = vmatpush.xpose.msra.mxu0 0.0
    %1675 = vmatpush.xpose.msra.mxu0 0.0
    %1676 = vmatpush.xpose.msra.mxu0 0.0
    %1677 = vmatpush.xpose.msra.mxu0 0.0
    %1678 = vmatpush.xpose.msra.mxu0 0.0
    %1679 = vmatpush.xpose.msra.mxu0 0.0
    %1680 = vmatpush.xpose.msra.mxu0 0.0
    %1681 = vmatpush.xpose.msra.mxu0 0.0
    %1682 = vmatpush.xpose.msra.mxu0 0.0
    %1683 = vmatpush.xpose.msra.mxu0 0.0
    %1684 = vmatpush.xpose.msra.mxu0 0.0
    %1685 = vmatpush.xpose.msra.mxu0 0.0
    %1686 = vmatpush.xpose.msra.mxu0 0.0
    %1687 = vmatpush.xpose.msra.mxu0 %v1670
    %1688 = vmatmul.f32.gmra.mxu0 %v1668
    %v1689 = vpop.f32.mrf.mxu0
    %v1690 = vadd.f32 %v517, %v1689
    %1691 = vdwg.mxu0
    %v1692 = vmul.f32 %v1662, 1.442695
    %v1693 = vpow.pop %v1692
    %v1694 = vmul.f32 %v1690, 1.442695
    %v1695 = vpow.pop %v1694
    %v1696 = vsel %vm520, %v1693, 0.0
    %1697 = vadd.xlane.f32.xlu0 %v1696
    %v1698 = vpop.xlane.xlu0 %1697
    %v1699 = vsel %vm520, %v1695, 0.0
    %1700 = vadd.xlane.f32.xlu0 %v1699
    %v1701 = vpop.xlane.xlu0 %1700
    %v1702 = vrcp.pop %v1698
    %v1703 = vrcp.pop %v1701
    %v1704 = vmul.f32 %v1693, %v1702
    %v1705 = vmul.f32 %v1695, %v1703
    %1706 = vrot.lane.b32.xlu0 %v1395, 112
    %v1707 = vpop.permute.xlu0 %1706
    %v1710 = vsel %vm520, %v1704, 0
    %1712 = vmatpush.msra.mxu0 0.0
    %1713 = vmatpush.msra.mxu0 0.0
    %1714 = vmatpush.msra.mxu0 0.0
    %1715 = vmatpush.msra.mxu0 0.0
    %1716 = vmatpush.msra.mxu0 0.0
    %1717 = vmatpush.msra.mxu0 0.0
    %1718 = vmatpush.msra.mxu0 0.0
    %1719 = vmatpush.msra.mxu0 0.0
    %1720 = vmatpush.msra.mxu0 0.0
    %1721 = vmatpush.msra.mxu0 0.0
    %1722 = vmatpush.msra.mxu0 0.0
    %1723 = vmatpush.msra.mxu0 0.0
    %1724 = vmatpush.msra.mxu0 0.0
    %1725 = vmatpush.msra.mxu0 0.0
    %1726 = vmatpush.msra.mxu0 0.0
    %1727 = vmatpush.msra.mxu0 %v1707
    %1728 = vmatmul.f32.gmra.mxu0 %v1710
    %v1729 = vpop.f32.mrf.mxu0
    %v1730 = vadd.f32 0.0, %v1729
    %1731 = vdwg.mxu0
    %1732 = vrot.lane.b32.xlu0 %v1398, 112
    %v1733 = vpop.permute.xlu0 %1732
    %v1736 = vsel %vm520, %v1705, 0
    %1738 = vmatpush.msra.mxu0 0.0
    %1739 = vmatpush.msra.mxu0 0.0
    %1740 = vmatpush.msra.mxu0 0.0
    %1741 = vmatpush.msra.mxu0 0.0
    %1742 = vmatpush.msra.mxu0 0.0
    %1743 = vmatpush.msra.mxu0 0.0
    %1744 = vmatpush.msra.mxu0 0.0
    %1745 = vmatpush.msra.mxu0 0.0
    %1746 = vmatpush.msra.mxu0 0.0
    %1747 = vmatpush.msra.mxu0 0.0
    %1748 = vmatpush.msra.mxu0 0.0
    %1749 = vmatpush.msra.mxu0 0.0
    %1750 = vmatpush.msra.mxu0 0.0
    %1751 = vmatpush.msra.mxu0 0.0
    %1752 = vmatpush.msra.mxu0 0.0
    %1753 = vmatpush.msra.mxu0 %v1733
    %1754 = vmatmul.f32.gmra.mxu0 %v1736
    %v1755 = vpop.f32.mrf.mxu0
    %v1756 = vadd.f32 0.0, %v1755
    %1757 = vdwg.mxu0
    %1758 = vrot.lane.b32.xlu0 %v1329, 104
    %v1759 = vpop.permute.xlu0 %1758
    %1760 = vrot.lane.b32.xlu0 %v1362, 104
    %v1761 = vpop.permute.xlu0 %1760
    %v1762 = vsel %vm520, %v1759, 0
    %v1764 = vsel %vm520, %v1761, 0
    %1766 = vmatpush.xpose.msra.mxu0 0.0
    %1767 = vmatpush.xpose.msra.mxu0 0.0
    %1768 = vmatpush.xpose.msra.mxu0 0.0
    %1769 = vmatpush.xpose.msra.mxu0 0.0
    %1770 = vmatpush.xpose.msra.mxu0 0.0
    %1771 = vmatpush.xpose.msra.mxu0 0.0
    %1772 = vmatpush.xpose.msra.mxu0 0.0
    %1773 = vmatpush.xpose.msra.mxu0 0.0
    %1774 = vmatpush.xpose.msra.mxu0 0.0
    %1775 = vmatpush.xpose.msra.mxu0 0.0
    %1776 = vmatpush.xpose.msra.mxu0 0.0
    %1777 = vmatpush.xpose.msra.mxu0 0.0
    %1778 = vmatpush.xpose.msra.mxu0 0.0
    %1779 = vmatpush.xpose.msra.mxu0 0.0
    %1780 = vmatpush.xpose.msra.mxu0 0.0
    %1781 = vmatpush.xpose.msra.mxu0 %v1764
    %1782 = vmatmul.f32.gmra.mxu0 %v1762
    %v1783 = vpop.f32.mrf.mxu0
    %v1784 = vadd.f32 %v516, %v1783
    %1785 = vdwg.mxu0
    %1786 = vrot.lane.b32.xlu0 %v1332, 104
    %v1787 = vpop.permute.xlu0 %1786
    %1788 = vrot.lane.b32.xlu0 %v1365, 104
    %v1789 = vpop.permute.xlu0 %1788
    %v1790 = vsel %vm520, %v1787, 0
    %v1792 = vsel %vm520, %v1789, 0
    %1794 = vmatpush.xpose.msra.mxu0 0.0
    %1795 = vmatpush.xpose.msra.mxu0 0.0
    %1796 = vmatpush.xpose.msra.mxu0 0.0
    %1797 = vmatpush.xpose.msra.mxu0 0.0
    %1798 = vmatpush.xpose.msra.mxu0 0.0
    %1799 = vmatpush.xpose.msra.mxu0 0.0
    %1800 = vmatpush.xpose.msra.mxu0 0.0
    %1801 = vmatpush.xpose.msra.mxu0 0.0
    %1802 = vmatpush.xpose.msra.mxu0 0.0
    %1803 = vmatpush.xpose.msra.mxu0 0.0
    %1804 = vmatpush.xpose.msra.mxu0 0.0
    %1805 = vmatpush.xpose.msra.mxu0 0.0
    %1806 = vmatpush.xpose.msra.mxu0 0.0
    %1807 = vmatpush.xpose.msra.mxu0 0.0
    %1808 = vmatpush.xpose.msra.mxu0 0.0
    %1809 = vmatpush.xpose.msra.mxu0 %v1792
    %1810 = vmatmul.f32.gmra.mxu0 %v1790
    %v1811 = vpop.f32.mrf.mxu0
    %v1812 = vadd.f32 %v517, %v1811
    %1813 = vdwg.mxu0
    %v1814 = vmul.f32 %v1784, 1.442695
    %v1815 = vpow.pop %v1814
    %v1816 = vmul.f32 %v1812, 1.442695
    %v1817 = vpow.pop %v1816
    %v1818 = vsel %vm520, %v1815, 0.0
    %1819 = vadd.xlane.f32.xlu0 %v1818
    %v1820 = vpop.xlane.xlu0 %1819
    %v1821 = vsel %vm520, %v1817, 0.0
    %1822 = vadd.xlane.f32.xlu0 %v1821
    %v1823 = vpop.xlane.xlu0 %1822
    %v1824 = vrcp.pop %v1820
    %v1825 = vrcp.pop %v1823
    %v1826 = vmul.f32 %v1815, %v1824
    %v1827 = vmul.f32 %v1817, %v1825
    %1828 = vrot.lane.b32.xlu0 %v1395, 104
    %v1829 = vpop.permute.xlu0 %1828
    %v1832 = vsel %vm520, %v1826, 0
    %1834 = vmatpush.msra.mxu0 0.0
    %1835 = vmatpush.msra.mxu0 0.0
    %1836 = vmatpush.msra.mxu0 0.0
    %1837 = vmatpush.msra.mxu0 0.0
    %1838 = vmatpush.msra.mxu0 0.0
    %1839 = vmatpush.msra.mxu0 0.0
    %1840 = vmatpush.msra.mxu0 0.0
    %1841 = vmatpush.msra.mxu0 0.0
    %1842 = vmatpush.msra.mxu0 0.0
    %1843 = vmatpush.msra.mxu0 0.0
    %1844 = vmatpush.msra.mxu0 0.0
    %1845 = vmatpush.msra.mxu0 0.0
    %1846 = vmatpush.msra.mxu0 0.0
    %1847 = vmatpush.msra.mxu0 0.0
    %1848 = vmatpush.msra.mxu0 0.0
    %1849 = vmatpush.msra.mxu0 %v1829
    %1850 = vmatmul.f32.gmra.mxu0 %v1832
    %v1851 = vpop.f32.mrf.mxu0
    %v1852 = vadd.f32 0.0, %v1851
    %1853 = vdwg.mxu0
    %1854 = vrot.lane.b32.xlu0 %v1398, 104
    %v1855 = vpop.permute.xlu0 %1854
    %v1858 = vsel %vm520, %v1827, 0
    %1860 = vmatpush.msra.mxu0 0.0
    %1861 = vmatpush.msra.mxu0 0.0
    %1862 = vmatpush.msra.mxu0 0.0
    %1863 = vmatpush.msra.mxu0 0.0
    %1864 = vmatpush.msra.mxu0 0.0
    %1865 = vmatpush.msra.mxu0 0.0
    %1866 = vmatpush.msra.mxu0 0.0
    %1867 = vmatpush.msra.mxu0 0.0
    %1868 = vmatpush.msra.mxu0 0.0
    %1869 = vmatpush.msra.mxu0 0.0
    %1870 = vmatpush.msra.mxu0 0.0
    %1871 = vmatpush.msra.mxu0 0.0
    %1872 = vmatpush.msra.mxu0 0.0
    %1873 = vmatpush.msra.mxu0 0.0
    %1874 = vmatpush.msra.mxu0 0.0
    %1875 = vmatpush.msra.mxu0 %v1855
    %1876 = vmatmul.f32.gmra.mxu0 %v1858
    %v1877 = vpop.f32.mrf.mxu0
    %v1878 = vadd.f32 0.0, %v1877
    %1879 = vdwg.mxu0
    %1882 = vrot.lane.b32.xlu0 %v1607, 8
    %v1883 = vpop.permute.xlu0 %1882
    %1884 = vrot.lane.b32.xlu0 %v1634, 8
    %v1885 = vpop.permute.xlu0 %1884
    %1890 = vrot.lane.b32.xlu0 %v1730, 16
    %v1891 = vpop.permute.xlu0 %1890
    %1892 = vrot.lane.b32.xlu0 %v1756, 16
    %v1893 = vpop.permute.xlu0 %1892
    %1898 = vrot.lane.b32.xlu0 %v1852, 24
    %v1899 = vpop.permute.xlu0 %1898
    %1900 = vrot.lane.b32.xlu0 %v1878, 24
    %v1901 = vpop.permute.xlu0 %1900
    %v1904 = vsel %vm520, %v1487, %v1883
    %v1905 = vsel %vm520, %v1510, %v1885
    %v1906 = vsel %vm1027, %v1904, %v1891
    %v1907 = vsel %vm1027, %v1905, %v1893
    %v1908 = vsel %vm1030, %v1906, %v1899
    %v1909 = vsel %vm1030, %v1907, %v1901
    %s1910 = scalar_lea.vmem [#allocation10], 32
    %v1911 = vld [vmem:[%s1910] sm:$0xff]
    %v1912 = vld [vmem:[%s1910 + $0x8] sm:$0xff]
    %v1913 = vld [vmem:[%s1910 + $0x10] sm:$0xff]
    %v1914 = vld [vmem:[%s1910 + $0x18] sm:$0xff]
    %s1915 = scalar_lea.vmem [#allocation12], 1
    %v1916 = vld [vmem:[%s1915] sm:$0x1]
    %v1918 = vperm.slane %v1916, 0
    %v1921 = vsel %vm343, %v1908, 0
    %v1924 = vsel %vm343, %v1909, 0
    %1926 = vmatpush.msra.mxu0 0.0
    %1927 = vmatpush.msra.mxu0 0.0
    %1928 = vmatpush.msra.mxu0 0.0
    %1929 = vmatpush.msra.mxu0 0.0
    %1930 = vmatpush.msra.mxu0 0.0
    %1931 = vmatpush.msra.mxu0 0.0
    %1932 = vmatpush.msra.mxu0 0.0
    %1933 = vmatpush.msra.mxu0 0.0
    %1934 = vmatpush.msra.mxu0 0.0
    %1935 = vmatpush.msra.mxu0 0.0
    %1936 = vmatpush.msra.mxu0 0.0
    %1937 = vmatpush.msra.mxu0 0.0
    %1938 = vmatpush.msra.mxu0 %v1914
    %1939 = vmatpush.msra.mxu0 %v1913
    %1940 = vmatpush.msra.mxu0 %v1912
    %1941 = vmatpush.msra.mxu0 %v1911
    %1942 = vmatmul.f32.gmra.mxu0 %v1921
    %v1943 = vpop.f32.mrf.mxu0
    %v1944 = vadd.f32 %v1918, %v1943
    %1945 = vmatmul.f32.gmra.mxu0 %v1924
    %v1946 = vpop.f32.mrf.mxu0
    %v1947 = vadd.f32 %v1918, %v1946
    %1948 = vdwg.mxu0
    %v1949 = vadd.f32 %v1293, %v1944
    %v1950 = vadd.f32 %v1294, %v1947
    %s1951 = scalar_lea.vmem %s15, 1
    %v1952 = vld [vmem:[%s1951] sm:$0x1]
    %s1953 = scalar_lea.vmem %s16, 1
    %v1954 = vld [vmem:[%s1953] sm:$0x1]
    %v1955 = vsel %vm343, %v1949, 0.0
    %1956 = vadd.xlane.f32.xlu0 %v1955
    %v1957 = vpop.xlane.xlu0 %1956
    %v1958 = vsel %vm343, %v1950, 0.0
    %1959 = vadd.xlane.f32.xlu0 %v1958
    %v1960 = vpop.xlane.xlu0 %1959
    %v1961 = vmul.f32 %v1957, %v356
    %v1962 = vmul.f32 %v1960, %v356
    %v1963 = vmul.f32 %v1949, %v1949
    %v1964 = vmul.f32 %v1950, %v1950
    %v1965 = vsel %vm343, %v1963, 0.0
    %1966 = vadd.xlane.f32.xlu0 %v1965
    %v1967 = vpop.xlane.xlu0 %1966
    %v1968 = vsel %vm343, %v1964, 0.0
    %1969 = vadd.xlane.f32.xlu0 %v1968
    %v1970 = vpop.xlane.xlu0 %1969
    %v1971 = vmul.f32 %v1967, %v356
    %v1972 = vmul.f32 %v1970, %v356
    %v1973 = vmul.f32 %v1961, %v1961
    %v1974 = vmul.f32 %v1962, %v1962
    %v1975 = vsub.f32 %v1971, %v1973
    %v1976 = vsub.f32 %v1972, %v1974
    %v1977 = vadd.f32 %v1975, 1e-12
    %v1978 = vadd.f32 %v1976, 1e-12
    %v1979 = vrsqrt.pop %v1977
    %v1980 = vmul.f32 %v1979, %v1977
    %v1981 = vmul.f32 %v1980, %v1979
    %v1982 = vmul.f32 0.5, %v1981
    %v1983 = vsub.f32 1.5, %v1982
    %v1984 = vmul.f32 %v1979, %v1983
    %vm1985 = vweird.f32 %v1977
    %vm1986 = vweird.f32 %v1979
    %vm1987 = vmor %vm1985, %vm1986
    %v1988 = vsel %vm1987, %v1979, %v1984
    %v1989 = vrsqrt.pop %v1978
    %v1990 = vmul.f32 %v1989, %v1978
    %v1991 = vmul.f32 %v1990, %v1989
    %v1992 = vmul.f32 0.5, %v1991
    %v1993 = vsub.f32 1.5, %v1992
    %v1994 = vmul.f32 %v1989, %v1993
    %vm1995 = vweird.f32 %v1978
    %vm1996 = vweird.f32 %v1989
    %vm1997 = vmor %vm1995, %vm1996
    %v1998 = vsel %vm1997, %v1989, %v1994
    %v2000 = vperm.slane %v1952, 0
    %v2002 = vmul.f32 %v2000, %v1988
    %v2003 = vmul.f32 %v2000, %v1998
    %v2004 = vmul.f32 %v1949, %v2002
    %v2005 = vmul.f32 %v1950, %v2003
    %v2006 = vmul.f32 %v1961, %v2002
    %v2007 = vmul.f32 %v1962, %v2003
    %v2009 = vperm.slane %v1954, 0
    %v2011 = vsub.f32 %v2009, %v2006
    %v2012 = vsub.f32 %v2009, %v2007
    %v2013 = vadd.f32 %v2004, %v2011
    %v2014 = vadd.f32 %v2005, %v2012
    %s2015 = scalar_lea.vmem [#allocation13], 32
    %v2016 = vld [vmem:[%s2015] sm:$0xff]
    %v2017 = vld [vmem:[%s2015 + $0x8] sm:$0xff]
    %v2018 = vld [vmem:[%s2015 + $0x10] sm:$0xff]
    %v2019 = vld [vmem:[%s2015 + $0x18] sm:$0xff]
    %s2020 = scalar_lea.vmem [#allocation15], 1
    %v2021 = vld [vmem:[%s2020] sm:$0x1]
    %v2023 = vperm.slane %v2021, 0
    %v2026 = vsel %vm343, %v2013, 0
    %v2029 = vsel %vm343, %v2014, 0
    %2031 = vmatpush.msra.mxu0 0.0
    %2032 = vmatpush.msra.mxu0 0.0
    %2033 = vmatpush.msra.mxu0 0.0
    %2034 = vmatpush.msra.mxu0 0.0
    %2035 = vmatpush.msra.mxu0 0.0
    %2036 = vmatpush.msra.mxu0 0.0
    %2037 = vmatpush.msra.mxu0 0.0
    %2038 = vmatpush.msra.mxu0 0.0
    %2039 = vmatpush.msra.mxu0 0.0
    %2040 = vmatpush.msra.mxu0 0.0
    %2041 = vmatpush.msra.mxu0 0.0
    %2042 = vmatpush.msra.mxu0 0.0
    %2043 = vmatpush.msra.mxu0 %v2019
    %2044 = vmatpush.msra.mxu0 %v2018
    %2045 = vmatpush.msra.mxu0 %v2017
    %2046 = vmatpush.msra.mxu0 %v2016
    %2047 = vmatmul.f32.gmra.mxu0 %v2026
    %v2048 = vpop.f32.mrf.mxu0
    %v2049 = vadd.f32 %v2023, %v2048
    %2050 = vmatmul.f32.gmra.mxu0 %v2029
    %v2051 = vpop.f32.mrf.mxu0
    %v2052 = vadd.f32 %v2023, %v2051
    %2053 = vdwg.mxu0
    %v2054 = vmul.f32 %v2049, 0.5
    %v2055 = vmul.f32 %v2052, 0.5
    %v2056 = vmul.f32 %v2049, 0.044715
    %v2057 = vmul.f32 %v2052, 0.044715
    %v2058 = vmul.f32 %v2056, %v2049
    %v2059 = vmul.f32 %v2057, %v2052
    %v2060 = vmul.f32 %v2058, %v2049
    %v2061 = vmul.f32 %v2059, %v2052
    %v2062 = vadd.f32 %v2049, %v2060
    %v2063 = vadd.f32 %v2052, %v2061
    %v2064 = vmul.f32 %v2062, 0.7978846
    %v2065 = vmul.f32 %v2063, 0.7978846
    %v2066 = vtanh.pop %v2064
    %v2067 = vtanh.pop %v2065
    %v2068 = vadd.f32 %v2066, 1.0
    %v2069 = vadd.f32 %v2067, 1.0
    %v2070 = vmul.f32 %v2054, %v2068
    %v2071 = vmul.f32 %v2055, %v2069
    %s2072 = scalar_lea.vmem %s19, 64
    %v2073 = vld [vmem:[%s2072] sm:$0xff]
    %v2074 = vld [vmem:[%s2072 + $0x8] sm:$0xff]
    %v2075 = vld [vmem:[%s2072 + $0x10] sm:$0xff]
    %v2076 = vld [vmem:[%s2072 + $0x18] sm:$0xff]
    %v2077 = vld [vmem:[%s2072 + $0x20] sm:$0xff]
    %v2078 = vld [vmem:[%s2072 + $0x28] sm:$0xff]
    %v2079 = vld [vmem:[%s2072 + $0x30] sm:$0xff]
    %v2080 = vld [vmem:[%s2072 + $0x38] sm:$0xff]
    %s2081 = scalar_lea.vmem [#allocation16], 1
    %v2082 = vld [vmem:[%s2081] sm:$0x1]
    %v2084 = vperm.slane %v2082, 0
    %v2087 = vsel %vm1201, %v2070, 0
    %v2090 = vsel %vm1201, %v2071, 0
    %2092 = vmatpush.msra.mxu0 0.0
    %2093 = vmatpush.msra.mxu0 0.0
    %2094 = vmatpush.msra.mxu0 0.0
    %2095 = vmatpush.msra.mxu0 0.0
    %2096 = vmatpush.msra.mxu0 0.0
    %2097 = vmatpush.msra.mxu0 0.0
    %2098 = vmatpush.msra.mxu0 0.0
    %2099 = vmatpush.msra.mxu0 0.0
    %2100 = vmatpush.msra.mxu0 %v2080
    %2101 = vmatpush.msra.mxu0 %v2079
    %2102 = vmatpush.msra.mxu0 %v2078
    %2103 = vmatpush.msra.mxu0 %v2077
    %2104 = vmatpush.msra.mxu0 %v2076
    %2105 = vmatpush.msra.mxu0 %v2075
    %2106 = vmatpush.msra.mxu0 %v2074
    %2107 = vmatpush.msra.mxu0 %v2073
    %2108 = vmatmul.f32.gmra.mxu0 %v2087
    %v2109 = vpop.f32.mrf.mxu0
    %v2110 = vadd.f32 %v2084, %v2109
    %2111 = vmatmul.f32.gmra.mxu0 %v2090
    %v2112 = vpop.f32.mrf.mxu0
    %v2113 = vadd.f32 %v2084, %v2112
    %2114 = vdwg.mxu0
    %v2115 = vadd.f32 %v2013, %v2110
    %v2116 = vadd.f32 %v2014, %v2113
    %s2117 = scalar_lea.vmem [#allocation18], 1
    %v2118 = vld [vmem:[%s2117] sm:$0x1]
    %s2119 = scalar_lea.vmem [#allocation19], 1
    %v2120 = vld [vmem:[%s2119] sm:$0x1]
    %v2121 = vsel %vm343, %v2115, 0.0
    %2122 = vadd.xlane.f32.xlu0 %v2121
    %v2123 = vpop.xlane.xlu0 %2122
    %v2124 = vsel %vm343, %v2116, 0.0
    %2125 = vadd.xlane.f32.xlu0 %v2124
    %v2126 = vpop.xlane.xlu0 %2125
    %v2127 = vmul.f32 %v2123, %v356
    %v2128 = vmul.f32 %v2126, %v356
    %v2129 = vmul.f32 %v2115, %v2115
    %v2130 = vmul.f32 %v2116, %v2116
    %v2131 = vsel %vm343, %v2129, 0.0
    %2132 = vadd.xlane.f32.xlu0 %v2131
    %v2133 = vpop.xlane.xlu0 %2132
    %v2134 = vsel %vm343, %v2130, 0.0
    %2135 = vadd.xlane.f32.xlu0 %v2134
    %v2136 = vpop.xlane.xlu0 %2135
    %v2137 = vmul.f32 %v2133, %v356
    %v2138 = vmul.f32 %v2136, %v356
    %v2139 = vmul.f32 %v2127, %v2127
    %v2140 = vmul.f32 %v2128, %v2128
    %v2141 = vsub.f32 %v2137, %v2139
    %v2142 = vsub.f32 %v2138, %v2140
    %v2143 = vadd.f32 %v2141, 1e-12
    %v2144 = vadd.f32 %v2142, 1e-12
    %v2145 = vrsqrt.pop %v2143
    %v2146 = vmul.f32 %v2145, %v2143
    %v2147 = vmul.f32 %v2146, %v2145
    %v2148 = vmul.f32 0.5, %v2147
    %v2149 = vsub.f32 1.5, %v2148
    %v2150 = vmul.f32 %v2145, %v2149
    %vm2151 = vweird.f32 %v2143
    %vm2152 = vweird.f32 %v2145
    %vm2153 = vmor %vm2151, %vm2152
    %v2154 = vsel %vm2153, %v2145, %v2150
    %v2155 = vrsqrt.pop %v2144
    %v2156 = vmul.f32 %v2155, %v2144
    %v2157 = vmul.f32 %v2156, %v2155
    %v2158 = vmul.f32 0.5, %v2157
    %v2159 = vsub.f32 1.5, %v2158
    %v2160 = vmul.f32 %v2155, %v2159
    %vm2161 = vweird.f32 %v2144
    %vm2162 = vweird.f32 %v2155
    %vm2163 = vmor %vm2161, %vm2162
    %v2164 = vsel %vm2163, %v2155, %v2160
    %v2166 = vperm.slane %v2118, 0
    %v2168 = vmul.f32 %v2166, %v2154
    %v2169 = vmul.f32 %v2166, %v2164
    %v2170 = vmul.f32 %v2115, %v2168
    %v2171 = vmul.f32 %v2116, %v2169
    %v2172 = vmul.f32 %v2127, %v2168
    %v2173 = vmul.f32 %v2128, %v2169
    %v2175 = vperm.slane %v2120, 0
    %v2177 = vsub.f32 %v2175, %v2172
    %v2178 = vsub.f32 %v2175, %v2173
    %v2179 = vadd.f32 %v2170, %v2177
    %v2180 = vadd.f32 %v2171, %v2178
    %v2181 = vld [vmem:[#allocation21] sm:$0xff]
    %v2182 = vld [vmem:[#allocation21 + $0x8] sm:$0xff]
    %v2183 = vld [vmem:[#allocation21 + $0x10] sm:$0xff]
    %v2184 = vld [vmem:[#allocation21 + $0x18] sm:$0xff]
    %v2185 = vld [vmem:[%s24] sm:$0x1]
    %v2187 = vperm.slane %v2185, 0
    %v2190 = vsel %vm343, %v2179, 0
    %v2193 = vsel %vm343, %v2180, 0
    %2195 = vmatpush.msra.mxu0 0.0
    %2196 = vmatpush.msra.mxu0 0.0
    %2197 = vmatpush.msra.mxu0 0.0
    %2198 = vmatpush.msra.mxu0 0.0
    %2199 = vmatpush.msra.mxu0 0.0
    %2200 = vmatpush.msra.mxu0 0.0
    %2201 = vmatpush.msra.mxu0 0.0
    %2202 = vmatpush.msra.mxu0 0.0
    %2203 = vmatpush.msra.mxu0 0.0
    %2204 = vmatpush.msra.mxu0 0.0
    %2205 = vmatpush.msra.mxu0 0.0
    %2206 = vmatpush.msra.mxu0 0.0
    %2207 = vmatpush.msra.mxu0 %v2184
    %2208 = vmatpush.msra.mxu0 %v2183
    %2209 = vmatpush.msra.mxu0 %v2182
    %2210 = vmatpush.msra.mxu0 %v2181
    %2211 = vmatmul.f32.gmra.mxu0 %v2190
    %v2212 = vpop.f32.mrf.mxu0
    %v2213 = vadd.f32 %v2187, %v2212
    %2214 = vmatmul.f32.gmra.mxu0 %v2193
    %v2215 = vpop.f32.mrf.mxu0
    %v2216 = vadd.f32 %v2187, %v2215
    %2217 = vdwg.mxu0
    %v2218 = vmax.f32 %v2213, 0.0
    %v2219 = vmax.f32 %v2216, 0.0
    %v2220 = vld [vmem:[%s25] sm:$0xff]
    %v2221 = vld [vmem:[%s25 + $0x8] sm:$0xff]
    %v2222 = vld [vmem:[%s25 + $0x10] sm:$0xff]
    %v2223 = vld [vmem:[%s25 + $0x18] sm:$0xff]
    %v2224 = vld [vmem:[%s25 + $0x20] sm:$0xff]
    %v2225 = vld [vmem:[%s25 + $0x28] sm:$0xff]
    %v2226 = vld [vmem:[%s25 + $0x30] sm:$0xff]
    %v2227 = vld [vmem:[%s25 + $0x38] sm:$0xff]
    %v2228 = vld [vmem:[%s25 + $0x40] sm:$0xff]
    %v2229 = vld [vmem:[%s25 + $0x48] sm:$0xff]
    %v2230 = vld [vmem:[%s25 + $0x50] sm:$0xff]
    %v2231 = vld [vmem:[%s25 + $0x58] sm:$0xff]
    %v2232 = vld [vmem:[%s25 + $0x60] sm:$0xff]
    %v2233 = vld [vmem:[%s25 + $0x68] sm:$0xff]
    %v2234 = vld [vmem:[%s25 + $0x70] sm:$0xff]
    %v2235 = vld [vmem:[%s25 + $0x78] sm:$0xff]
    %v2236 = vld [vmem:[%s26] sm:$0x1]
    %v2238 = vperm.slane %v2236, 0
    %2240 = vmatpush.msra.mxu0 %v2235
    %2241 = vmatpush.msra.mxu0 %v2234
    %2242 = vmatpush.msra.mxu0 %v2233
    %2243 = vmatpush.msra.mxu0 %v2232
    %2244 = vmatpush.msra.mxu0 %v2231
    %2245 = vmatpush.msra.mxu0 %v2230
    %2246 = vmatpush.msra.mxu0 %v2229
    %2247 = vmatpush.msra.mxu0 %v2228
    %2248 = vmatpush.msra.mxu0 %v2227
    %2249 = vmatpush.msra.mxu0 %v2226
    %2250 = vmatpush.msra.mxu0 %v2225
    %2251 = vmatpush.msra.mxu0 %v2224
    %2252 = vmatpush.msra.mxu0 %v2223
    %2253 = vmatpush.msra.mxu0 %v2222
    %2254 = vmatpush.msra.mxu0 %v2221
    %2255 = vmatpush.msra.mxu0 %v2220
    %2256 = vmatmul.f32.gmra.mxu0 %v2218
    %v2257 = vpop.f32.mrf.mxu0
    %v2258 = vadd.f32 %v2238, %v2257
    %2259 = vmatmul.f32.gmra.mxu0 %v2219
    %v2260 = vpop.f32.mrf.mxu0
    %v2261 = vadd.f32 %v2238, %v2260
    %2262 = vdwg.mxu0
    %2263 = vst [vmem:[%s27] sm:$0xff] %v2258
    %2264 = vst [vmem:[%s27 + $0x8] sm:$0xff] %v2261
    // Predicated region
    $region158: #{rubert_mlp_text_forward.1} parent=1 // pred_check
      _
    $region159: #{rubert_mlp_text_forward.1} parent=1 // pred_check_branch
      %2266 = sbr.rel (0) target = $region161
    $region160: #{rubert_mlp_text_forward.1} parent=1 // pred_region
      _
    $region161: #{rubert_mlp_text_forward.1} parent=1 // pred_fallthru
      _
    // Predicated region
    $region162: #{rubert_mlp_text_forward.1} parent=1 // pred_check
      _
    $region163: #{rubert_mlp_text_forward.1} parent=1 // pred_check_branch
      %2268 = sbr.rel (0) target = $region165
    $region164: #{rubert_mlp_text_forward.1} parent=1 // pred_region
      _
    $region165: #{rubert_mlp_text_forward.1} parent=1 // pred_fallthru
      _
    %2269 = vsyncpa [#allocation4], 1
    %2270 = vsyncpa [#allocation8], 1
    %2271 = vsyncpa [#allocation11], 1
    %2272 = vsyncpa [#allocation14], 1
    %2273 = vsyncpa [#allocation17], 1
    %2274 = vsyncpa [#allocation20], 1
    %2275 = vsyncpa [#allocation5], 1

</llo_original>
